<compile_context>
chip_gen: v6e
topology: v6e:2x2x1
jax: 0.10.0
libtpu: 0.0.40
codegen_flags: <defaults>
</compile_context>

<pallas_src>
import numpy as np
import jax
import jax.numpy as jnp
from jax import lax
from jax.experimental import pallas as pl
from jax.experimental.pallas import tpu as pltpu

# ----------------------------- model configuration ---------------------------
SEQ_LEN, PRED_LEN, C_OUT, D_MODEL, BATCH = 64, 32, 4, 16, 4
CONV_SIZES = (12, 4)                       # hard-coded in the PyTorch module
TOTAL_LEN = SEQ_LEN + PRED_LEN             # L = 96
LPAD = 128                                 # lane-padded length (zero cost: vregs are 128 wide)
LO0 = TOTAL_LEN // CONV_SIZES[0]           # 8
LO1 = LO0 // CONV_SIZES[1]                 # 2
BBLK = 2                                   # samples stacked per grid step (M -> 128 on MXU)
NR = BBLK * C_OUT                          # stacked sensor rows per grid step = 8
BN_EPS = 1e-5
HIGHEST = lax.Precision.HIGHEST            # used only by the pure-JAX reference


# -------------------- natural cubic spline interpolation matrix --------------
def natural_cubic_spline_matrix(n_in, n_out):
    """S [n_out, n_in]: out = S @ y, natural cubic spline through
    (linspace(0,1,n_in), y) evaluated at linspace(0,1,n_out)."""
    t = np.linspace(0.0, 1.0, n_in)
    s = np.linspace(0.0, 1.0, n_out)
    n = n_in
    if n == 1:
        return np.ones((n_out, 1))
    h = np.diff(t)
    A = np.zeros((n, n))
    Bm = np.zeros((n, n))
    A[0, 0] = 1.0
    A[-1, -1] = 1.0
    for i in range(1, n - 1):
        A[i, i - 1] = h[i - 1]
        A[i, i] = 2.0 * (h[i - 1] + h[i])
        A[i, i + 1] = h[i]
        Bm[i, i - 1] = 6.0 / h[i - 1]
        Bm[i, i] = -6.0 / h[i - 1] - 6.0 / h[i]
        Bm[i, i + 1] = 6.0 / h[i]
    M = np.linalg.solve(A, Bm)        # second derivatives as a linear map of y
    S = np.zeros((n_out, n))
    for j, x in enumerate(s):
        i = int(np.clip(np.searchsorted(t, x, side="right") - 1, 0, n - 2))
        hi = h[i]
        a = (t[i + 1] - x) / hi
        b = (x - t[i]) / hi
        row = np.zeros(n)
        row[i] += a
        row[i + 1] += b
        row += ((a ** 3 - a) * hi * hi / 6.0) * M[i]
        row += ((b ** 3 - b) * hi * hi / 6.0) * M[i + 1]
        S[j] = row
    return S


# --------------------------- kernel-ready parameters --------------------------
def prepare_kernel_params(params):
    """One-time (off the hot path) host-side rearrangement of the PyTorch-layout parameters
    into kernel-ready, lane-padded arrays:
      * BatchNorm folded into the Conv1d weights (eval mode).
      * Conv1d lowered to the tile->mask->collapse->block-channel-mix form (2 matmuls/layer).
      * Inception blocks: 0.5*(1x1 + 3x3) mean, sensor(kx) shifts and sample/sensor identity
        expansion all folded into 3 per-ky weight matrices per block.
      * torchcubicspline upsampling as dense [L_in, L] right-multiplication matrices."""
    f32 = np.float32

    def pad_lanes(a, width=LPAD):
        a = np.asarray(a, f32)
        out = np.zeros(a.shape[:-1] + (width,), f32)
        out[..., : a.shape[-1]] = a
        return out

    kp = {}
    L = TOTAL_LEN
    # ---- length encoder: xenc[r, l] = sum_t xn[r, t] * W_le[l, t] + b_le[l] ------------------
    wle = np.asarray(params["W_le"], f32)                                  # [L, T]
    kp["wle_t"] = pad_lanes(wle.T)                                         # [T, LPAD]
    kp["ble"] = pad_lanes(np.asarray(params["b_le"], f32).reshape(1, L))   # [1, LPAD]

    # ---- ConvLayers (BN folded), tile->mask->collapse form -----------------------------------
    eB = np.eye(BBLK, dtype=f32)
    for i, K in enumerate(CONV_SIZES):
        g = np.asarray(params[f"bn{i}_gamma"], f32)
        rv = np.asarray(params[f"bn{i}_rv"], f32)
        rm = np.asarray(params[f"bn{i}_rm"], f32)
        beta = np.asarray(params[f"bn{i}_beta"], f32)
        s = g / np.sqrt(rv + BN_EPS)
        w_eff = np.asarray(params[f"conv{i}_W"], f32) * s[:, None, None]   # [o, c, k]
        b_eff = (np.asarray(params[f"conv{i}_b"], f32) - rm) * s + beta
        lin = L if i == 0 else LO0
        lout = lin // K
        # Wflat[(b,o), k*NR + (b,c)] = w_eff[o, c, k]  (block-diagonal over stacked samples)
        wflat = np.zeros((NR, K * NR), f32)
        for k in range(K):
            wflat[:, k * NR:(k + 1) * NR] = np.kron(eB, w_eff[:, :, k])
        lidx = np.arange(lin)
        mask = np.zeros((K * NR, lin), f32)          # mask[(k,r), l] = [l % K == k]
        for k in range(K):
            mask[k * NR:(k + 1) * NR, :] = (lidx % K == k).astype(f32)
        coll = (lidx[:, None] // K == np.arange(lout)[None, :]).astype(f32)   # [lin, lout]
        if i == 0:                                    # lane-pad the L-wide operands
            mask = pad_lanes(mask)                                        # [K*NR, LPAD]
            coll = np.concatenate([coll, np.zeros((LPAD - lin, lout), f32)], axis=0)
        kp[f"wflat{i}"] = wflat
        kp[f"mask{i}"] = mask
        kp[f"coll{i}"] = coll
        kp[f"bc{i}"] = np.tile(b_eff, BBLK).reshape(NR, 1)

    # ---- natural-cubic-spline upsampling (right-multiplication matrices) ---------------------
    kp["s0t"] = pad_lanes(natural_cubic_spline_matrix(LO0, L).T)          # [LO0, LPAD]
    kp["s1t"] = pad_lanes(natural_cubic_spline_matrix(LO1, L).T)          # [LO1, LPAD]

    # ---- Inception blocks: fold 0.5*mean(1x1,3x3), sensor(kx) shifts, identity expansion -----
    eNR = np.eye(NR, dtype=f32)
    sh4 = np.zeros((2, C_OUT, C_OUT), f32)           # (sh4[idx] @ A)[n] = A[n + d_idx]
    for idx, d in enumerate((-1, 1)):
        for n in range(C_OUT):
            if 0 <= n + d < C_OUT:
                sh4[idx, n, n + d] = 1.0
    snr = np.stack([np.kron(eB, sh4[0]), np.kron(eB, sh4[1])])            # per-sample block diag
    s_kx = [snr[0], eNR, snr[1]]                     # kx = 0, 1, 2

    # Inception 1: 3 input channels -> d_model; output rows (o, r) = o*NR + r
    w3 = np.asarray(params["inc1_W3"], f32)          # [O, C, ky, kx]
    w1 = np.asarray(params["inc1_W1"], f32)[:, :, 0, 0]                   # [O, C]
    C1 = 3
    e3 = np.eye(C1, dtype=f32)
    w1f = np.zeros((3, D_MODEL * NR, C1 * NR), f32)
    for ky in range(3):
        acc = np.zeros((D_MODEL * NR, C1 * NR), f32)
        for kx in range(3):
            acc += 0.5 * np.kron(w3[:, :, ky, kx], eNR) @ np.kron(e3, s_kx[kx])
        if ky == 1:
            acc += 0.5 * np.kron(w1, eNR)            # 1x1 path merged into the center tap
        w1f[ky] = acc
    kp["w1f"] = w1f
    kp["binc1"] = (0.5 * (np.repeat(np.asarray(params["inc1_b1"], f32), NR)
                          + np.repeat(np.asarray(params["inc1_b3"], f32), NR))
                   ).reshape(D_MODEL * NR, 1).astype(f32)

    # Inception 2: d_model -> 1 channel; output rows r (sample, sensor)
    w3b = np.asarray(params["inc2_W3"], f32)[0]      # [C=d_model, ky, kx]
    w1b = np.asarray(params["inc2_W1"], f32)[0, :, 0, 0]                  # [C]
    C2 = D_MODEL
    w2f = np.zeros((3, NR, C2 * NR), f32)
    for ky in range(3):
        acc = np.zeros((NR, C2 * NR), f32)
        for kx in range(3):
            acc += 0.5 * s_kx[kx] @ np.kron(w3b[:, ky, kx].reshape(1, C2), eNR)
        if ky == 1:
            acc += 0.5 * np.kron(w1b.reshape(1, C2), eNR)
        w2f[ky] = acc
    kp["w2f"] = w2f
    b2 = 0.5 * (float(np.asarray(params["inc2_b1"])[0]) + float(np.asarray(params["inc2_b3"])[0]))
    kp["binc2"] = b2 * np.ones((NR, 1), f32)

    # ---- length decoder -----------------------------------------------------------------------
    wld = np.asarray(params["W_ld"], f32)            # [pred, L]
    wld_t = np.zeros((LPAD, PRED_LEN), f32)
    wld_t[:L, :] = wld.T
    kp["wld_t"] = wld_t
    kp["bld"] = np.asarray(params["b_ld"], f32).reshape(1, PRED_LEN)

    return {k: jnp.asarray(v, jnp.float32) for k, v in kp.items()}


# ------------------------------ the fused kernel -------------------------------
def msnet_kernel(x_ref,
                 wle_t_ref, ble_ref,
                 wflat0_ref, mask0_ref, coll0_ref, bc0_ref, s0t_ref,
                 wflat1_ref, mask1_ref, coll1_ref, bc1_ref, s1t_ref,
                 w1f_ref, binc1_ref, w2f_ref, binc2_ref,
                 wld_t_ref, bld_ref,
                 o_ref):
    f32 = jnp.float32

    def mm(a, b):
        return jnp.dot(a, b, preferred_element_type=f32)

    def elu(v):
        return jnp.where(v > 0, v, jnp.exp(jnp.minimum(v, 0.0)) - 1.0)

    def erf(v):
        # Abramowitz & Stegun 7.1.26 (|abs err| < 1.5e-7): matches nn.GELU()'s exact-erf form
        # to f32 accuracy using only EUP exp + VPU ops (Mosaic-safe, no math.erf needed).
        a1, a2, a3 = 0.254829592, -0.284496736, 1.421413741
        a4, a5, p = -1.453152027, 1.061405429, 0.3275911
        sgn = jnp.where(v >= 0, 1.0, -1.0)
        av = jnp.abs(v)
        t = 1.0 / (1.0 + p * av)
        poly = ((((a5 * t + a4) * t + a3) * t + a2) * t + a1) * t
        return sgn * (1.0 - poly * jnp.exp(-av * av))

    def shift(v, direction, zero_col):
        # Conv-style time shift along lanes with zero padding (replaces the rl shift matmuls):
        #   direction=+1: out[:, l] = v[:, l-1];   direction=-1: out[:, l] = v[:, l+1]
        rolled = pltpu.roll(v, direction % LPAD, axis=1)
        lane = lax.broadcasted_iota(jnp.int32, v.shape, 1)
        return jnp.where(lane == zero_col, 0.0, rolled)

    # ---------------- normalization (time on lanes; torch.var(unbiased=False)) ----------------
    x = x_ref[...]                                          # [NR, T]
    mean = jnp.mean(x, axis=1, keepdims=True)               # [NR, 1]
    xc = x - mean
    var = jnp.mean(xc * xc, axis=1, keepdims=True)
    std = jnp.sqrt(var + 1e-5)
    xn = xc / std

    # ---------------- length encoder ----------------------------------------------------------
    xenc = mm(xn, wle_t_ref[...]) + ble_ref[...]            # [NR, LPAD]  (lanes >= 96 are 0)

    # ---------------- ConvLayer 0 (k=12, stride 12) + folded BN + ELU + spline ----------------
    t0 = jnp.concatenate([xenc] * CONV_SIZES[0], axis=0)    # [12*NR, LPAD]
    xb0 = mm(t0 * mask0_ref[...], coll0_ref[...])           # [12*NR, LO0]  taps -> sublanes
    a0 = elu(mm(wflat0_ref[...], xb0) + bc0_ref[...])       # [NR, LO0]
    s0 = mm(a0, s0t_ref[...])                               # [NR, LPAD]

    # ---------------- ConvLayer 1 (k=4, stride 4) + folded BN + ELU + spline ------------------
    t1 = jnp.concatenate([a0] * CONV_SIZES[1], axis=0)      # [4*NR, LO0]
    xb1 = mm(t1 * mask1_ref[...], coll1_ref[...])           # [4*NR, LO1]
    a1 = elu(mm(wflat1_ref[...], xb1) + bc1_ref[...])       # [NR, LO1]
    s1 = mm(a1, s1t_ref[...])                               # [NR, LPAD]

    # ---------------- Inception 1: mean(1x1, 3x3) folded to 3 matmuls, then exact GELU --------
    x12 = jnp.concatenate([xenc, s0, s1], axis=0)           # [3*NR, LPAD]
    h = mm(w1f_ref[1], x12)                                 # center tap (1x1 path folded in)
    h = h + mm(w1f_ref[0], shift(x12, +1, 0))               # ky=0 tap: input at l-1
    h = h + mm(w1f_ref[2], shift(x12, -1, TOTAL_LEN - 1))   # ky=2 tap: input at l+1
    h = h + binc1_ref[...]                                  # [D_MODEL*NR, LPAD]
    h = 0.5 * h * (1.0 + erf(h * 0.7071067811865476))       # exact-erf GELU (nn.GELU())

    # ---------------- Inception 2: mean(1x1, 3x3) folded to 3 matmuls -------------------------
    c = mm(w2f_ref[1], h)
    c = c + shift(mm(w2f_ref[0], h), +1, 0)
    c = c + shift(mm(w2f_ref[2], h), -1, TOTAL_LEN - 1)
    c = c + binc2_ref[...]                                  # [NR, LPAD]

    # ---------------- residual + length decoder + de-normalization ----------------------------
    xr = xenc + c                                           # [NR, LPAD] (pad lanes killed below)
    g = mm(xr, wld_t_ref[...]) + bld_ref[...]               # [NR, PRED]  (wld_t pad rows are 0)
    o_ref[...] = g * std + mean


# ------------------------------ pallas_call wrapper ----------------------------
_KP_ORDER = ("wle_t", "ble",
             "wflat0", "mask0", "coll0", "bc0", "s0t",
             "wflat1", "mask1", "coll1", "bc1", "s1t",
             "w1f", "binc1", "w2f", "binc2",
             "wld_t", "bld")


def _cost_estimate(n_steps, in_bytes, w_bytes, out_bytes):
    mkn = [
        (NR, SEQ_LEN, LPAD),                                               # length encoder
        (CONV_SIZES[0] * NR, LPAD, LO0), (NR, CONV_SIZES[0] * NR, LO0),    # conv 0
        (NR, LO0, LPAD),                                                   # spline 0
        (CONV_SIZES[1] * NR, LO0, LO1), (NR, CONV_SIZES[1] * NR, LO1),     # conv 1
        (NR, LO1, LPAD),                                                   # spline 1
        (D_MODEL * NR, 3 * NR, LPAD)] * 1 + \
        [(D_MODEL * NR, 3 * NR, LPAD)] * 2 + \
        [(NR, D_MODEL * NR, LPAD)] * 3 + \
        [(NR, LPAD, PRED_LEN)]                                             # decoder
    flops = n_steps * sum(2 * m * k * n for m, k, n in mkn)
    trans = n_steps * (NR * LO0 + NR * LO1 + D_MODEL * NR * LPAD)          # ELU / erf exps
    return pl.CostEstimate(flops=int(flops), transcendentals=int(trans),
                           bytes_accessed=int(in_bytes + w_bytes + out_bytes))


def pallas_forward(kp, batch_x, batch_x_mark, dec_inp, batch_y_mark):
    del batch_x_mark, dec_inp, batch_y_mark        # unused by the PyTorch forward
    B, T, N = batch_x.shape
    assert N == C_OUT and T == SEQ_LEN and B % BBLK == 0
    n_steps = B // BBLK
    # Cheap host/XLA-side transpose so time lands on lanes inside the kernel.
    x_rows = batch_x.transpose(0, 2, 1).reshape(B * N, T).astype(jnp.float32)
    weights = [kp[name] for name in _KP_ORDER]

    def _const_spec(a):
        return pl.BlockSpec(a.shape, lambda b, _n=a.ndim: (0,) * _n)

    w_bytes = sum(int(np.prod(w.shape)) * 4 for w in weights)
    cost = _cost_estimate(n_steps, x_rows.size * 4, w_bytes, B * N * PRED_LEN * 4)

    out = pl.pallas_call(
        msnet_kernel,
        grid=(n_steps,),
        in_specs=[pl.BlockSpec((NR, T), lambda b: (b, 0))]
                 + [_const_spec(a) for a in weights],
        out_specs=pl.BlockSpec((NR, PRED_LEN), lambda b: (b, 0)),
        out_shape=jax.ShapeDtypeStruct((B * N, PRED_LEN), jnp.float32),
        compiler_params=pltpu.CompilerParams(dimension_semantics=("parallel",)),
        cost_estimate=cost,
    )(x_rows, *weights)
    # [B*N, pred] -> [B, pred, N] (module output layout); cheap XLA-side reshuffle.
    return out.reshape(B, N, PRED_LEN).transpose(0, 2, 1)


# ------------------------------ parameters -------------------------------------
def init_params(key):
    ks = jax.random.split(key, 16)

    def nrm(k, shape, scale=0.1):
        return (scale * jax.random.normal(k, shape)).astype(jnp.float32)

    p = {
        "W_le": nrm(ks[0], (TOTAL_LEN, SEQ_LEN)),
        "b_le": nrm(ks[1], (TOTAL_LEN,)),
        "W_ld": nrm(ks[2], (PRED_LEN, TOTAL_LEN)),
        "b_ld": nrm(ks[3], (PRED_LEN,)),
    }
    for i, w in enumerate(CONV_SIZES):
        p[f"conv{i}_W"] = nrm(ks[4 + 2 * i], (C_OUT, C_OUT, w), 0.2)
        p[f"conv{i}_b"] = nrm(ks[5 + 2 * i], (C_OUT,))
        p[f"bn{i}_gamma"] = 1.0 + nrm(ks[8 + i], (C_OUT,))
        p[f"bn{i}_beta"] = nrm(ks[10 + i], (C_OUT,))
        p[f"bn{i}_rm"] = nrm(ks[12 + i], (C_OUT,))
        p[f"bn{i}_rv"] = 1.0 + jnp.abs(nrm(ks[14 + i], (C_OUT,)))
    # Inception biases are constant_(0) in the PyTorch init
    p["inc1_W1"] = nrm(ks[6], (D_MODEL, 3, 1, 1), 0.2)
    p["inc1_b1"] = jnp.zeros((D_MODEL,), jnp.float32)
    p["inc1_W3"] = nrm(ks[7], (D_MODEL, 3, 3, 3), 0.2)
    p["inc1_b3"] = jnp.zeros((D_MODEL,), jnp.float32)
    p["inc2_W1"] = nrm(ks[9], (1, D_MODEL, 1, 1), 0.2)
    p["inc2_b1"] = jnp.zeros((1,), jnp.float32)
    p["inc2_W3"] = nrm(ks[11], (1, D_MODEL, 3, 3), 0.2)
    p["inc2_b3"] = jnp.zeros((1,), jnp.float32)
    return p


# ------------------------------ pure-JAX reference ------------------------------
def ref_forward(params, batch_x, spline_mats):
    x = batch_x.astype(jnp.float32)
    mean = x.mean(axis=1, keepdims=True)
    xc = x - mean
    var = jnp.mean(xc * xc, axis=1, keepdims=True)      # torch.var(unbiased=False)
    std = jnp.sqrt(var + 1e-5)
    xn = (xc / std).transpose(0, 2, 1)                                   # [B, N, T]
    xenc = jnp.einsum("bnt,lt->bnl", xn, params["W_le"], precision=HIGHEST) + params["b_le"]
    B, N, L = xenc.shape
    temp = xenc
    scales = []
    for i, w in enumerate(CONV_SIZES):
        Lo = temp.shape[-1] // w
        xw = temp[..., :Lo * w].reshape(B, N, Lo, w)
        y = (jnp.einsum("bilk,oik->bol", xw, params[f"conv{i}_W"], precision=HIGHEST)
             + params[f"conv{i}_b"][None, :, None])
        y = ((y - params[f"bn{i}_rm"][None, :, None])
             / jnp.sqrt(params[f"bn{i}_rv"][None, :, None] + BN_EPS)
             * params[f"bn{i}_gamma"][None, :, None] + params[f"bn{i}_beta"][None, :, None])
        y = jnp.where(y > 0, y, jnp.exp(jnp.minimum(y, 0.0)) - 1.0)
        temp = y
        scales.append(jnp.einsum("bnk,lk->bnl", y, spline_mats[i], precision=HIGHEST))
    allin = jnp.transpose(jnp.stack([xenc] + scales, axis=1), (0, 1, 3, 2))   # [B, 3, L, N]

    def conv2d(x_, w_, b_, pad):
        y_ = lax.conv_general_dilated(x_, w_, (1, 1), [(pad, pad), (pad, pad)],
                                      dimension_numbers=("NCHW", "OIHW", "NCHW"),
                                      precision=HIGHEST)
        return y_ + b_[None, :, None, None]

    h = 0.5 * (conv2d(allin, params["inc1_W1"], params["inc1_b1"], 0)
               + conv2d(allin, params["inc1_W3"], params["inc1_b3"], 1))
    h = jax.nn.gelu(h, approximate=False)
    c = 0.5 * (conv2d(h, params["inc2_W1"], params["inc2_b1"], 0)
               + conv2d(h, params["inc2_W3"], params["inc2_b3"], 1))
    conv_out = xenc + c[:, 0].transpose(0, 2, 1)
    fc = jnp.einsum("bnl,hl->bnh", conv_out, params["W_ld"], precision=HIGHEST) + params["b_ld"]
    return fc.transpose(0, 2, 1) * std + mean


# ------------------------------------ main --------------------------------------
if __name__ == "__main__":
    key = jax.random.PRNGKey(0)
    pkey, xkey = jax.random.split(key)
    params = init_params(pkey)
    kparams = prepare_kernel_params(params)   # one-time host-side weight prep (off hot path)

    batch_x = jax.random.normal(xkey, (BATCH, SEQ_LEN, C_OUT), jnp.float32)
    batch_x_mark = jnp.zeros((BATCH, SEQ_LEN, 4), jnp.float32)
    dec_inp = jnp.zeros((BATCH, PRED_LEN, C_OUT), jnp.float32)
    batch_y_mark = jnp.zeros((BATCH, PRED_LEN, 4), jnp.float32)

    fwd = jax.jit(pallas_forward)             # the jitted forward is a single pallas_call
    out = jax.block_until_ready(fwd(kparams, batch_x, batch_x_mark, dec_inp, batch_y_mark))
    assert out.shape == (BATCH, PRED_LEN, C_OUT)
    assert np.isfinite(np.asarray(out)).all()

    spline_mats = (jnp.asarray(natural_cubic_spline_matrix(LO0, TOTAL_LEN), jnp.float32),
                   jnp.asarray(natural_cubic_spline_matrix(LO1, TOTAL_LEN), jnp.float32))
    ref = ref_forward(params, batch_x, spline_mats)
    err = float(jnp.max(jnp.abs(out - ref)))
    # Residual mismatch is dominated by default (single-pass bf16) MXU precision in the kernel
    # vs the HIGHEST-precision reference; the GELU form now matches exactly (erf-based).
    assert err < 5e-2, f"mismatch vs pure-JAX reference: {err}"

    print("KERNEL_OK")
</pallas_src>

<mosaic_0001>
module attributes {stable_mosaic.version = 11 : i64} {
  func.func @msnet_kernel(%arg0: i32, %arg1: memref<8x64xf32, #tpu.memory_space<vmem>>, %arg2: memref<64x128xf32, #tpu.memory_space<vmem>>, %arg3: memref<1x128xf32, #tpu.memory_space<vmem>>, %arg4: memref<8x96xf32, #tpu.memory_space<vmem>>, %arg5: memref<96x128xf32, #tpu.memory_space<vmem>>, %arg6: memref<128x8xf32, #tpu.memory_space<vmem>>, %arg7: memref<8x1xf32, #tpu.memory_space<vmem>>, %arg8: memref<8x128xf32, #tpu.memory_space<vmem>>, %arg9: memref<8x32xf32, #tpu.memory_space<vmem>>, %arg10: memref<32x8xf32, #tpu.memory_space<vmem>>, %arg11: memref<8x2xf32, #tpu.memory_space<vmem>>, %arg12: memref<8x1xf32, #tpu.memory_space<vmem>>, %arg13: memref<2x128xf32, #tpu.memory_space<vmem>>, %arg14: memref<3x128x24xf32, #tpu.memory_space<vmem>>, %arg15: memref<128x1xf32, #tpu.memory_space<vmem>>, %arg16: memref<3x8x128xf32, #tpu.memory_space<vmem>>, %arg17: memref<8x1xf32, #tpu.memory_space<vmem>>, %arg18: memref<128x32xf32, #tpu.memory_space<vmem>>, %arg19: memref<1x32xf32, #tpu.memory_space<vmem>>, %arg20: memref<8x32xf32, #tpu.memory_space<vmem>>) attributes {dimension_semantics = [#tpu.dimension_semantics<parallel>], iteration_bounds = array<i64: 2>, scalar_prefetch = 0 : i64, scratch_operands = 0 : i64, tpu.core_type = #tpu.core_type<tc>, window_params = [{transform_indices = @transform_0, window_bounds = array<i64: 8, 64>}, {pipeline_mode = #tpu.pipeline_mode<synchronous>, transform_indices = @transform_1, window_bounds = array<i64: 64, 128>}, {pipeline_mode = #tpu.pipeline_mode<synchronous>, transform_indices = @transform_2, window_bounds = array<i64: 1, 128>}, {pipeline_mode = #tpu.pipeline_mode<synchronous>, transform_indices = @transform_3, window_bounds = array<i64: 8, 96>}, {pipeline_mode = #tpu.pipeline_mode<synchronous>, transform_indices = @transform_4, window_bounds = array<i64: 96, 128>}, {pipeline_mode = #tpu.pipeline_mode<synchronous>, transform_indices = @transform_5, window_bounds = array<i64: 128, 8>}, {pipeline_mode = #tpu.pipeline_mode<synchronous>, transform_indices = @transform_6, window_bounds = array<i64: 8, 1>}, {pipeline_mode = #tpu.pipeline_mode<synchronous>, transform_indices = @transform_7, window_bounds = array<i64: 8, 128>}, {pipeline_mode = #tpu.pipeline_mode<synchronous>, transform_indices = @transform_8, window_bounds = array<i64: 8, 32>}, {pipeline_mode = #tpu.pipeline_mode<synchronous>, transform_indices = @transform_9, window_bounds = array<i64: 32, 8>}, {pipeline_mode = #tpu.pipeline_mode<synchronous>, transform_indices = @transform_10, window_bounds = array<i64: 8, 2>}, {pipeline_mode = #tpu.pipeline_mode<synchronous>, transform_indices = @transform_11, window_bounds = array<i64: 8, 1>}, {pipeline_mode = #tpu.pipeline_mode<synchronous>, transform_indices = @transform_12, window_bounds = array<i64: 2, 128>}, {pipeline_mode = #tpu.pipeline_mode<synchronous>, transform_indices = @transform_13, window_bounds = array<i64: 3, 128, 24>}, {pipeline_mode = #tpu.pipeline_mode<synchronous>, transform_indices = @transform_14, window_bounds = array<i64: 128, 1>}, {pipeline_mode = #tpu.pipeline_mode<synchronous>, transform_indices = @transform_15, window_bounds = array<i64: 3, 8, 128>}, {pipeline_mode = #tpu.pipeline_mode<synchronous>, transform_indices = @transform_16, window_bounds = array<i64: 8, 1>}, {pipeline_mode = #tpu.pipeline_mode<synchronous>, transform_indices = @transform_17, window_bounds = array<i64: 128, 32>}, {pipeline_mode = #tpu.pipeline_mode<synchronous>, transform_indices = @transform_18, window_bounds = array<i64: 1, 32>}, {transform_indices = @transform_19, window_bounds = array<i64: 8, 32>}]} {
    %c0 = arith.constant 0 : index
    %c0_0 = arith.constant 0 : index
    %0 = vector.load %arg1[%c0, %c0_0] : memref<8x64xf32, #tpu.memory_space<vmem>>, vector<8x64xf32>
    %cst = arith.constant dense<0.000000e+00> : vector<8xf32>
    %1 = vector.multi_reduction <add>, %0, %cst [1] : vector<8x64xf32> to vector<8xf32>
    %2 = vector.shape_cast %1 : vector<8xf32> to vector<8x1xf32>
    %cst_1 = arith.constant 6.400000e+01 : f32
    %3 = vector.broadcast %cst_1 : f32 to vector<8x1xf32>
    %4 = arith.divf %2, %3 : vector<8x1xf32>
    %5 = vector.broadcast %4 : vector<8x1xf32> to vector<8x64xf32>
    %6 = arith.subf %0, %5 : vector<8x64xf32>
    %7 = arith.mulf %6, %6 : vector<8x64xf32>
    %cst_2 = arith.constant dense<0.000000e+00> : vector<8xf32>
    %8 = vector.multi_reduction <add>, %7, %cst_2 [1] : vector<8x64xf32> to vector<8xf32>
    %9 = vector.shape_cast %8 : vector<8xf32> to vector<8x1xf32>
    %cst_3 = arith.constant 6.400000e+01 : f32
    %10 = vector.broadcast %cst_3 : f32 to vector<8x1xf32>
    %11 = arith.divf %9, %10 : vector<8x1xf32>
    %cst_4 = arith.constant 9.99999974E-6 : f32
    %12 = vector.broadcast %cst_4 : f32 to vector<8x1xf32>
    %13 = arith.addf %11, %12 : vector<8x1xf32>
    %14 = math.sqrt %13 : vector<8x1xf32>
    %15 = vector.broadcast %14 : vector<8x1xf32> to vector<8x64xf32>
    %16 = arith.divf %6, %15 : vector<8x64xf32>
    %c0_5 = arith.constant 0 : index
    %c0_6 = arith.constant 0 : index
    %17 = vector.load %arg2[%c0_5, %c0_6] : memref<64x128xf32, #tpu.memory_space<vmem>>, vector<64x128xf32>
    %cst_7 = arith.constant dense<0.000000e+00> : vector<8x128xf32>
    %18 = tpu.matmul %16, %17, %cst_7 {dimension_numbers = #tpu.dot_dimension_numbers<[1], [0], [0], [1], [0, 0, 1, 1], [], []>} : vector<8x64xf32>, vector<64x128xf32>, vector<8x128xf32> -> vector<8x128xf32>
    %c0_8 = arith.constant 0 : index
    %c0_9 = arith.constant 0 : index
    %19 = vector.load %arg3[%c0_8, %c0_9] : memref<1x128xf32, #tpu.memory_space<vmem>>, vector<1x128xf32>
    %20 = vector.broadcast %19 : vector<1x128xf32> to vector<8x128xf32>
    %21 = arith.addf %18, %20 : vector<8x128xf32>
    %22 = tpu.concatenate %21, %21, %21, %21, %21, %21, %21, %21, %21, %21, %21, %21 in 0 : vector<8x128xf32>, vector<8x128xf32>, vector<8x128xf32>, vector<8x128xf32>, vector<8x128xf32>, vector<8x128xf32>, vector<8x128xf32>, vector<8x128xf32>, vector<8x128xf32>, vector<8x128xf32>, vector<8x128xf32>, vector<8x128xf32> -> vector<96x128xf32>
    %c0_10 = arith.constant 0 : index
    %c0_11 = arith.constant 0 : index
    %23 = vector.load %arg5[%c0_10, %c0_11] : memref<96x128xf32, #tpu.memory_space<vmem>>, vector<96x128xf32>
    %24 = arith.mulf %22, %23 : vector<96x128xf32>
    %c0_12 = arith.constant 0 : index
    %c0_13 = arith.constant 0 : index
    %25 = vector.load %arg6[%c0_12, %c0_13] : memref<128x8xf32, #tpu.memory_space<vmem>>, vector<128x8xf32>
    %cst_14 = arith.constant dense<0.000000e+00> : vector<96x8xf32>
    %26 = tpu.matmul %24, %25, %cst_14 {dimension_numbers = #tpu.dot_dimension_numbers<[1], [0], [0], [1], [0, 0, 1, 1], [], []>} : vector<96x128xf32>, vector<128x8xf32>, vector<96x8xf32> -> vector<96x8xf32>
    %c0_15 = arith.constant 0 : index
    %c0_16 = arith.constant 0 : index
    %27 = vector.load %arg4[%c0_15, %c0_16] : memref<8x96xf32, #tpu.memory_space<vmem>>, vector<8x96xf32>
    %cst_17 = arith.constant dense<0.000000e+00> : vector<8x8xf32>
    %28 = tpu.matmul %27, %26, %cst_17 {dimension_numbers = #tpu.dot_dimension_numbers<[1], [0], [0], [1], [0, 0, 1, 1], [], []>} : vector<8x96xf32>, vector<96x8xf32>, vector<8x8xf32> -> vector<8x8xf32>
    %c0_18 = arith.constant 0 : index
    %c0_19 = arith.constant 0 : index
    %29 = vector.load %arg7[%c0_18, %c0_19] : memref<8x1xf32, #tpu.memory_space<vmem>>, vector<8x1xf32>
    %30 = vector.broadcast %29 : vector<8x1xf32> to vector<8x8xf32>
    %31 = arith.addf %28, %30 : vector<8x8xf32>
    %cst_20 = arith.constant 0.000000e+00 : f32
    %32 = vector.broadcast %cst_20 : f32 to vector<8x8xf32>
    %33 = arith.cmpf ogt, %31, %32 : vector<8x8xf32>
    %cst_21 = arith.constant 0.000000e+00 : f32
    %34 = vector.broadcast %cst_21 : f32 to vector<8x8xf32>
    %35 = arith.minimumf %31, %34 : vector<8x8xf32>
    %36 = math.exp %35 : vector<8x8xf32>
    %cst_22 = arith.constant 1.000000e+00 : f32
    %37 = vector.broadcast %cst_22 : f32 to vector<8x8xf32>
    %38 = arith.subf %36, %37 : vector<8x8xf32>
    %39 = arith.select %33, %31, %38 : vector<8x8xi1>, vector<8x8xf32>
    %c0_23 = arith.constant 0 : index
    %c0_24 = arith.constant 0 : index
    %40 = vector.load %arg8[%c0_23, %c0_24] : memref<8x128xf32, #tpu.memory_space<vmem>>, vector<8x128xf32>
    %cst_25 = arith.constant dense<0.000000e+00> : vector<8x128xf32>
    %41 = tpu.matmul %39, %40, %cst_25 {dimension_numbers = #tpu.dot_dimension_numbers<[1], [0], [0], [1], [0, 0, 1, 1], [], []>} : vector<8x8xf32>, vector<8x128xf32>, vector<8x128xf32> -> vector<8x128xf32>
    %42 = tpu.concatenate %39, %39, %39, %39 in 0 : vector<8x8xf32>, vector<8x8xf32>, vector<8x8xf32>, vector<8x8xf32> -> vector<32x8xf32>
    %c0_26 = arith.constant 0 : index
    %c0_27 = arith.constant 0 : index
    %43 = vector.load %arg10[%c0_26, %c0_27] : memref<32x8xf32, #tpu.memory_space<vmem>>, vector<32x8xf32>
    %44 = arith.mulf %42, %43 : vector<32x8xf32>
    %c0_28 = arith.constant 0 : index
    %c0_29 = arith.constant 0 : index
    %45 = vector.load %arg11[%c0_28, %c0_29] : memref<8x2xf32, #tpu.memory_space<vmem>>, vector<8x2xf32>
    %cst_30 = arith.constant dense<0.000000e+00> : vector<32x2xf32>
    %46 = tpu.matmul %44, %45, %cst_30 {dimension_numbers = #tpu.dot_dimension_numbers<[1], [0], [0], [1], [0, 0, 1, 1], [], []>} : vector<32x8xf32>, vector<8x2xf32>, vector<32x2xf32> -> vector<32x2xf32>
    %c0_31 = arith.constant 0 : index
    %c0_32 = arith.constant 0 : index
    %47 = vector.load %arg9[%c0_31, %c0_32] : memref<8x32xf32, #tpu.memory_space<vmem>>, vector<8x32xf32>
    %cst_33 = arith.constant dense<0.000000e+00> : vector<8x2xf32>
    %48 = tpu.matmul %47, %46, %cst_33 {dimension_numbers = #tpu.dot_dimension_numbers<[1], [0], [0], [1], [0, 0, 1, 1], [], []>} : vector<8x32xf32>, vector<32x2xf32>, vector<8x2xf32> -> vector<8x2xf32>
    %c0_34 = arith.constant 0 : index
    %c0_35 = arith.constant 0 : index
    %49 = vector.load %arg12[%c0_34, %c0_35] : memref<8x1xf32, #tpu.memory_space<vmem>>, vector<8x1xf32>
    %50 = vector.broadcast %49 : vector<8x1xf32> to vector<8x2xf32>
    %51 = arith.addf %48, %50 : vector<8x2xf32>
    %cst_36 = arith.constant 0.000000e+00 : f32
    %52 = vector.broadcast %cst_36 : f32 to vector<8x2xf32>
    %53 = arith.cmpf ogt, %51, %52 : vector<8x2xf32>
    %cst_37 = arith.constant 0.000000e+00 : f32
    %54 = vector.broadcast %cst_37 : f32 to vector<8x2xf32>
    %55 = arith.minimumf %51, %54 : vector<8x2xf32>
    %56 = math.exp %55 : vector<8x2xf32>
    %cst_38 = arith.constant 1.000000e+00 : f32
    %57 = vector.broadcast %cst_38 : f32 to vector<8x2xf32>
    %58 = arith.subf %56, %57 : vector<8x2xf32>
    %59 = arith.select %53, %51, %58 : vector<8x2xi1>, vector<8x2xf32>
    %c0_39 = arith.constant 0 : index
    %c0_40 = arith.constant 0 : index
    %60 = vector.load %arg13[%c0_39, %c0_40] : memref<2x128xf32, #tpu.memory_space<vmem>>, vector<2x128xf32>
    %cst_41 = arith.constant dense<0.000000e+00> : vector<8x128xf32>
    %61 = tpu.matmul %59, %60, %cst_41 {dimension_numbers = #tpu.dot_dimension_numbers<[1], [0], [0], [1], [0, 0, 1, 1], [], []>} : vector<8x2xf32>, vector<2x128xf32>, vector<8x128xf32> -> vector<8x128xf32>
    %62 = tpu.concatenate %21, %41, %61 in 0 : vector<8x128xf32>, vector<8x128xf32>, vector<8x128xf32> -> vector<24x128xf32>
    %c1 = arith.constant 1 : index
    %c0_42 = arith.constant 0 : index
    %c0_43 = arith.constant 0 : index
    %63 = vector.load %arg14[%c1, %c0_42, %c0_43] : memref<3x128x24xf32, #tpu.memory_space<vmem>>, vector<1x128x24xf32>
    %64 = vector.shape_cast %63 : vector<1x128x24xf32> to vector<128x24xf32>
    %cst_44 = arith.constant dense<0.000000e+00> : vector<128x128xf32>
    %65 = tpu.matmul %64, %62, %cst_44 {dimension_numbers = #tpu.dot_dimension_numbers<[1], [0], [0], [1], [0, 0, 1, 1], [], []>} : vector<128x24xf32>, vector<24x128xf32>, vector<128x128xf32> -> vector<128x128xf32>
    %c0_45 = arith.constant 0 : index
    %c0_46 = arith.constant 0 : index
    %c0_47 = arith.constant 0 : index
    %66 = vector.load %arg14[%c0_45, %c0_46, %c0_47] : memref<3x128x24xf32, #tpu.memory_space<vmem>>, vector<1x128x24xf32>
    %67 = vector.shape_cast %66 : vector<1x128x24xf32> to vector<128x24xf32>
    %c1_i32 = arith.constant 1 : i32
    %68 = tpu.dynamic_rotate %62 by %c1_i32 dim 1 : vector<24x128xf32>, i32 -> vector<24x128xf32>
    %69 = tpu.iota {dimensions = array<i32: 1>} : vector<24x128xi32>
    %c0_i32 = arith.constant 0 : i32
    %70 = vector.broadcast %c0_i32 : i32 to vector<24x128xi32>
    %71 = arith.cmpi eq, %69, %70 : vector<24x128xi32>
    %cst_48 = arith.constant 0.000000e+00 : f32
    %72 = vector.broadcast %cst_48 : f32 to vector<24x128xf32>
    %73 = arith.select %71, %72, %68 : vector<24x128xi1>, vector<24x128xf32>
    %cst_49 = arith.constant dense<0.000000e+00> : vector<128x128xf32>
    %74 = tpu.matmul %67, %73, %cst_49 {dimension_numbers = #tpu.dot_dimension_numbers<[1], [0], [0], [1], [0, 0, 1, 1], [], []>} : vector<128x24xf32>, vector<24x128xf32>, vector<128x128xf32> -> vector<128x128xf32>
    %75 = arith.addf %65, %74 : vector<128x128xf32>
    %c2 = arith.constant 2 : index
    %c0_50 = arith.constant 0 : index
    %c0_51 = arith.constant 0 : index
    %76 = vector.load %arg14[%c2, %c0_50, %c0_51] : memref<3x128x24xf32, #tpu.memory_space<vmem>>, vector<1x128x24xf32>
    %77 = vector.shape_cast %76 : vector<1x128x24xf32> to vector<128x24xf32>
    %c127_i32 = arith.constant 127 : i32
    %78 = tpu.dynamic_rotate %62 by %c127_i32 dim 1 : vector<24x128xf32>, i32 -> vector<24x128xf32>
    %79 = tpu.iota {dimensions = array<i32: 1>} : vector<24x128xi32>
    %c95_i32 = arith.constant 95 : i32
    %80 = vector.broadcast %c95_i32 : i32 to vector<24x128xi32>
    %81 = arith.cmpi eq, %79, %80 : vector<24x128xi32>
    %cst_52 = arith.constant 0.000000e+00 : f32
    %82 = vector.broadcast %cst_52 : f32 to vector<24x128xf32>
    %83 = arith.select %81, %82, %78 : vector<24x128xi1>, vector<24x128xf32>
    %cst_53 = arith.constant dense<0.000000e+00> : vector<128x128xf32>
    %84 = tpu.matmul %77, %83, %cst_53 {dimension_numbers = #tpu.dot_dimension_numbers<[1], [0], [0], [1], [0, 0, 1, 1], [], []>} : vector<128x24xf32>, vector<24x128xf32>, vector<128x128xf32> -> vector<128x128xf32>
    %85 = arith.addf %75, %84 : vector<128x128xf32>
    %c0_54 = arith.constant 0 : index
    %c0_55 = arith.constant 0 : index
    %86 = vector.load %arg15[%c0_54, %c0_55] : memref<128x1xf32, #tpu.memory_space<vmem>>, vector<128x1xf32>
    %87 = vector.broadcast %86 : vector<128x1xf32> to vector<128x128xf32>
    %88 = arith.addf %85, %87 : vector<128x128xf32>
    %cst_56 = arith.constant 5.000000e-01 : f32
    %89 = vector.broadcast %cst_56 : f32 to vector<128x128xf32>
    %90 = arith.mulf %89, %88 : vector<128x128xf32>
    %cst_57 = arith.constant 0.707106769 : f32
    %91 = vector.broadcast %cst_57 : f32 to vector<128x128xf32>
    %92 = arith.mulf %88, %91 : vector<128x128xf32>
    %cst_58 = arith.constant 0.000000e+00 : f32
    %93 = vector.broadcast %cst_58 : f32 to vector<128x128xf32>
    %94 = arith.cmpf oge, %92, %93 : vector<128x128xf32>
    %cst_59 = arith.constant 1.000000e+00 : f32
    %cst_60 = arith.constant -1.000000e+00 : f32
    %95 = vector.broadcast %cst_59 : f32 to vector<128x128xf32>
    %96 = vector.broadcast %cst_60 : f32 to vector<128x128xf32>
    %97 = arith.select %94, %95, %96 : vector<128x128xi1>, vector<128x128xf32>
    %98 = math.absf %92 : vector<128x128xf32>
    %cst_61 = arith.constant 0.327591091 : f32
    %99 = vector.broadcast %cst_61 : f32 to vector<128x128xf32>
    %100 = arith.mulf %99, %98 : vector<128x128xf32>
    %cst_62 = arith.constant 1.000000e+00 : f32
    %101 = vector.broadcast %cst_62 : f32 to vector<128x128xf32>
    %102 = arith.addf %101, %100 : vector<128x128xf32>
    %cst_63 = arith.constant 1.000000e+00 : f32
    %103 = vector.broadcast %cst_63 : f32 to vector<128x128xf32>
    %104 = arith.divf %103, %102 : vector<128x128xf32>
    %cst_64 = arith.constant 1.06140542 : f32
    %105 = vector.broadcast %cst_64 : f32 to vector<128x128xf32>
    %106 = arith.mulf %105, %104 : vector<128x128xf32>
    %cst_65 = arith.constant -1.45315206 : f32
    %107 = vector.broadcast %cst_65 : f32 to vector<128x128xf32>
    %108 = arith.addf %106, %107 : vector<128x128xf32>
    %109 = arith.mulf %108, %104 : vector<128x128xf32>
    %cst_66 = arith.constant 1.42141378 : f32
    %110 = vector.broadcast %cst_66 : f32 to vector<128x128xf32>
    %111 = arith.addf %109, %110 : vector<128x128xf32>
    %112 = arith.mulf %111, %104 : vector<128x128xf32>
    %cst_67 = arith.constant -0.284496725 : f32
    %113 = vector.broadcast %cst_67 : f32 to vector<128x128xf32>
    %114 = arith.addf %112, %113 : vector<128x128xf32>
    %115 = arith.mulf %114, %104 : vector<128x128xf32>
    %cst_68 = arith.constant 0.254829586 : f32
    %116 = vector.broadcast %cst_68 : f32 to vector<128x128xf32>
    %117 = arith.addf %115, %116 : vector<128x128xf32>
    %118 = arith.mulf %117, %104 : vector<128x128xf32>
    %cst_69 = arith.constant 0.000000e+00 : f32
    %119 = vector.broadcast %cst_69 : f32 to vector<128x128xf32>
    %120 = arith.subf %119, %98 : vector<128x128xf32>
    %121 = arith.mulf %120, %98 : vector<128x128xf32>
    %122 = math.exp %121 : vector<128x128xf32>
    %123 = arith.mulf %118, %122 : vector<128x128xf32>
    %cst_70 = arith.constant 1.000000e+00 : f32
    %124 = vector.broadcast %cst_70 : f32 to vector<128x128xf32>
    %125 = arith.subf %124, %123 : vector<128x128xf32>
    %126 = arith.mulf %97, %125 : vector<128x128xf32>
    %cst_71 = arith.constant 1.000000e+00 : f32
    %127 = vector.broadcast %cst_71 : f32 to vector<128x128xf32>
    %128 = arith.addf %127, %126 : vector<128x128xf32>
    %129 = arith.mulf %90, %128 : vector<128x128xf32>
    %c1_72 = arith.constant 1 : index
    %c0_73 = arith.constant 0 : index
    %c0_74 = arith.constant 0 : index
    %130 = vector.load %arg16[%c1_72, %c0_73, %c0_74] : memref<3x8x128xf32, #tpu.memory_space<vmem>>, vector<1x8x128xf32>
    %131 = vector.shape_cast %130 : vector<1x8x128xf32> to vector<8x128xf32>
    %cst_75 = arith.constant dense<0.000000e+00> : vector<8x128xf32>
    %132 = tpu.matmul %131, %129, %cst_75 {dimension_numbers = #tpu.dot_dimension_numbers<[1], [0], [0], [1], [0, 0, 1, 1], [], []>} : vector<8x128xf32>, vector<128x128xf32>, vector<8x128xf32> -> vector<8x128xf32>
    %c0_76 = arith.constant 0 : index
    %c0_77 = arith.constant 0 : index
    %c0_78 = arith.constant 0 : index
    %133 = vector.load %arg16[%c0_76, %c0_77, %c0_78] : memref<3x8x128xf32, #tpu.memory_space<vmem>>, vector<1x8x128xf32>
    %134 = vector.shape_cast %133 : vector<1x8x128xf32> to vector<8x128xf32>
    %cst_79 = arith.constant dense<0.000000e+00> : vector<8x128xf32>
    %135 = tpu.matmul %134, %129, %cst_79 {dimension_numbers = #tpu.dot_dimension_numbers<[1], [0], [0], [1], [0, 0, 1, 1], [], []>} : vector<8x128xf32>, vector<128x128xf32>, vector<8x128xf32> -> vector<8x128xf32>
    %c1_i32_80 = arith.constant 1 : i32
    %136 = tpu.dynamic_rotate %135 by %c1_i32_80 dim 1 : vector<8x128xf32>, i32 -> vector<8x128xf32>
    %137 = tpu.iota {dimensions = array<i32: 1>} : vector<8x128xi32>
    %c0_i32_81 = arith.constant 0 : i32
    %138 = vector.broadcast %c0_i32_81 : i32 to vector<8x128xi32>
    %139 = arith.cmpi eq, %137, %138 : vector<8x128xi32>
    %cst_82 = arith.constant 0.000000e+00 : f32
    %140 = vector.broadcast %cst_82 : f32 to vector<8x128xf32>
    %141 = arith.select %139, %140, %136 : vector<8x128xi1>, vector<8x128xf32>
    %142 = arith.addf %132, %141 : vector<8x128xf32>
    %c2_83 = arith.constant 2 : index
    %c0_84 = arith.constant 0 : index
    %c0_85 = arith.constant 0 : index
    %143 = vector.load %arg16[%c2_83, %c0_84, %c0_85] : memref<3x8x128xf32, #tpu.memory_space<vmem>>, vector<1x8x128xf32>
    %144 = vector.shape_cast %143 : vector<1x8x128xf32> to vector<8x128xf32>
    %cst_86 = arith.constant dense<0.000000e+00> : vector<8x128xf32>
    %145 = tpu.matmul %144, %129, %cst_86 {dimension_numbers = #tpu.dot_dimension_numbers<[1], [0], [0], [1], [0, 0, 1, 1], [], []>} : vector<8x128xf32>, vector<128x128xf32>, vector<8x128xf32> -> vector<8x128xf32>
    %c127_i32_87 = arith.constant 127 : i32
    %146 = tpu.dynamic_rotate %145 by %c127_i32_87 dim 1 : vector<8x128xf32>, i32 -> vector<8x128xf32>
    %147 = tpu.iota {dimensions = array<i32: 1>} : vector<8x128xi32>
    %c95_i32_88 = arith.constant 95 : i32
    %148 = vector.broadcast %c95_i32_88 : i32 to vector<8x128xi32>
    %149 = arith.cmpi eq, %147, %148 : vector<8x128xi32>
    %cst_89 = arith.constant 0.000000e+00 : f32
    %150 = vector.broadcast %cst_89 : f32 to vector<8x128xf32>
    %151 = arith.select %149, %150, %146 : vector<8x128xi1>, vector<8x128xf32>
    %152 = arith.addf %142, %151 : vector<8x128xf32>
    %c0_90 = arith.constant 0 : index
    %c0_91 = arith.constant 0 : index
    %153 = vector.load %arg17[%c0_90, %c0_91] : memref<8x1xf32, #tpu.memory_space<vmem>>, vector<8x1xf32>
    %154 = vector.broadcast %153 : vector<8x1xf32> to vector<8x128xf32>
    %155 = arith.addf %152, %154 : vector<8x128xf32>
    %156 = arith.addf %21, %155 : vector<8x128xf32>
    %c0_92 = arith.constant 0 : index
    %c0_93 = arith.constant 0 : index
    %157 = vector.load %arg18[%c0_92, %c0_93] : memref<128x32xf32, #tpu.memory_space<vmem>>, vector<128x32xf32>
    %cst_94 = arith.constant dense<0.000000e+00> : vector<8x32xf32>
    %158 = tpu.matmul %156, %157, %cst_94 {dimension_numbers = #tpu.dot_dimension_numbers<[1], [0], [0], [1], [0, 0, 1, 1], [], []>} : vector<8x128xf32>, vector<128x32xf32>, vector<8x32xf32> -> vector<8x32xf32>
    %c0_95 = arith.constant 0 : index
    %c0_96 = arith.constant 0 : index
    %159 = vector.load %arg19[%c0_95, %c0_96] : memref<1x32xf32, #tpu.memory_space<vmem>>, vector<1x32xf32>
    %160 = vector.broadcast %159 : vector<1x32xf32> to vector<8x32xf32>
    %161 = arith.addf %158, %160 : vector<8x32xf32>
    %162 = vector.broadcast %14 : vector<8x1xf32> to vector<8x32xf32>
    %163 = arith.mulf %161, %162 : vector<8x32xf32>
    %164 = vector.broadcast %4 : vector<8x1xf32> to vector<8x32xf32>
    %165 = arith.addf %163, %164 : vector<8x32xf32>
    %c0_97 = arith.constant 0 : index
    %c0_98 = arith.constant 0 : index
    %166 = vector.load %arg20[%c0_97, %c0_98] : memref<8x32xf32, #tpu.memory_space<vmem>>, vector<8x32xf32>
    tpu.vector_store %arg20[%c0_97, %c0_98], %165 {strides = array<i32>} : memref<8x32xf32, #tpu.memory_space<vmem>>, vector<8x32xf32>,
    return
  }
  func.func @transform_0(%arg0: i32) -> (i32, i32) {
    %c0_i32 = arith.constant 0 : i32
    %c0_i32_0 = arith.constant 0 : i32
    return %arg0, %c0_i32 : i32, i32
  }
  func.func @transform_1(%arg0: i32) -> (i32, i32) {
    %c0_i32 = arith.constant 0 : i32
    %c0_i32_0 = arith.constant 0 : i32
    %c0_i32_1 = arith.constant 0 : i32
    return %c0_i32, %c0_i32_0 : i32, i32
  }
  func.func @transform_2(%arg0: i32) -> (i32, i32) {
    %c0_i32 = arith.constant 0 : i32
    %c0_i32_0 = arith.constant 0 : i32
    %c0_i32_1 = arith.constant 0 : i32
    return %c0_i32, %c0_i32_0 : i32, i32
  }
  func.func @transform_3(%arg0: i32) -> (i32, i32) {
    %c0_i32 = arith.constant 0 : i32
    %c0_i32_0 = arith.constant 0 : i32
    %c0_i32_1 = arith.constant 0 : i32
    return %c0_i32, %c0_i32_0 : i32, i32
  }
  func.func @transform_4(%arg0: i32) -> (i32, i32) {
    %c0_i32 = arith.constant 0 : i32
    %c0_i32_0 = arith.constant 0 : i32
    %c0_i32_1 = arith.constant 0 : i32
    return %c0_i32, %c0_i32_0 : i32, i32
  }
  func.func @transform_5(%arg0: i32) -> (i32, i32) {
    %c0_i32 = arith.constant 0 : i32
    %c0_i32_0 = arith.constant 0 : i32
    %c0_i32_1 = arith.constant 0 : i32
    return %c0_i32, %c0_i32_0 : i32, i32
  }
  func.func @transform_6(%arg0: i32) -> (i32, i32) {
    %c0_i32 = arith.constant 0 : i32
    %c0_i32_0 = arith.constant 0 : i32
    %c0_i32_1 = arith.constant 0 : i32
    return %c0_i32, %c0_i32_0 : i32, i32
  }
  func.func @transform_7(%arg0: i32) -> (i32, i32) {
    %c0_i32 = arith.constant 0 : i32
    %c0_i32_0 = arith.constant 0 : i32
    %c0_i32_1 = arith.constant 0 : i32
    return %c0_i32, %c0_i32_0 : i32, i32
  }
  func.func @transform_8(%arg0: i32) -> (i32, i32) {
    %c0_i32 = arith.constant 0 : i32
    %c0_i32_0 = arith.constant 0 : i32
    %c0_i32_1 = arith.constant 0 : i32
    return %c0_i32, %c0_i32_0 : i32, i32
  }
  func.func @transform_9(%arg0: i32) -> (i32, i32) {
    %c0_i32 = arith.constant 0 : i32
    %c0_i32_0 = arith.constant 0 : i32
    %c0_i32_1 = arith.constant 0 : i32
    return %c0_i32, %c0_i32_0 : i32, i32
  }
  func.func @transform_10(%arg0: i32) -> (i32, i32) {
    %c0_i32 = arith.constant 0 : i32
    %c0_i32_0 = arith.constant 0 : i32
    %c0_i32_1 = arith.constant 0 : i32
    return %c0_i32, %c0_i32_0 : i32, i32
  }
  func.func @transform_11(%arg0: i32) -> (i32, i32) {
    %c0_i32 = arith.constant 0 : i32
    %c0_i32_0 = arith.constant 0 : i32
    %c0_i32_1 = arith.constant 0 : i32
    return %c0_i32, %c0_i32_0 : i32, i32
  }
  func.func @transform_12(%arg0: i32) -> (i32, i32) {
    %c0_i32 = arith.constant 0 : i32
    %c0_i32_0 = arith.constant 0 : i32
    %c0_i32_1 = arith.constant 0 : i32
    return %c0_i32, %c0_i32_0 : i32, i32
  }
  func.func @transform_13(%arg0: i32) -> (i32, i32, i32) {
    %c0_i32 = arith.constant 0 : i32
    %c0_i32_0 = arith.constant 0 : i32
    %c0_i32_1 = arith.constant 0 : i32
    %c0_i32_2 = arith.constant 0 : i32
    return %c0_i32, %c0_i32_0, %c0_i32_1 : i32, i32, i32
  }
  func.func @transform_14(%arg0: i32) -> (i32, i32) {
    %c0_i32 = arith.constant 0 : i32
    %c0_i32_0 = arith.constant 0 : i32
    %c0_i32_1 = arith.constant 0 : i32
    return %c0_i32, %c0_i32_0 : i32, i32
  }
  func.func @transform_15(%arg0: i32) -> (i32, i32, i32) {
    %c0_i32 = arith.constant 0 : i32
    %c0_i32_0 = arith.constant 0 : i32
    %c0_i32_1 = arith.constant 0 : i32
    %c0_i32_2 = arith.constant 0 : i32
    return %c0_i32, %c0_i32_0, %c0_i32_1 : i32, i32, i32
  }
  func.func @transform_16(%arg0: i32) -> (i32, i32) {
    %c0_i32 = arith.constant 0 : i32
    %c0_i32_0 = arith.constant 0 : i32
    %c0_i32_1 = arith.constant 0 : i32
    return %c0_i32, %c0_i32_0 : i32, i32
  }
  func.func @transform_17(%arg0: i32) -> (i32, i32) {
    %c0_i32 = arith.constant 0 : i32
    %c0_i32_0 = arith.constant 0 : i32
    %c0_i32_1 = arith.constant 0 : i32
    return %c0_i32, %c0_i32_0 : i32, i32
  }
  func.func @transform_18(%arg0: i32) -> (i32, i32) {
    %c0_i32 = arith.constant 0 : i32
    %c0_i32_0 = arith.constant 0 : i32
    %c0_i32_1 = arith.constant 0 : i32
    return %c0_i32, %c0_i32_0 : i32, i32
  }
  func.func @transform_19(%arg0: i32) -> (i32, i32) {
    %c0_i32 = arith.constant 0 : i32
    %c0_i32_0 = arith.constant 0 : i32
    return %arg0, %c0_i32 : i32, i32
  }
}

</mosaic_0001>

<llo_original>
// kernel: pallas_forward.1
$region0: #{pallas_forward.1}
  #allocation0 [shape = 'u32[]', space=smem, size = 0x4, offset = 0x4, fixed_abs, tag = 'smem constant byte address 0x4 - core index']
  #allocation1 [shape = 'u32[144,128]{1,0:T(1,128)}', space=vmem, size = 0x12000, scoped, tag = 'internal scratch']
  %s0 = inlined_call_operand.vmem [shape: f32[16,64], index: 0, kind: input, shape index: {}]
  %s1 = inlined_call_operand.vmem [shape: f32[64,128], index: 1, kind: input, shape index: {}]
  %s2 = inlined_call_operand.vmem [shape: f32[1,128], index: 2, kind: input, shape index: {}]
  %s3 = inlined_call_operand.vmem [shape: f32[8,96], index: 3, kind: input, shape index: {}]
  %s4 = inlined_call_operand.vmem [shape: f32[96,128], index: 4, kind: input, shape index: {}]
  %s5 = inlined_call_operand.vmem [shape: f32[128,8], index: 5, kind: input, shape index: {}]
  %s6 = inlined_call_operand.vmem [shape: f32[8,1], index: 6, kind: input, shape index: {}]
  %s7 = inlined_call_operand.vmem [shape: f32[8,128], index: 7, kind: input, shape index: {}]
  %s8 = inlined_call_operand.vmem [shape: f32[8,32], index: 8, kind: input, shape index: {}]
  %s9 = inlined_call_operand.vmem [shape: f32[32,8], index: 9, kind: input, shape index: {}]
  %s10 = inlined_call_operand.vmem [shape: f32[8,2], index: 10, kind: input, shape index: {}]
  %s11 = inlined_call_operand.vmem [shape: f32[8,1], index: 11, kind: input, shape index: {}]
  %s12 = inlined_call_operand.vmem [shape: f32[2,128], index: 12, kind: input, shape index: {}]
  %s13 = inlined_call_operand.vmem [shape: f32[3,128,24], index: 13, kind: input, shape index: {}]
  %s14 = inlined_call_operand.vmem [shape: f32[128,1], index: 14, kind: input, shape index: {}]
  %s15 = inlined_call_operand.vmem [shape: f32[3,8,128], index: 15, kind: input, shape index: {}]
  %s16 = inlined_call_operand.vmem [shape: f32[8,1], index: 16, kind: input, shape index: {}]
  %s17 = inlined_call_operand.vmem [shape: f32[128,32], index: 17, kind: input, shape index: {}]
  %s18 = inlined_call_operand.vmem [shape: f32[1,32], index: 18, kind: input, shape index: {}]
  %s19 = inlined_call_operand.hbm [shape: f32[16,32], index: 19, kind: output, shape index: {}]
  %s20 = sld [smem:[#allocation0]]
  $region109: #{pallas_forward.1} parent=0
    _
  %s22 = ssub.s32 1, %s20
  %s23 = scalar_select 0, %s22, %s20
  $region1: #{pallas_forward.1} parent=0
    #allocation2 [shape = 'u8[8192]{0}', space=vmem, size = 0x2000, scoped, tag = 'output window, operand 0']
    #allocation3 [shape = 's32[2]{0}', space=sflag, size = 0x8, scoped, tag = 'scoped memory for pallas_forward.1']
    %24 = vsyncpa [#allocation3], 0
    %s25 = scalar_lea.sflag [#allocation3], 1
    %26 = vsyncpa %s25, 0
    loop: start=0, step=1, limit=4
    $region2: #{pallas_forward.1} parent=1 // loop_pre_header
      _
    $region3: #{pallas_forward.1} parent=1 // loop_header
      %s28 = sphi 0, %s32
      %p29 = scmp.ge.s32.totalorder %s28, 4
      %s38 = sphi 0, %s40
      %s41 = sphi 0, %s38
      %s42 = sphi 0, %s41
      %s58 = sphi 0, %s42
      %s62 = sphi 0, %s62
      %s64 = sphi 0, %s62
      %s65 = sphi 0, %s64
      %s79 = sphi 0, %s65
      %s83 = sphi 0, %s83
      %s85 = sphi 0, %s83
      %s86 = sphi 0, %s85
      %s100 = sphi 0, %s86
      %s104 = sphi 0, %s104
      %s106 = sphi 0, %s104
      %s107 = sphi 0, %s106
      %s121 = sphi 0, %s107
      %s125 = sphi 0, %s125
      %s127 = sphi 0, %s125
      %s128 = sphi 0, %s127
      %s142 = sphi 0, %s128
      %s146 = sphi 0, %s146
      %s148 = sphi 0, %s146
      %s149 = sphi 0, %s148
      %s163 = sphi 0, %s149
      %s167 = sphi 0, %s167
      %s169 = sphi 0, %s167
      %s170 = sphi 0, %s169
      %s184 = sphi 0, %s170
      %s188 = sphi 0, %s188
      %s190 = sphi 0, %s188
      %s191 = sphi 0, %s190
      %s205 = sphi 0, %s191
      %s209 = sphi 0, %s209
      %s211 = sphi 0, %s209
      %s212 = sphi 0, %s211
      %s226 = sphi 0, %s212
      %s230 = sphi 0, %s230
      %s232 = sphi 0, %s230
      %s233 = sphi 0, %s232
      %s247 = sphi 0, %s233
      %s251 = sphi 0, %s251
      %s253 = sphi 0, %s251
      %s254 = sphi 0, %s253
      %s268 = sphi 0, %s254
      %s272 = sphi 0, %s272
      %s274 = sphi 0, %s272
      %s275 = sphi 0, %s274
      %s289 = sphi 0, %s275
      %s293 = sphi 0, %s293
      %s295 = sphi 0, %s293
      %s296 = sphi 0, %s295
      %s310 = sphi 0, %s296
      %s314 = sphi 0, %s314
      %s316 = sphi 0, %s314
      %s317 = sphi 0, %s316
      %s331 = sphi 0, %s317
      %s335 = sphi 0, %s335
      %s337 = sphi 0, %s335
      %s338 = sphi 0, %s337
      %s352 = sphi 0, %s338
      %s356 = sphi 0, %s356
      %s358 = sphi 0, %s356
      %s359 = sphi 0, %s358
      %s373 = sphi 0, %s359
      %s377 = sphi 0, %s377
      %s379 = sphi 0, %s377
      %s380 = sphi 0, %s379
      %s394 = sphi 0, %s380
      %s398 = sphi 0, %s398
      %s400 = sphi 0, %s398
      %s401 = sphi 0, %s400
      %s415 = sphi 0, %s401
      %s419 = sphi 0, %s419
      %s421 = sphi 0, %s419
      %s422 = sphi 0, %s421
      %s436 = sphi 0, %s422
      %s442 = sphi 0, %s444
      %s445 = sphi 0, %s442
      %s446 = sphi 0, %s445
      %s462 = sphi 0, %s446
    $region4: #{pallas_forward.1} parent=1 // loop_header_branch
      %31 = sbr.rel (%p29) target = $region8
    $region5: #{pallas_forward.1} parent=1 // loop_body
      %s33 = ssub.s32 %s28, 1
      %s34 = ssub.s32 %s28, 2
      %s35 = sadd.s32 %s28, 1
      %s36 = ssub.s32 %s28, %s35
      %p37 = scmp.eq.s32.totalorder %s36, 0
      %s39 = sadd.s32 %s38, 1
      %s40 = scalar_select %p37, %s38, %s39
      %p43 = pneg %p37
      %p44 = scmp.eq.s32.totalorder %s28, 1
      %p45 = por %p43, %p44
      %p46 = scmp.ne.s32.totalorder %s38, %s41
      %p47 = scmp.eq.s32.totalorder %s28, 0
      %p48 = por %p46, %p47
      %p49 = scmp.ne.s32.totalorder %s38, %s41
      %p50 = scmp.eq.s32.totalorder %s33, 1
      %p51 = por %p49, %p50
      %p52 = scmp.ne.s32.totalorder %s41, %s42
      %p53 = scmp.eq.s32.totalorder %s33, 0
      %p54 = por %p52, %p53
      %p55 = scmp.ne.s32.totalorder %s41, %s42
      %p56 = scmp.eq.s32.totalorder %s34, 1
      %p57 = por %p55, %p56
      %p59 = scmp.ne.s32.totalorder %s42, %s58
      %p60 = scmp.eq.s32.totalorder %s34, 0
      %p61 = por %p59, %p60
      %s63 = sadd.s32 %s62, 1
      %p66 = scmp.eq.s32.totalorder %s28, 1
      %p67 = scmp.ne.s32.totalorder %s62, %s64
      %p68 = scmp.eq.s32.totalorder %s28, 0
      %p69 = por %p67, %p68
      %p70 = scmp.ne.s32.totalorder %s62, %s64
      %p71 = scmp.eq.s32.totalorder %s33, 1
      %p72 = por %p70, %p71
      %p73 = scmp.ne.s32.totalorder %s64, %s65
      %p74 = scmp.eq.s32.totalorder %s33, 0
      %p75 = por %p73, %p74
      %p76 = scmp.ne.s32.totalorder %s64, %s65
      %p77 = scmp.eq.s32.totalorder %s34, 1
      %p78 = por %p76, %p77
      %p80 = scmp.ne.s32.totalorder %s65, %s79
      %p81 = scmp.eq.s32.totalorder %s34, 0
      %p82 = por %p80, %p81
      %s84 = sadd.s32 %s83, 1
      %p87 = scmp.eq.s32.totalorder %s28, 1
      %p88 = scmp.ne.s32.totalorder %s83, %s85
      %p89 = scmp.eq.s32.totalorder %s28, 0
      %p90 = por %p88, %p89
      %p91 = scmp.ne.s32.totalorder %s83, %s85
      %p92 = scmp.eq.s32.totalorder %s33, 1
      %p93 = por %p91, %p92
      %p94 = scmp.ne.s32.totalorder %s85, %s86
      %p95 = scmp.eq.s32.totalorder %s33, 0
      %p96 = por %p94, %p95
      %p97 = scmp.ne.s32.totalorder %s85, %s86
      %p98 = scmp.eq.s32.totalorder %s34, 1
      %p99 = por %p97, %p98
      %p101 = scmp.ne.s32.totalorder %s86, %s100
      %p102 = scmp.eq.s32.totalorder %s34, 0
      %p103 = por %p101, %p102
      %s105 = sadd.s32 %s104, 1
      %p108 = scmp.eq.s32.totalorder %s28, 1
      %p109 = scmp.ne.s32.totalorder %s104, %s106
      %p110 = scmp.eq.s32.totalorder %s28, 0
      %p111 = por %p109, %p110
      %p112 = scmp.ne.s32.totalorder %s104, %s106
      %p113 = scmp.eq.s32.totalorder %s33, 1
      %p114 = por %p112, %p113
      %p115 = scmp.ne.s32.totalorder %s106, %s107
      %p116 = scmp.eq.s32.totalorder %s33, 0
      %p117 = por %p115, %p116
      %p118 = scmp.ne.s32.totalorder %s106, %s107
      %p119 = scmp.eq.s32.totalorder %s34, 1
      %p120 = por %p118, %p119
      %p122 = scmp.ne.s32.totalorder %s107, %s121
      %p123 = scmp.eq.s32.totalorder %s34, 0
      %p124 = por %p122, %p123
      %s126 = sadd.s32 %s125, 1
      %p129 = scmp.eq.s32.totalorder %s28, 1
      %p130 = scmp.ne.s32.totalorder %s125, %s127
      %p131 = scmp.eq.s32.totalorder %s28, 0
      %p132 = por %p130, %p131
      %p133 = scmp.ne.s32.totalorder %s125, %s127
      %p134 = scmp.eq.s32.totalorder %s33, 1
      %p135 = por %p133, %p134
      %p136 = scmp.ne.s32.totalorder %s127, %s128
      %p137 = scmp.eq.s32.totalorder %s33, 0
      %p138 = por %p136, %p137
      %p139 = scmp.ne.s32.totalorder %s127, %s128
      %p140 = scmp.eq.s32.totalorder %s34, 1
      %p141 = por %p139, %p140
      %p143 = scmp.ne.s32.totalorder %s128, %s142
      %p144 = scmp.eq.s32.totalorder %s34, 0
      %p145 = por %p143, %p144
      %s147 = sadd.s32 %s146, 1
      %p150 = scmp.eq.s32.totalorder %s28, 1
      %p151 = scmp.ne.s32.totalorder %s146, %s148
      %p152 = scmp.eq.s32.totalorder %s28, 0
      %p153 = por %p151, %p152
      %p154 = scmp.ne.s32.totalorder %s146, %s148
      %p155 = scmp.eq.s32.totalorder %s33, 1
      %p156 = por %p154, %p155
      %p157 = scmp.ne.s32.totalorder %s148, %s149
      %p158 = scmp.eq.s32.totalorder %s33, 0
      %p159 = por %p157, %p158
      %p160 = scmp.ne.s32.totalorder %s148, %s149
      %p161 = scmp.eq.s32.totalorder %s34, 1
      %p162 = por %p160, %p161
      %p164 = scmp.ne.s32.totalorder %s149, %s163
      %p165 = scmp.eq.s32.totalorder %s34, 0
      %p166 = por %p164, %p165
      %s168 = sadd.s32 %s167, 1
      %p171 = scmp.eq.s32.totalorder %s28, 1
      %p172 = scmp.ne.s32.totalorder %s167, %s169
      %p173 = scmp.eq.s32.totalorder %s28, 0
      %p174 = por %p172, %p173
      %p175 = scmp.ne.s32.totalorder %s167, %s169
      %p176 = scmp.eq.s32.totalorder %s33, 1
      %p177 = por %p175, %p176
      %p178 = scmp.ne.s32.totalorder %s169, %s170
      %p179 = scmp.eq.s32.totalorder %s33, 0
      %p180 = por %p178, %p179
      %p181 = scmp.ne.s32.totalorder %s169, %s170
      %p182 = scmp.eq.s32.totalorder %s34, 1
      %p183 = por %p181, %p182
      %p185 = scmp.ne.s32.totalorder %s170, %s184
      %p186 = scmp.eq.s32.totalorder %s34, 0
      %p187 = por %p185, %p186
      %s189 = sadd.s32 %s188, 1
      %p192 = scmp.eq.s32.totalorder %s28, 1
      %p193 = scmp.ne.s32.totalorder %s188, %s190
      %p194 = scmp.eq.s32.totalorder %s28, 0
      %p195 = por %p193, %p194
      %p196 = scmp.ne.s32.totalorder %s188, %s190
      %p197 = scmp.eq.s32.totalorder %s33, 1
      %p198 = por %p196, %p197
      %p199 = scmp.ne.s32.totalorder %s190, %s191
      %p200 = scmp.eq.s32.totalorder %s33, 0
      %p201 = por %p199, %p200
      %p202 = scmp.ne.s32.totalorder %s190, %s191
      %p203 = scmp.eq.s32.totalorder %s34, 1
      %p204 = por %p202, %p203
      %p206 = scmp.ne.s32.totalorder %s191, %s205
      %p207 = scmp.eq.s32.totalorder %s34, 0
      %p208 = por %p206, %p207
      %s210 = sadd.s32 %s209, 1
      %p213 = scmp.eq.s32.totalorder %s28, 1
      %p214 = scmp.ne.s32.totalorder %s209, %s211
      %p215 = scmp.eq.s32.totalorder %s28, 0
      %p216 = por %p214, %p215
      %p217 = scmp.ne.s32.totalorder %s209, %s211
      %p218 = scmp.eq.s32.totalorder %s33, 1
      %p219 = por %p217, %p218
      %p220 = scmp.ne.s32.totalorder %s211, %s212
      %p221 = scmp.eq.s32.totalorder %s33, 0
      %p222 = por %p220, %p221
      %p223 = scmp.ne.s32.totalorder %s211, %s212
      %p224 = scmp.eq.s32.totalorder %s34, 1
      %p225 = por %p223, %p224
      %p227 = scmp.ne.s32.totalorder %s212, %s226
      %p228 = scmp.eq.s32.totalorder %s34, 0
      %p229 = por %p227, %p228
      %s231 = sadd.s32 %s230, 1
      %p234 = scmp.eq.s32.totalorder %s28, 1
      %p235 = scmp.ne.s32.totalorder %s230, %s232
      %p236 = scmp.eq.s32.totalorder %s28, 0
      %p237 = por %p235, %p236
      %p238 = scmp.ne.s32.totalorder %s230, %s232
      %p239 = scmp.eq.s32.totalorder %s33, 1
      %p240 = por %p238, %p239
      %p241 = scmp.ne.s32.totalorder %s232, %s233
      %p242 = scmp.eq.s32.totalorder %s33, 0
      %p243 = por %p241, %p242
      %p244 = scmp.ne.s32.totalorder %s232, %s233
      %p245 = scmp.eq.s32.totalorder %s34, 1
      %p246 = por %p244, %p245
      %p248 = scmp.ne.s32.totalorder %s233, %s247
      %p249 = scmp.eq.s32.totalorder %s34, 0
      %p250 = por %p248, %p249
      %s252 = sadd.s32 %s251, 1
      %p255 = scmp.eq.s32.totalorder %s28, 1
      %p256 = scmp.ne.s32.totalorder %s251, %s253
      %p257 = scmp.eq.s32.totalorder %s28, 0
      %p258 = por %p256, %p257
      %p259 = scmp.ne.s32.totalorder %s251, %s253
      %p260 = scmp.eq.s32.totalorder %s33, 1
      %p261 = por %p259, %p260
      %p262 = scmp.ne.s32.totalorder %s253, %s254
      %p263 = scmp.eq.s32.totalorder %s33, 0
      %p264 = por %p262, %p263
      %p265 = scmp.ne.s32.totalorder %s253, %s254
      %p266 = scmp.eq.s32.totalorder %s34, 1
      %p267 = por %p265, %p266
      %p269 = scmp.ne.s32.totalorder %s254, %s268
      %p270 = scmp.eq.s32.totalorder %s34, 0
      %p271 = por %p269, %p270
      %s273 = sadd.s32 %s272, 1
      %p276 = scmp.eq.s32.totalorder %s28, 1
      %p277 = scmp.ne.s32.totalorder %s272, %s274
      %p278 = scmp.eq.s32.totalorder %s28, 0
      %p279 = por %p277, %p278
      %p280 = scmp.ne.s32.totalorder %s272, %s274
      %p281 = scmp.eq.s32.totalorder %s33, 1
      %p282 = por %p280, %p281
      %p283 = scmp.ne.s32.totalorder %s274, %s275
      %p284 = scmp.eq.s32.totalorder %s33, 0
      %p285 = por %p283, %p284
      %p286 = scmp.ne.s32.totalorder %s274, %s275
      %p287 = scmp.eq.s32.totalorder %s34, 1
      %p288 = por %p286, %p287
      %p290 = scmp.ne.s32.totalorder %s275, %s289
      %p291 = scmp.eq.s32.totalorder %s34, 0
      %p292 = por %p290, %p291
      %s294 = sadd.s32 %s293, 1
      %p297 = scmp.eq.s32.totalorder %s28, 1
      %p298 = scmp.ne.s32.totalorder %s293, %s295
      %p299 = scmp.eq.s32.totalorder %s28, 0
      %p300 = por %p298, %p299
      %p301 = scmp.ne.s32.totalorder %s293, %s295
      %p302 = scmp.eq.s32.totalorder %s33, 1
      %p303 = por %p301, %p302
      %p304 = scmp.ne.s32.totalorder %s295, %s296
      %p305 = scmp.eq.s32.totalorder %s33, 0
      %p306 = por %p304, %p305
      %p307 = scmp.ne.s32.totalorder %s295, %s296
      %p308 = scmp.eq.s32.totalorder %s34, 1
      %p309 = por %p307, %p308
      %p311 = scmp.ne.s32.totalorder %s296, %s310
      %p312 = scmp.eq.s32.totalorder %s34, 0
      %p313 = por %p311, %p312
      %s315 = sadd.s32 %s314, 1
      %p318 = scmp.eq.s32.totalorder %s28, 1
      %p319 = scmp.ne.s32.totalorder %s314, %s316
      %p320 = scmp.eq.s32.totalorder %s28, 0
      %p321 = por %p319, %p320
      %p322 = scmp.ne.s32.totalorder %s314, %s316
      %p323 = scmp.eq.s32.totalorder %s33, 1
      %p324 = por %p322, %p323
      %p325 = scmp.ne.s32.totalorder %s316, %s317
      %p326 = scmp.eq.s32.totalorder %s33, 0
      %p327 = por %p325, %p326
      %p328 = scmp.ne.s32.totalorder %s316, %s317
      %p329 = scmp.eq.s32.totalorder %s34, 1
      %p330 = por %p328, %p329
      %p332 = scmp.ne.s32.totalorder %s317, %s331
      %p333 = scmp.eq.s32.totalorder %s34, 0
      %p334 = por %p332, %p333
      %s336 = sadd.s32 %s335, 1
      %p339 = scmp.eq.s32.totalorder %s28, 1
      %p340 = scmp.ne.s32.totalorder %s335, %s337
      %p341 = scmp.eq.s32.totalorder %s28, 0
      %p342 = por %p340, %p341
      %p343 = scmp.ne.s32.totalorder %s335, %s337
      %p344 = scmp.eq.s32.totalorder %s33, 1
      %p345 = por %p343, %p344
      %p346 = scmp.ne.s32.totalorder %s337, %s338
      %p347 = scmp.eq.s32.totalorder %s33, 0
      %p348 = por %p346, %p347
      %p349 = scmp.ne.s32.totalorder %s337, %s338
      %p350 = scmp.eq.s32.totalorder %s34, 1
      %p351 = por %p349, %p350
      %p353 = scmp.ne.s32.totalorder %s338, %s352
      %p354 = scmp.eq.s32.totalorder %s34, 0
      %p355 = por %p353, %p354
      %s357 = sadd.s32 %s356, 1
      %p360 = scmp.eq.s32.totalorder %s28, 1
      %p361 = scmp.ne.s32.totalorder %s356, %s358
      %p362 = scmp.eq.s32.totalorder %s28, 0
      %p363 = por %p361, %p362
      %p364 = scmp.ne.s32.totalorder %s356, %s358
      %p365 = scmp.eq.s32.totalorder %s33, 1
      %p366 = por %p364, %p365
      %p367 = scmp.ne.s32.totalorder %s358, %s359
      %p368 = scmp.eq.s32.totalorder %s33, 0
      %p369 = por %p367, %p368
      %p370 = scmp.ne.s32.totalorder %s358, %s359
      %p371 = scmp.eq.s32.totalorder %s34, 1
      %p372 = por %p370, %p371
      %p374 = scmp.ne.s32.totalorder %s359, %s373
      %p375 = scmp.eq.s32.totalorder %s34, 0
      %p376 = por %p374, %p375
      %s378 = sadd.s32 %s377, 1
      %p381 = scmp.eq.s32.totalorder %s28, 1
      %p382 = scmp.ne.s32.totalorder %s377, %s379
      %p383 = scmp.eq.s32.totalorder %s28, 0
      %p384 = por %p382, %p383
      %p385 = scmp.ne.s32.totalorder %s377, %s379
      %p386 = scmp.eq.s32.totalorder %s33, 1
      %p387 = por %p385, %p386
      %p388 = scmp.ne.s32.totalorder %s379, %s380
      %p389 = scmp.eq.s32.totalorder %s33, 0
      %p390 = por %p388, %p389
      %p391 = scmp.ne.s32.totalorder %s379, %s380
      %p392 = scmp.eq.s32.totalorder %s34, 1
      %p393 = por %p391, %p392
      %p395 = scmp.ne.s32.totalorder %s380, %s394
      %p396 = scmp.eq.s32.totalorder %s34, 0
      %p397 = por %p395, %p396
      %s399 = sadd.s32 %s398, 1
      %p402 = scmp.eq.s32.totalorder %s28, 1
      %p403 = scmp.ne.s32.totalorder %s398, %s400
      %p404 = scmp.eq.s32.totalorder %s28, 0
      %p405 = por %p403, %p404
      %p406 = scmp.ne.s32.totalorder %s398, %s400
      %p407 = scmp.eq.s32.totalorder %s33, 1
      %p408 = por %p406, %p407
      %p409 = scmp.ne.s32.totalorder %s400, %s401
      %p410 = scmp.eq.s32.totalorder %s33, 0
      %p411 = por %p409, %p410
      %p412 = scmp.ne.s32.totalorder %s400, %s401
      %p413 = scmp.eq.s32.totalorder %s34, 1
      %p414 = por %p412, %p413
      %p416 = scmp.ne.s32.totalorder %s401, %s415
      %p417 = scmp.eq.s32.totalorder %s34, 0
      %p418 = por %p416, %p417
      %s420 = sadd.s32 %s419, 1
      %p423 = scmp.eq.s32.totalorder %s28, 1
      %p424 = scmp.ne.s32.totalorder %s419, %s421
      %p425 = scmp.eq.s32.totalorder %s28, 0
      %p426 = por %p424, %p425
      %p427 = scmp.ne.s32.totalorder %s419, %s421
      %p428 = scmp.eq.s32.totalorder %s33, 1
      %p429 = por %p427, %p428
      %p430 = scmp.ne.s32.totalorder %s421, %s422
      %p431 = scmp.eq.s32.totalorder %s33, 0
      %p432 = por %p430, %p431
      %p433 = scmp.ne.s32.totalorder %s421, %s422
      %p434 = scmp.eq.s32.totalorder %s34, 1
      %p435 = por %p433, %p434
      %p437 = scmp.ne.s32.totalorder %s422, %s436
      %p438 = scmp.eq.s32.totalorder %s34, 0
      %p439 = por %p437, %p438
      %s440 = ssub.s32 %s28, %s35
      %p441 = scmp.eq.s32.totalorder %s440, 0
      %s443 = sadd.s32 %s442, 1
      %s444 = scalar_select %p441, %s442, %s443
      %p447 = pneg %p441
      %p448 = scmp.eq.s32.totalorder %s28, 1
      %p449 = por %p447, %p448
      %p450 = scmp.ne.s32.totalorder %s442, %s445
      %p451 = scmp.eq.s32.totalorder %s28, 0
      %p452 = por %p450, %p451
      %p453 = scmp.ne.s32.totalorder %s442, %s445
      %p454 = scmp.eq.s32.totalorder %s33, 1
      %p455 = por %p453, %p454
      %p456 = scmp.ne.s32.totalorder %s445, %s446
      %p457 = scmp.eq.s32.totalorder %s33, 0
      %p458 = por %p456, %p457
      %p459 = scmp.ne.s32.totalorder %s445, %s446
      %p460 = scmp.eq.s32.totalorder %s34, 1
      %p461 = por %p459, %p460
      %p463 = scmp.ne.s32.totalorder %s446, %s462
      %p464 = scmp.eq.s32.totalorder %s34, 0
      %p465 = por %p463, %p464
      %p466 = scmp.le.s32.totalorder 1, %s28
      %p467 = scmp.lt.s32.totalorder %s28, 3
      %p468 = pnand %p466, %p467
      %p469 = pneg %p468
      // Predicated region
      $region9: #{pallas_forward.1} parent=5 // pred_check
        _
      $region10: #{pallas_forward.1} parent=5 // pred_check_branch
        %471 = sbr.rel (%p468) target = $region12
      $region11: #{pallas_forward.1} parent=5 // pred_region
        %s472 = ssub.s32 %s28, 1
        // Predicated region
        $region13: #{pallas_forward.1} parent=11 // pred_check
          %p473 = pneg %p75
        $region14: #{pallas_forward.1} parent=11 // pred_check_branch
          %475 = sbr.rel (%p473) target = $region16
        $region15: #{pallas_forward.1} parent=11 // pred_region
          _
        $region16: #{pallas_forward.1} parent=11 // pred_fallthru
          _
        // Predicated region
        $region17: #{pallas_forward.1} parent=11 // pred_check
          %p476 = pneg %p96
        $region18: #{pallas_forward.1} parent=11 // pred_check_branch
          %478 = sbr.rel (%p476) target = $region20
        $region19: #{pallas_forward.1} parent=11 // pred_region
          _
        $region20: #{pallas_forward.1} parent=11 // pred_fallthru
          _
        // Predicated region
        $region21: #{pallas_forward.1} parent=11 // pred_check
          %p479 = pneg %p117
        $region22: #{pallas_forward.1} parent=11 // pred_check_branch
          %481 = sbr.rel (%p479) target = $region24
        $region23: #{pallas_forward.1} parent=11 // pred_region
          _
        $region24: #{pallas_forward.1} parent=11 // pred_fallthru
          _
        // Predicated region
        $region25: #{pallas_forward.1} parent=11 // pred_check
          %p482 = pneg %p138
        $region26: #{pallas_forward.1} parent=11 // pred_check_branch
          %484 = sbr.rel (%p482) target = $region28
        $region27: #{pallas_forward.1} parent=11 // pred_region
          _
        $region28: #{pallas_forward.1} parent=11 // pred_fallthru
          _
        // Predicated region
        $region29: #{pallas_forward.1} parent=11 // pred_check
          %p485 = pneg %p159
        $region30: #{pallas_forward.1} parent=11 // pred_check_branch
          %487 = sbr.rel (%p485) target = $region32
        $region31: #{pallas_forward.1} parent=11 // pred_region
          _
        $region32: #{pallas_forward.1} parent=11 // pred_fallthru
          _
        // Predicated region
        $region33: #{pallas_forward.1} parent=11 // pred_check
          %p488 = pneg %p180
        $region34: #{pallas_forward.1} parent=11 // pred_check_branch
          %490 = sbr.rel (%p488) target = $region36
        $region35: #{pallas_forward.1} parent=11 // pred_region
          _
        $region36: #{pallas_forward.1} parent=11 // pred_fallthru
          _
        // Predicated region
        $region37: #{pallas_forward.1} parent=11 // pred_check
          %p491 = pneg %p201
        $region38: #{pallas_forward.1} parent=11 // pred_check_branch
          %493 = sbr.rel (%p491) target = $region40
        $region39: #{pallas_forward.1} parent=11 // pred_region
          _
        $region40: #{pallas_forward.1} parent=11 // pred_fallthru
          _
        // Predicated region
        $region41: #{pallas_forward.1} parent=11 // pred_check
          %p494 = pneg %p222
        $region42: #{pallas_forward.1} parent=11 // pred_check_branch
          %496 = sbr.rel (%p494) target = $region44
        $region43: #{pallas_forward.1} parent=11 // pred_region
          _
        $region44: #{pallas_forward.1} parent=11 // pred_fallthru
          _
        // Predicated region
        $region45: #{pallas_forward.1} parent=11 // pred_check
          %p497 = pneg %p243
        $region46: #{pallas_forward.1} parent=11 // pred_check_branch
          %499 = sbr.rel (%p497) target = $region48
        $region47: #{pallas_forward.1} parent=11 // pred_region
          _
        $region48: #{pallas_forward.1} parent=11 // pred_fallthru
          _
        // Predicated region
        $region49: #{pallas_forward.1} parent=11 // pred_check
          %p500 = pneg %p264
        $region50: #{pallas_forward.1} parent=11 // pred_check_branch
          %502 = sbr.rel (%p500) target = $region52
        $region51: #{pallas_forward.1} parent=11 // pred_region
          _
        $region52: #{pallas_forward.1} parent=11 // pred_fallthru
          _
        // Predicated region
        $region53: #{pallas_forward.1} parent=11 // pred_check
          %p503 = pneg %p285
        $region54: #{pallas_forward.1} parent=11 // pred_check_branch
          %505 = sbr.rel (%p503) target = $region56
        $region55: #{pallas_forward.1} parent=11 // pred_region
          _
        $region56: #{pallas_forward.1} parent=11 // pred_fallthru
          _
        // Predicated region
        $region57: #{pallas_forward.1} parent=11 // pred_check
          %p506 = pneg %p306
        $region58: #{pallas_forward.1} parent=11 // pred_check_branch
          %508 = sbr.rel (%p506) target = $region60
        $region59: #{pallas_forward.1} parent=11 // pred_region
          _
        $region60: #{pallas_forward.1} parent=11 // pred_fallthru
          _
        // Predicated region
        $region61: #{pallas_forward.1} parent=11 // pred_check
          %p509 = pneg %p327
        $region62: #{pallas_forward.1} parent=11 // pred_check_branch
          %511 = sbr.rel (%p509) target = $region64
        $region63: #{pallas_forward.1} parent=11 // pred_region
          _
        $region64: #{pallas_forward.1} parent=11 // pred_fallthru
          _
        // Predicated region
        $region65: #{pallas_forward.1} parent=11 // pred_check
          %p512 = pneg %p348
        $region66: #{pallas_forward.1} parent=11 // pred_check_branch
          %514 = sbr.rel (%p512) target = $region68
        $region67: #{pallas_forward.1} parent=11 // pred_region
          _
        $region68: #{pallas_forward.1} parent=11 // pred_fallthru
          _
        // Predicated region
        $region69: #{pallas_forward.1} parent=11 // pred_check
          %p515 = pneg %p369
        $region70: #{pallas_forward.1} parent=11 // pred_check_branch
          %517 = sbr.rel (%p515) target = $region72
        $region71: #{pallas_forward.1} parent=11 // pred_region
          _
        $region72: #{pallas_forward.1} parent=11 // pred_fallthru
          _
        // Predicated region
        $region73: #{pallas_forward.1} parent=11 // pred_check
          %p518 = pneg %p390
        $region74: #{pallas_forward.1} parent=11 // pred_check_branch
          %520 = sbr.rel (%p518) target = $region76
        $region75: #{pallas_forward.1} parent=11 // pred_region
          _
        $region76: #{pallas_forward.1} parent=11 // pred_fallthru
          _
        // Predicated region
        $region77: #{pallas_forward.1} parent=11 // pred_check
          %p521 = pneg %p411
        $region78: #{pallas_forward.1} parent=11 // pred_check_branch
          %523 = sbr.rel (%p521) target = $region80
        $region79: #{pallas_forward.1} parent=11 // pred_region
          _
        $region80: #{pallas_forward.1} parent=11 // pred_fallthru
          _
        // Predicated region
        $region81: #{pallas_forward.1} parent=11 // pred_check
          %p524 = pneg %p432
        $region82: #{pallas_forward.1} parent=11 // pred_check_branch
          %526 = sbr.rel (%p524) target = $region84
        $region83: #{pallas_forward.1} parent=11 // pred_region
          _
        $region84: #{pallas_forward.1} parent=11 // pred_fallthru
          _
      $region12: #{pallas_forward.1} parent=5 // pred_fallthru
        _
      %p527 = scmp.lt.s32.totalorder %s28, 2
      // Predicated region
      $region85: #{pallas_forward.1} parent=5 // pred_check
        %p528 = pneg %p527
      $region86: #{pallas_forward.1} parent=5 // pred_check_branch
        %530 = sbr.rel (%p528) target = $region88
      $region87: #{pallas_forward.1} parent=5 // pred_region
        // Predicated region
        $region89: #{pallas_forward.1} parent=87 // pred_check
          %p531 = pneg %p48
        $region90: #{pallas_forward.1} parent=87 // pred_check_branch
          %533 = sbr.rel (%p531) target = $region92
        $region91: #{pallas_forward.1} parent=87 // pred_region
          %p534 = scmp.lt.s32.totalorder %s28, 1
          %s535 = scalar_select %p534, %s28, 1
          %s536 = smul.addr %s535, 8
          %s537 = scalar_lea.vmem %s0, %s536
        $region92: #{pallas_forward.1} parent=87 // pred_fallthru
          _
      $region88: #{pallas_forward.1} parent=5 // pred_fallthru
        _
      %p538 = scmp.le.s32.totalorder 1, %s28
      %p539 = scmp.lt.s32.totalorder %s28, 3
      %p540 = pnand %p538, %p539
      %p541 = pneg %p540
      // Predicated region
      $region93: #{pallas_forward.1} parent=5 // pred_check
        _
      $region94: #{pallas_forward.1} parent=5 // pred_check_branch
        %543 = sbr.rel (%p540) target = $region96
      $region95: #{pallas_forward.1} parent=5 // pred_region
        %s544 = ssub.s32 %s28, 1
        %p545 = scmp.lt.s32.totalorder %s33, 1
        %s546 = scalar_select %p545, %s33, 1
        %s547 = smul.addr %s546, 8
        %s548 = scalar_lea.vmem %s0, %s547
        %p549 = pneg %p54
        %p550 = pneg %p51
        %p551 = pneg %p75
        %p552 = pneg %p72
        %p553 = pneg %p96
        %p554 = pneg %p93
        %p555 = pneg %p117
        %p556 = pneg %p114
        %p557 = pneg %p138
        %p558 = pneg %p135
        %p559 = pneg %p159
        %p560 = pneg %p156
        %p561 = pneg %p180
        %p562 = pneg %p177
        %p563 = pneg %p201
        %p564 = pneg %p198
        %p565 = pneg %p222
        %p566 = pneg %p219
        %p567 = pneg %p243
        %p568 = pneg %p240
        %p569 = pneg %p264
        %p570 = pneg %p261
        %p571 = pneg %p285
        %p572 = pneg %p282
        %p573 = pneg %p306
        %p574 = pneg %p303
        %p575 = pneg %p327
        %p576 = pneg %p324
        %p577 = pneg %p348
        %p578 = pneg %p345
        %p579 = pneg %p369
        %p580 = pneg %p366
        %p581 = pneg %p390
        %p582 = pneg %p387
        %p583 = pneg %p411
        %p584 = pneg %p408
        %p585 = pneg %p432
        %p586 = pneg %p429
        %p587 = pneg %p458
        %p588 = pneg %p455
        %s589 = sand.u32 %s445, 1
        %s590 = scalar_lea.sflag [#allocation3], %s589
        %s591 = sand.u32 %s445, 1
        %s592 = smul.addr %s591, 8
        %s593 = scalar_lea.vmem [#allocation2], %s592
        %p594 = scmp.lt.s32.totalorder %s33, 1
        %s595 = scalar_select %p594, %s33, 1
        %s596 = smul.addr %s595, 8
        %s597 = scalar_lea.vmem %s0, %s596
        %v598 = vld [vmem:[%s597] sm:$0xff]
        %vm599 = vcmask 523264
        %v600 = vsel %vm599, %v598, 0.0
        %601 = vadd.xlane.f32.xlu0 %v600
        %v602 = vpop.xlane.xlu0 %601
        %v603 = vrcp.pop 64.0
        %v604 = vmul.f32 %v602, %v603
        %v605 = vsub.f32 %v598, %v604
        %v606 = vmul.f32 %v605, %v605
        %v607 = vsel %vm599, %v606, 0.0
        %608 = vadd.xlane.f32.xlu0 %v607
        %v609 = vpop.xlane.xlu0 %608
        %v610 = vmul.f32 %v609, %v603
        %v611 = vadd.f32 %v610, 1e-05
        %v612 = vrsqrt.pop %v611
        %v613 = vmul.f32 %v611, %v612
        %vm614 = vcmp.eq.f32.partialorder %v611, inf
        %v615 = vsel %vm614, %v611, %v613
        %vm616 = vcmp.eq.f32.partialorder %v611, 0.0
        %v617 = vand.u32 %v611, 2147483648
        %v618 = vsel %vm616, %v617, %v615
        %v619 = vrcp.pop %v618
        %v620 = vmul.f32 %v605, %v619
        %v621 = vld [vmem:[%s1] sm:$0xff]
        %v622 = vld [vmem:[%s1 + $0x8] sm:$0xff]
        %v623 = vld [vmem:[%s1 + $0x10] sm:$0xff]
        %v624 = vld [vmem:[%s1 + $0x18] sm:$0xff]
        %v625 = vld [vmem:[%s1 + $0x20] sm:$0xff]
        %v626 = vld [vmem:[%s1 + $0x28] sm:$0xff]
        %v627 = vld [vmem:[%s1 + $0x30] sm:$0xff]
        %v628 = vld [vmem:[%s1 + $0x38] sm:$0xff]
        %v629 = vld [vmem:[%s2] sm:$0x1]
        %v631 = vlaneseq
        %v632 = vshrl.u32 %v631, 7
        %v633 = vsub.s32 0, %v632
        %v634 = vrot.slane %v629, %v633
        %v637 = vsel %vm599, %v620, 0
        %639 = vmatprep.subr.mxu0 0.0
        %640 = vmatpush1.msra.mxu0 0.0
        %641 = vmatprep.subr.mxu0 0.0
        %642 = vmatpush1.msra.mxu0 0.0
        %643 = vmatprep.subr.mxu0 0.0
        %644 = vmatpush1.msra.mxu0 0.0
        %645 = vmatprep.subr.mxu0 0.0
        %646 = vmatpush1.msra.mxu0 0.0
        %647 = vmatprep.subr.mxu0 0.0
        %648 = vmatpush1.msra.mxu0 0.0
        %649 = vmatprep.subr.mxu0 0.0
        %650 = vmatpush1.msra.mxu0 0.0
        %651 = vmatprep.subr.mxu0 0.0
        %652 = vmatpush1.msra.mxu0 0.0
        %653 = vmatprep.subr.mxu0 0.0
        %654 = vmatpush1.msra.mxu0 0.0
        %655 = vmatprep.subr.mxu0 0.0
        %656 = vmatpush1.msra.mxu0 %v628
        %657 = vmatprep.subr.mxu0 0.0
        %658 = vmatpush1.msra.mxu0 %v627
        %659 = vmatprep.subr.mxu0 0.0
        %660 = vmatpush1.msra.mxu0 %v626
        %661 = vmatprep.subr.mxu0 0.0
        %662 = vmatpush1.msra.mxu0 %v625
        %663 = vmatprep.subr.mxu0 0.0
        %664 = vmatpush1.msra.mxu0 %v624
        %665 = vmatprep.subr.mxu0 0.0
        %666 = vmatpush1.msra.mxu0 %v623
        %667 = vmatprep.subr.mxu0 0.0
        %668 = vmatpush1.msra.mxu0 %v622
        %669 = vmatprep.subr.mxu0 0.0
        %670 = vmatpush1.msra.mxu0 %v621
        %671 = vmatprep.subr.mxu0 0.0
        %672 = vmatpush2.msra.mxu0 0.0
        %673 = vmatprep.subr.mxu0 0.0
        %674 = vmatpush2.msra.mxu0 0.0
        %675 = vmatprep.subr.mxu0 0.0
        %676 = vmatpush2.msra.mxu0 0.0
        %677 = vmatprep.subr.mxu0 0.0
        %678 = vmatpush2.msra.mxu0 0.0
        %679 = vmatprep.subr.mxu0 0.0
        %680 = vmatpush2.msra.mxu0 0.0
        %681 = vmatprep.subr.mxu0 0.0
        %682 = vmatpush2.msra.mxu0 0.0
        %683 = vmatprep.subr.mxu0 0.0
        %684 = vmatpush2.msra.mxu0 0.0
        %685 = vmatprep.subr.mxu0 0.0
        %686 = vmatpush2.msra.mxu0 0.0
        %687 = vmatprep.subr.mxu0 0.0
        %688 = vmatpush2.msra.mxu0 0.0
        %689 = vmatprep.subr.mxu0 0.0
        %690 = vmatpush2.msra.mxu0 0.0
        %691 = vmatprep.subr.mxu0 0.0
        %692 = vmatpush2.msra.mxu0 0.0
        %693 = vmatprep.subr.mxu0 0.0
        %694 = vmatpush2.msra.mxu0 0.0
        %695 = vmatprep.subr.mxu0 0.0
        %696 = vmatpush2.msra.mxu0 0.0
        %697 = vmatprep.subr.mxu0 0.0
        %698 = vmatpush2.msra.mxu0 0.0
        %699 = vmatprep.subr.mxu0 0.0
        %700 = vmatpush2.msra.mxu0 0.0
        %701 = vmatprep.subr.mxu0 0.0
        %702 = vmatpush2.msra.mxu0 0.0
        %703 = vmatprep.mubr.f32.mxu0 0.0
        %704 = vmatmul.mubr.f32.gmra.mxu0 %v637
        %v705 = vpop.f32.mrf.mxu0
        %v706 = vadd.f32 %v634, %v705
        %v707 = vpop.f32.mrf.mxu0
        %708 = vdwg.mxu0
        %v709 = vld [vmem:[%s4] sm:$0xff]
        %v710 = vld [vmem:[%s4 + $0x8] sm:$0xff]
        %v711 = vld [vmem:[%s4 + $0x10] sm:$0xff]
        %v712 = vld [vmem:[%s4 + $0x18] sm:$0xff]
        %v713 = vld [vmem:[%s4 + $0x20] sm:$0xff]
        %v714 = vld [vmem:[%s4 + $0x28] sm:$0xff]
        %v715 = vld [vmem:[%s4 + $0x30] sm:$0xff]
        %v716 = vld [vmem:[%s4 + $0x38] sm:$0xff]
        %v717 = vld [vmem:[%s4 + $0x40] sm:$0xff]
        %v718 = vld [vmem:[%s4 + $0x48] sm:$0xff]
        %v719 = vld [vmem:[%s4 + $0x50] sm:$0xff]
        %v720 = vld [vmem:[%s4 + $0x58] sm:$0xff]
        %v721 = vmul.f32 %v706, %v709
        %v722 = vmul.f32 %v706, %v710
        %v723 = vmul.f32 %v706, %v711
        %v724 = vmul.f32 %v706, %v712
        %v725 = vmul.f32 %v706, %v713
        %v726 = vmul.f32 %v706, %v714
        %v727 = vmul.f32 %v706, %v715
        %v728 = vmul.f32 %v706, %v716
        %v729 = vmul.f32 %v706, %v717
        %v730 = vmul.f32 %v706, %v718
        %v731 = vmul.f32 %v706, %v719
        %v732 = vmul.f32 %v706, %v720
        %v733 = vld [vmem:[%s5] sm:$0xff]
        %v734 = vld [vmem:[%s5 + $0x8] sm:$0xff]
        %v735 = vld [vmem:[%s5 + $0x10] sm:$0xff]
        %v736 = vld [vmem:[%s5 + $0x18] sm:$0xff]
        %v737 = vld [vmem:[%s5 + $0x20] sm:$0xff]
        %v738 = vld [vmem:[%s5 + $0x28] sm:$0xff]
        %v739 = vld [vmem:[%s5 + $0x30] sm:$0xff]
        %v740 = vld [vmem:[%s5 + $0x38] sm:$0xff]
        %v741 = vld [vmem:[%s5 + $0x40] sm:$0xff]
        %v742 = vld [vmem:[%s5 + $0x48] sm:$0xff]
        %v743 = vld [vmem:[%s5 + $0x50] sm:$0xff]
        %v744 = vld [vmem:[%s5 + $0x58] sm:$0xff]
        %v745 = vld [vmem:[%s5 + $0x60] sm:$0xff]
        %v746 = vld [vmem:[%s5 + $0x68] sm:$0xff]
        %v747 = vld [vmem:[%s5 + $0x70] sm:$0xff]
        %v748 = vld [vmem:[%s5 + $0x78] sm:$0xff]
        %749 = vmatprep.subr.mxu0 0.0
        %750 = vmatpush1.msra.mxu0 %v748
        %751 = vmatprep.subr.mxu0 0.0
        %752 = vmatpush1.msra.mxu0 %v747
        %753 = vmatprep.subr.mxu0 0.0
        %754 = vmatpush1.msra.mxu0 %v746
        %755 = vmatprep.subr.mxu0 0.0
        %756 = vmatpush1.msra.mxu0 %v745
        %757 = vmatprep.subr.mxu0 0.0
        %758 = vmatpush1.msra.mxu0 %v744
        %759 = vmatprep.subr.mxu0 0.0
        %760 = vmatpush1.msra.mxu0 %v743
        %761 = vmatprep.subr.mxu0 0.0
        %762 = vmatpush1.msra.mxu0 %v742
        %763 = vmatprep.subr.mxu0 0.0
        %764 = vmatpush1.msra.mxu0 %v741
        %765 = vmatprep.subr.mxu0 0.0
        %766 = vmatpush1.msra.mxu0 %v740
        %767 = vmatprep.subr.mxu0 0.0
        %768 = vmatpush1.msra.mxu0 %v739
        %769 = vmatprep.subr.mxu0 0.0
        %770 = vmatpush1.msra.mxu0 %v738
        %771 = vmatprep.subr.mxu0 0.0
        %772 = vmatpush1.msra.mxu0 %v737
        %773 = vmatprep.subr.mxu0 0.0
        %774 = vmatpush1.msra.mxu0 %v736
        %775 = vmatprep.subr.mxu0 0.0
        %776 = vmatpush1.msra.mxu0 %v735
        %777 = vmatprep.subr.mxu0 0.0
        %778 = vmatpush1.msra.mxu0 %v734
        %779 = vmatprep.subr.mxu0 0.0
        %780 = vmatpush1.msra.mxu0 %v733
        %781 = vmatprep.subr.mxu0 0.0
        %782 = vmatpush2.msra.mxu0 0.0
        %783 = vmatprep.subr.mxu0 0.0
        %784 = vmatpush2.msra.mxu0 0.0
        %785 = vmatprep.subr.mxu0 0.0
        %786 = vmatpush2.msra.mxu0 0.0
        %787 = vmatprep.subr.mxu0 0.0
        %788 = vmatpush2.msra.mxu0 0.0
        %789 = vmatprep.subr.mxu0 0.0
        %790 = vmatpush2.msra.mxu0 0.0
        %791 = vmatprep.subr.mxu0 0.0
        %792 = vmatpush2.msra.mxu0 0.0
        %793 = vmatprep.subr.mxu0 0.0
        %794 = vmatpush2.msra.mxu0 0.0
        %795 = vmatprep.subr.mxu0 0.0
        %796 = vmatpush2.msra.mxu0 0.0
        %797 = vmatprep.subr.mxu0 0.0
        %798 = vmatpush2.msra.mxu0 0.0
        %799 = vmatprep.subr.mxu0 0.0
        %800 = vmatpush2.msra.mxu0 0.0
        %801 = vmatprep.subr.mxu0 0.0
        %802 = vmatpush2.msra.mxu0 0.0
        %803 = vmatprep.subr.mxu0 0.0
        %804 = vmatpush2.msra.mxu0 0.0
        %805 = vmatprep.subr.mxu0 0.0
        %806 = vmatpush2.msra.mxu0 0.0
        %807 = vmatprep.subr.mxu0 0.0
        %808 = vmatpush2.msra.mxu0 0.0
        %809 = vmatprep.subr.mxu0 0.0
        %810 = vmatpush2.msra.mxu0 0.0
        %811 = vmatprep.subr.mxu0 0.0
        %812 = vmatpush2.msra.mxu0 0.0
        %813 = vmatprep.mubr.f32.mxu0 0.0
        %814 = vmatmul.mubr.f32.gmra.mxu0 %v721
        %v815 = vpop.f32.mrf.mxu0
        %v816 = vadd.f32 0.0, %v815
        %v817 = vpop.f32.mrf.mxu0
        %818 = vmatprep.mubr.f32.mxu0 0.0
        %819 = vmatmul.mubr.f32.gmra.mxu0 %v722
        %v820 = vpop.f32.mrf.mxu0
        %v821 = vadd.f32 0.0, %v820
        %v822 = vpop.f32.mrf.mxu0
        %823 = vmatprep.mubr.f32.mxu0 0.0
        %824 = vmatmul.mubr.f32.gmra.mxu0 %v723
        %v825 = vpop.f32.mrf.mxu0
        %v826 = vadd.f32 0.0, %v825
        %v827 = vpop.f32.mrf.mxu0
        %828 = vmatprep.mubr.f32.mxu0 0.0
        %829 = vmatmul.mubr.f32.gmra.mxu0 %v724
        %v830 = vpop.f32.mrf.mxu0
        %v831 = vadd.f32 0.0, %v830
        %v832 = vpop.f32.mrf.mxu0
        %833 = vmatprep.mubr.f32.mxu0 0.0
        %834 = vmatmul.mubr.f32.gmra.mxu0 %v725
        %v835 = vpop.f32.mrf.mxu0
        %v836 = vadd.f32 0.0, %v835
        %v837 = vpop.f32.mrf.mxu0
        %838 = vmatprep.mubr.f32.mxu0 0.0
        %839 = vmatmul.mubr.f32.gmra.mxu0 %v726
        %v840 = vpop.f32.mrf.mxu0
        %v841 = vadd.f32 0.0, %v840
        %v842 = vpop.f32.mrf.mxu0
        %843 = vmatprep.mubr.f32.mxu0 0.0
        %844 = vmatmul.mubr.f32.gmra.mxu0 %v727
        %v845 = vpop.f32.mrf.mxu0
        %v846 = vadd.f32 0.0, %v845
        %v847 = vpop.f32.mrf.mxu0
        %848 = vmatprep.mubr.f32.mxu0 0.0
        %849 = vmatmul.mubr.f32.gmra.mxu0 %v728
        %v850 = vpop.f32.mrf.mxu0
        %v851 = vadd.f32 0.0, %v850
        %v852 = vpop.f32.mrf.mxu0
        %853 = vmatprep.mubr.f32.mxu0 0.0
        %854 = vmatmul.mubr.f32.gmra.mxu0 %v729
        %v855 = vpop.f32.mrf.mxu0
        %v856 = vadd.f32 0.0, %v855
        %v857 = vpop.f32.mrf.mxu0
        %858 = vmatprep.mubr.f32.mxu0 0.0
        %859 = vmatmul.mubr.f32.gmra.mxu0 %v730
        %v860 = vpop.f32.mrf.mxu0
        %v861 = vadd.f32 0.0, %v860
        %v862 = vpop.f32.mrf.mxu0
        %863 = vmatprep.mubr.f32.mxu0 0.0
        %864 = vmatmul.mubr.f32.gmra.mxu0 %v731
        %v865 = vpop.f32.mrf.mxu0
        %v866 = vadd.f32 0.0, %v865
        %v867 = vpop.f32.mrf.mxu0
        %868 = vmatprep.mubr.f32.mxu0 0.0
        %869 = vmatmul.mubr.f32.gmra.mxu0 %v732
        %v870 = vpop.f32.mrf.mxu0
        %v871 = vadd.f32 0.0, %v870
        %v872 = vpop.f32.mrf.mxu0
        %873 = vdwg.mxu0
        %v874 = vld [vmem:[%s3] sm:$0xff]
        %v875 = vld [vmem:[%s6] sm:$0xff]
        %877 = vset.pattern.permute.xlu0 0
        %878 = vperm.xlu0 %877, %v875
        %v879 = vpop.permute.xlu0 %878
        %vm881 = vcmask 785408
        %v883 = vsel %vm881, %v874, 0
        %885 = vmatprep.subr.mxu0 0.0
        %886 = vmatpush1.msra.mxu0 0.0
        %887 = vmatprep.subr.mxu0 0.0
        %888 = vmatpush1.msra.mxu0 0.0
        %889 = vmatprep.subr.mxu0 0.0
        %890 = vmatpush1.msra.mxu0 0.0
        %891 = vmatprep.subr.mxu0 0.0
        %892 = vmatpush1.msra.mxu0 0.0
        %893 = vmatprep.subr.mxu0 0.0
        %894 = vmatpush1.msra.mxu0 %v871
        %895 = vmatprep.subr.mxu0 0.0
        %896 = vmatpush1.msra.mxu0 %v866
        %897 = vmatprep.subr.mxu0 0.0
        %898 = vmatpush1.msra.mxu0 %v861
        %899 = vmatprep.subr.mxu0 0.0
        %900 = vmatpush1.msra.mxu0 %v856
        %901 = vmatprep.subr.mxu0 0.0
        %902 = vmatpush1.msra.mxu0 %v851
        %903 = vmatprep.subr.mxu0 0.0
        %904 = vmatpush1.msra.mxu0 %v846
        %905 = vmatprep.subr.mxu0 0.0
        %906 = vmatpush1.msra.mxu0 %v841
        %907 = vmatprep.subr.mxu0 0.0
        %908 = vmatpush1.msra.mxu0 %v836
        %909 = vmatprep.subr.mxu0 0.0
        %910 = vmatpush1.msra.mxu0 %v831
        %911 = vmatprep.subr.mxu0 0.0
        %912 = vmatpush1.msra.mxu0 %v826
        %913 = vmatprep.subr.mxu0 0.0
        %914 = vmatpush1.msra.mxu0 %v821
        %915 = vmatprep.subr.mxu0 0.0
        %916 = vmatpush1.msra.mxu0 %v816
        %917 = vmatprep.subr.mxu0 0.0
        %918 = vmatpush2.msra.mxu0 0.0
        %919 = vmatprep.subr.mxu0 0.0
        %920 = vmatpush2.msra.mxu0 0.0
        %921 = vmatprep.subr.mxu0 0.0
        %922 = vmatpush2.msra.mxu0 0.0
        %923 = vmatprep.subr.mxu0 0.0
        %924 = vmatpush2.msra.mxu0 0.0
        %925 = vmatprep.subr.mxu0 0.0
        %926 = vmatpush2.msra.mxu0 0.0
        %927 = vmatprep.subr.mxu0 0.0
        %928 = vmatpush2.msra.mxu0 0.0
        %929 = vmatprep.subr.mxu0 0.0
        %930 = vmatpush2.msra.mxu0 0.0
        %931 = vmatprep.subr.mxu0 0.0
        %932 = vmatpush2.msra.mxu0 0.0
        %933 = vmatprep.subr.mxu0 0.0
        %934 = vmatpush2.msra.mxu0 0.0
        %935 = vmatprep.subr.mxu0 0.0
        %936 = vmatpush2.msra.mxu0 0.0
        %937 = vmatprep.subr.mxu0 0.0
        %938 = vmatpush2.msra.mxu0 0.0
        %939 = vmatprep.subr.mxu0 0.0
        %940 = vmatpush2.msra.mxu0 0.0
        %941 = vmatprep.subr.mxu0 0.0
        %942 = vmatpush2.msra.mxu0 0.0
        %943 = vmatprep.subr.mxu0 0.0
        %944 = vmatpush2.msra.mxu0 0.0
        %945 = vmatprep.subr.mxu0 0.0
        %946 = vmatpush2.msra.mxu0 0.0
        %947 = vmatprep.subr.mxu0 0.0
        %948 = vmatpush2.msra.mxu0 0.0
        %949 = vmatprep.mubr.f32.mxu0 0.0
        %950 = vmatmul.mubr.f32.gmra.mxu0 %v883
        %v951 = vpop.f32.mrf.mxu0
        %v952 = vadd.f32 %v879, %v951
        %v953 = vpop.f32.mrf.mxu0
        %954 = vdwg.mxu0
        %vm955 = vcmp.gt.f32.partialorder %v952, 0.0
        %v956 = vmin.f32 %v952, 0.0
        %v957 = vmul.f32 %v956, 1.442695
        %v958 = vpow.pop %v957
        %v959 = vsub.f32 %v958, 1.0
        %v960 = vsel %vm955, %v952, %v959
        %v961 = vld [vmem:[%s7] sm:$0xff]
        %vm962 = vcmask 64512
        %v964 = vsel %vm962, %v960, 0
        %966 = vmatprep.subr.mxu0 0.0
        %967 = vmatpush1.msra.mxu0 0.0
        %968 = vmatprep.subr.mxu0 0.0
        %969 = vmatpush1.msra.mxu0 0.0
        %970 = vmatprep.subr.mxu0 0.0
        %971 = vmatpush1.msra.mxu0 0.0
        %972 = vmatprep.subr.mxu0 0.0
        %973 = vmatpush1.msra.mxu0 0.0
        %974 = vmatprep.subr.mxu0 0.0
        %975 = vmatpush1.msra.mxu0 0.0
        %976 = vmatprep.subr.mxu0 0.0
        %977 = vmatpush1.msra.mxu0 0.0
        %978 = vmatprep.subr.mxu0 0.0
        %979 = vmatpush1.msra.mxu0 0.0
        %980 = vmatprep.subr.mxu0 0.0
        %981 = vmatpush1.msra.mxu0 0.0
        %982 = vmatprep.subr.mxu0 0.0
        %983 = vmatpush1.msra.mxu0 0.0
        %984 = vmatprep.subr.mxu0 0.0
        %985 = vmatpush1.msra.mxu0 0.0
        %986 = vmatprep.subr.mxu0 0.0
        %987 = vmatpush1.msra.mxu0 0.0
        %988 = vmatprep.subr.mxu0 0.0
        %989 = vmatpush1.msra.mxu0 0.0
        %990 = vmatprep.subr.mxu0 0.0
        %991 = vmatpush1.msra.mxu0 0.0
        %992 = vmatprep.subr.mxu0 0.0
        %993 = vmatpush1.msra.mxu0 0.0
        %994 = vmatprep.subr.mxu0 0.0
        %995 = vmatpush1.msra.mxu0 0.0
        %996 = vmatprep.subr.mxu0 0.0
        %997 = vmatpush1.msra.mxu0 %v961
        %998 = vmatprep.subr.mxu0 0.0
        %999 = vmatpush2.msra.mxu0 0.0
        %1000 = vmatprep.subr.mxu0 0.0
        %1001 = vmatpush2.msra.mxu0 0.0
        %1002 = vmatprep.subr.mxu0 0.0
        %1003 = vmatpush2.msra.mxu0 0.0
        %1004 = vmatprep.subr.mxu0 0.0
        %1005 = vmatpush2.msra.mxu0 0.0
        %1006 = vmatprep.subr.mxu0 0.0
        %1007 = vmatpush2.msra.mxu0 0.0
        %1008 = vmatprep.subr.mxu0 0.0
        %1009 = vmatpush2.msra.mxu0 0.0
        %1010 = vmatprep.subr.mxu0 0.0
        %1011 = vmatpush2.msra.mxu0 0.0
        %1012 = vmatprep.subr.mxu0 0.0
        %1013 = vmatpush2.msra.mxu0 0.0
        %1014 = vmatprep.subr.mxu0 0.0
        %1015 = vmatpush2.msra.mxu0 0.0
        %1016 = vmatprep.subr.mxu0 0.0
        %1017 = vmatpush2.msra.mxu0 0.0
        %1018 = vmatprep.subr.mxu0 0.0
        %1019 = vmatpush2.msra.mxu0 0.0
        %1020 = vmatprep.subr.mxu0 0.0
        %1021 = vmatpush2.msra.mxu0 0.0
        %1022 = vmatprep.subr.mxu0 0.0
        %1023 = vmatpush2.msra.mxu0 0.0
        %1024 = vmatprep.subr.mxu0 0.0
        %1025 = vmatpush2.msra.mxu0 0.0
        %1026 = vmatprep.subr.mxu0 0.0
        %1027 = vmatpush2.msra.mxu0 0.0
        %1028 = vmatprep.subr.mxu0 0.0
        %1029 = vmatpush2.msra.mxu0 0.0
        %1030 = vmatprep.mubr.f32.mxu0 0.0
        %1031 = vmatmul.mubr.f32.gmra.mxu0 %v964
        %v1032 = vpop.f32.mrf.mxu0
        %v1033 = vadd.f32 0.0, %v1032
        %v1034 = vpop.f32.mrf.mxu0
        %1035 = vdwg.mxu0
        %v1036 = vld [vmem:[%s9] sm:$0xff]
        %v1037 = vld [vmem:[%s9 + $0x8] sm:$0xff]
        %v1038 = vld [vmem:[%s9 + $0x10] sm:$0xff]
        %v1039 = vld [vmem:[%s9 + $0x18] sm:$0xff]
        %v1040 = vmul.f32 %v960, %v1036
        %v1041 = vmul.f32 %v960, %v1037
        %v1042 = vmul.f32 %v960, %v1038
        %v1043 = vmul.f32 %v960, %v1039
        %v1044 = vld [vmem:[%s10] sm:$0xff]
        %v1046 = vsel %vm962, %v1040, 0
        %v1049 = vsel %vm962, %v1041, 0
        %v1052 = vsel %vm962, %v1042, 0
        %v1055 = vsel %vm962, %v1043, 0
        %1057 = vmatprep.subr.mxu0 0.0
        %1058 = vmatpush1.msra.mxu0 0.0
        %1059 = vmatprep.subr.mxu0 0.0
        %1060 = vmatpush1.msra.mxu0 0.0
        %1061 = vmatprep.subr.mxu0 0.0
        %1062 = vmatpush1.msra.mxu0 0.0
        %1063 = vmatprep.subr.mxu0 0.0
        %1064 = vmatpush1.msra.mxu0 0.0
        %1065 = vmatprep.subr.mxu0 0.0
        %1066 = vmatpush1.msra.mxu0 0.0
        %1067 = vmatprep.subr.mxu0 0.0
        %1068 = vmatpush1.msra.mxu0 0.0
        %1069 = vmatprep.subr.mxu0 0.0
        %1070 = vmatpush1.msra.mxu0 0.0
        %1071 = vmatprep.subr.mxu0 0.0
        %1072 = vmatpush1.msra.mxu0 0.0
        %1073 = vmatprep.subr.mxu0 0.0
        %1074 = vmatpush1.msra.mxu0 0.0
        %1075 = vmatprep.subr.mxu0 0.0
        %1076 = vmatpush1.msra.mxu0 0.0
        %1077 = vmatprep.subr.mxu0 0.0
        %1078 = vmatpush1.msra.mxu0 0.0
        %1079 = vmatprep.subr.mxu0 0.0
        %1080 = vmatpush1.msra.mxu0 0.0
        %1081 = vmatprep.subr.mxu0 0.0
        %1082 = vmatpush1.msra.mxu0 0.0
        %1083 = vmatprep.subr.mxu0 0.0
        %1084 = vmatpush1.msra.mxu0 0.0
        %1085 = vmatprep.subr.mxu0 0.0
        %1086 = vmatpush1.msra.mxu0 0.0
        %1087 = vmatprep.subr.mxu0 0.0
        %1088 = vmatpush1.msra.mxu0 %v1044
        %1089 = vmatprep.subr.mxu0 0.0
        %1090 = vmatpush2.msra.mxu0 0.0
        %1091 = vmatprep.subr.mxu0 0.0
        %1092 = vmatpush2.msra.mxu0 0.0
        %1093 = vmatprep.subr.mxu0 0.0
        %1094 = vmatpush2.msra.mxu0 0.0
        %1095 = vmatprep.subr.mxu0 0.0
        %1096 = vmatpush2.msra.mxu0 0.0
        %1097 = vmatprep.subr.mxu0 0.0
        %1098 = vmatpush2.msra.mxu0 0.0
        %1099 = vmatprep.subr.mxu0 0.0
        %1100 = vmatpush2.msra.mxu0 0.0
        %1101 = vmatprep.subr.mxu0 0.0
        %1102 = vmatpush2.msra.mxu0 0.0
        %1103 = vmatprep.subr.mxu0 0.0
        %1104 = vmatpush2.msra.mxu0 0.0
        %1105 = vmatprep.subr.mxu0 0.0
        %1106 = vmatpush2.msra.mxu0 0.0
        %1107 = vmatprep.subr.mxu0 0.0
        %1108 = vmatpush2.msra.mxu0 0.0
        %1109 = vmatprep.subr.mxu0 0.0
        %1110 = vmatpush2.msra.mxu0 0.0
        %1111 = vmatprep.subr.mxu0 0.0
        %1112 = vmatpush2.msra.mxu0 0.0
        %1113 = vmatprep.subr.mxu0 0.0
        %1114 = vmatpush2.msra.mxu0 0.0
        %1115 = vmatprep.subr.mxu0 0.0
        %1116 = vmatpush2.msra.mxu0 0.0
        %1117 = vmatprep.subr.mxu0 0.0
        %1118 = vmatpush2.msra.mxu0 0.0
        %1119 = vmatprep.subr.mxu0 0.0
        %1120 = vmatpush2.msra.mxu0 0.0
        %1121 = vmatprep.mubr.f32.mxu0 0.0
        %1122 = vmatmul.mubr.f32.gmra.mxu0 %v1046
        %v1123 = vpop.f32.mrf.mxu0
        %v1124 = vadd.f32 0.0, %v1123
        %v1125 = vpop.f32.mrf.mxu0
        %1126 = vmatprep.mubr.f32.mxu0 0.0
        %1127 = vmatmul.mubr.f32.gmra.mxu0 %v1049
        %v1128 = vpop.f32.mrf.mxu0
        %v1129 = vadd.f32 0.0, %v1128
        %v1130 = vpop.f32.mrf.mxu0
        %1131 = vmatprep.mubr.f32.mxu0 0.0
        %1132 = vmatmul.mubr.f32.gmra.mxu0 %v1052
        %v1133 = vpop.f32.mrf.mxu0
        %v1134 = vadd.f32 0.0, %v1133
        %v1135 = vpop.f32.mrf.mxu0
        %1136 = vmatprep.mubr.f32.mxu0 0.0
        %1137 = vmatmul.mubr.f32.gmra.mxu0 %v1055
        %v1138 = vpop.f32.mrf.mxu0
        %v1139 = vadd.f32 0.0, %v1138
        %v1140 = vpop.f32.mrf.mxu0
        %1141 = vdwg.mxu0
        %v1142 = vld [vmem:[%s8] sm:$0xff]
        %v1143 = vld [vmem:[%s11] sm:$0xff]
        %1145 = vset.pattern.permute.xlu0 0
        %1146 = vperm.xlu0 %1145, %v1143
        %v1147 = vpop.permute.xlu0 %1146
        %vm1149 = vcmask 261120
        %v1151 = vsel %vm1149, %v1142, 0
        %1153 = vmatprep.subr.mxu0 0.0
        %1154 = vmatpush1.msra.mxu0 0.0
        %1155 = vmatprep.subr.mxu0 0.0
        %1156 = vmatpush1.msra.mxu0 0.0
        %1157 = vmatprep.subr.mxu0 0.0
        %1158 = vmatpush1.msra.mxu0 0.0
        %1159 = vmatprep.subr.mxu0 0.0
        %1160 = vmatpush1.msra.mxu0 0.0
        %1161 = vmatprep.subr.mxu0 0.0
        %1162 = vmatpush1.msra.mxu0 0.0
        %1163 = vmatprep.subr.mxu0 0.0
        %1164 = vmatpush1.msra.mxu0 0.0
        %1165 = vmatprep.subr.mxu0 0.0
        %1166 = vmatpush1.msra.mxu0 0.0
        %1167 = vmatprep.subr.mxu0 0.0
        %1168 = vmatpush1.msra.mxu0 0.0
        %1169 = vmatprep.subr.mxu0 0.0
        %1170 = vmatpush1.msra.mxu0 0.0
        %1171 = vmatprep.subr.mxu0 0.0
        %1172 = vmatpush1.msra.mxu0 0.0
        %1173 = vmatprep.subr.mxu0 0.0
        %1174 = vmatpush1.msra.mxu0 0.0
        %1175 = vmatprep.subr.mxu0 0.0
        %1176 = vmatpush1.msra.mxu0 0.0
        %1177 = vmatprep.subr.mxu0 0.0
        %1178 = vmatpush1.msra.mxu0 %v1139
        %1179 = vmatprep.subr.mxu0 0.0
        %1180 = vmatpush1.msra.mxu0 %v1134
        %1181 = vmatprep.subr.mxu0 0.0
        %1182 = vmatpush1.msra.mxu0 %v1129
        %1183 = vmatprep.subr.mxu0 0.0
        %1184 = vmatpush1.msra.mxu0 %v1124
        %1185 = vmatprep.subr.mxu0 0.0
        %1186 = vmatpush2.msra.mxu0 0.0
        %1187 = vmatprep.subr.mxu0 0.0
        %1188 = vmatpush2.msra.mxu0 0.0
        %1189 = vmatprep.subr.mxu0 0.0
        %1190 = vmatpush2.msra.mxu0 0.0
        %1191 = vmatprep.subr.mxu0 0.0
        %1192 = vmatpush2.msra.mxu0 0.0
        %1193 = vmatprep.subr.mxu0 0.0
        %1194 = vmatpush2.msra.mxu0 0.0
        %1195 = vmatprep.subr.mxu0 0.0
        %1196 = vmatpush2.msra.mxu0 0.0
        %1197 = vmatprep.subr.mxu0 0.0
        %1198 = vmatpush2.msra.mxu0 0.0
        %1199 = vmatprep.subr.mxu0 0.0
        %1200 = vmatpush2.msra.mxu0 0.0
        %1201 = vmatprep.subr.mxu0 0.0
        %1202 = vmatpush2.msra.mxu0 0.0
        %1203 = vmatprep.subr.mxu0 0.0
        %1204 = vmatpush2.msra.mxu0 0.0
        %1205 = vmatprep.subr.mxu0 0.0
        %1206 = vmatpush2.msra.mxu0 0.0
        %1207 = vmatprep.subr.mxu0 0.0
        %1208 = vmatpush2.msra.mxu0 0.0
        %1209 = vmatprep.subr.mxu0 0.0
        %1210 = vmatpush2.msra.mxu0 0.0
        %1211 = vmatprep.subr.mxu0 0.0
        %1212 = vmatpush2.msra.mxu0 0.0
        %1213 = vmatprep.subr.mxu0 0.0
        %1214 = vmatpush2.msra.mxu0 0.0
        %1215 = vmatprep.subr.mxu0 0.0
        %1216 = vmatpush2.msra.mxu0 0.0
        %1217 = vmatprep.mubr.f32.mxu0 0.0
        %1218 = vmatmul.mubr.f32.gmra.mxu0 %v1151
        %v1219 = vpop.f32.mrf.mxu0
        %v1220 = vadd.f32 %v1147, %v1219
        %v1221 = vpop.f32.mrf.mxu0
        %1222 = vdwg.mxu0
        %vm1223 = vcmp.gt.f32.partialorder %v1220, 0.0
        %v1224 = vmin.f32 %v1220, 0.0
        %v1225 = vmul.f32 %v1224, 1.442695
        %v1226 = vpow.pop %v1225
        %v1227 = vsub.f32 %v1226, 1.0
        %v1228 = vsel %vm1223, %v1220, %v1227
        %v1229 = vld [vmem:[%s12] sm:$0x3]
        %vm1230 = vcmask 15360
        %v1232 = vsel %vm1230, %v1228, 0
        %vm1234 = vcmask 1041408
        %v1236 = vsel %vm1234, %v1229, 0
        %1238 = vmatprep.subr.mxu0 0.0
        %1239 = vmatpush1.msra.mxu0 0.0
        %1240 = vmatprep.subr.mxu0 0.0
        %1241 = vmatpush1.msra.mxu0 0.0
        %1242 = vmatprep.subr.mxu0 0.0
        %1243 = vmatpush1.msra.mxu0 0.0
        %1244 = vmatprep.subr.mxu0 0.0
        %1245 = vmatpush1.msra.mxu0 0.0
        %1246 = vmatprep.subr.mxu0 0.0
        %1247 = vmatpush1.msra.mxu0 0.0
        %1248 = vmatprep.subr.mxu0 0.0
        %1249 = vmatpush1.msra.mxu0 0.0
        %1250 = vmatprep.subr.mxu0 0.0
        %1251 = vmatpush1.msra.mxu0 0.0
        %1252 = vmatprep.subr.mxu0 0.0
        %1253 = vmatpush1.msra.mxu0 0.0
        %1254 = vmatprep.subr.mxu0 0.0
        %1255 = vmatpush1.msra.mxu0 0.0
        %1256 = vmatprep.subr.mxu0 0.0
        %1257 = vmatpush1.msra.mxu0 0.0
        %1258 = vmatprep.subr.mxu0 0.0
        %1259 = vmatpush1.msra.mxu0 0.0
        %1260 = vmatprep.subr.mxu0 0.0
        %1261 = vmatpush1.msra.mxu0 0.0
        %1262 = vmatprep.subr.mxu0 0.0
        %1263 = vmatpush1.msra.mxu0 0.0
        %1264 = vmatprep.subr.mxu0 0.0
        %1265 = vmatpush1.msra.mxu0 0.0
        %1266 = vmatprep.subr.mxu0 0.0
        %1267 = vmatpush1.msra.mxu0 0.0
        %1268 = vmatprep.subr.mxu0 0.0
        %1269 = vmatpush1.msra.mxu0 %v1236
        %1270 = vmatprep.subr.mxu0 0.0
        %1271 = vmatpush2.msra.mxu0 0.0
        %1272 = vmatprep.subr.mxu0 0.0
        %1273 = vmatpush2.msra.mxu0 0.0
        %1274 = vmatprep.subr.mxu0 0.0
        %1275 = vmatpush2.msra.mxu0 0.0
        %1276 = vmatprep.subr.mxu0 0.0
        %1277 = vmatpush2.msra.mxu0 0.0
        %1278 = vmatprep.subr.mxu0 0.0
        %1279 = vmatpush2.msra.mxu0 0.0
        %1280 = vmatprep.subr.mxu0 0.0
        %1281 = vmatpush2.msra.mxu0 0.0
        %1282 = vmatprep.subr.mxu0 0.0
        %1283 = vmatpush2.msra.mxu0 0.0
        %1284 = vmatprep.subr.mxu0 0.0
        %1285 = vmatpush2.msra.mxu0 0.0
        %1286 = vmatprep.subr.mxu0 0.0
        %1287 = vmatpush2.msra.mxu0 0.0
        %1288 = vmatprep.subr.mxu0 0.0
        %1289 = vmatpush2.msra.mxu0 0.0
        %1290 = vmatprep.subr.mxu0 0.0
        %1291 = vmatpush2.msra.mxu0 0.0
        %1292 = vmatprep.subr.mxu0 0.0
        %1293 = vmatpush2.msra.mxu0 0.0
        %1294 = vmatprep.subr.mxu0 0.0
        %1295 = vmatpush2.msra.mxu0 0.0
        %1296 = vmatprep.subr.mxu0 0.0
        %1297 = vmatpush2.msra.mxu0 0.0
        %1298 = vmatprep.subr.mxu0 0.0
        %1299 = vmatpush2.msra.mxu0 0.0
        %1300 = vmatprep.subr.mxu0 0.0
        %1301 = vmatpush2.msra.mxu0 0.0
        %1302 = vmatprep.mubr.f32.mxu0 0.0
        %1303 = vmatmul.mubr.f32.gmra.mxu0 %v1232
        %v1304 = vpop.f32.mrf.mxu0
        %v1305 = vadd.f32 0.0, %v1304
        %v1306 = vpop.f32.mrf.mxu0
        %1307 = vdwg.mxu0
        %s1308 = scalar_lea.vmem %s13, 128
        %v1309 = vld [vmem:[%s1308] sm:$0xff]
        %v1310 = vld [vmem:[%s1308 + $0x8] sm:$0xff]
        %v1311 = vld [vmem:[%s1308 + $0x10] sm:$0xff]
        %v1312 = vld [vmem:[%s1308 + $0x18] sm:$0xff]
        %v1313 = vld [vmem:[%s1308 + $0x20] sm:$0xff]
        %v1314 = vld [vmem:[%s1308 + $0x28] sm:$0xff]
        %v1315 = vld [vmem:[%s1308 + $0x30] sm:$0xff]
        %v1316 = vld [vmem:[%s1308 + $0x38] sm:$0xff]
        %v1317 = vld [vmem:[%s1308 + $0x40] sm:$0xff]
        %v1318 = vld [vmem:[%s1308 + $0x48] sm:$0xff]
        %v1319 = vld [vmem:[%s1308 + $0x50] sm:$0xff]
        %v1320 = vld [vmem:[%s1308 + $0x58] sm:$0xff]
        %v1321 = vld [vmem:[%s1308 + $0x60] sm:$0xff]
        %v1322 = vld [vmem:[%s1308 + $0x68] sm:$0xff]
        %v1323 = vld [vmem:[%s1308 + $0x70] sm:$0xff]
        %v1324 = vld [vmem:[%s1308 + $0x78] sm:$0xff]
        %v1325 = vld [vmem:[%s13] sm:$0xff]
        %v1326 = vld [vmem:[%s13 + $0x8] sm:$0xff]
        %v1327 = vld [vmem:[%s13 + $0x10] sm:$0xff]
        %v1328 = vld [vmem:[%s13 + $0x18] sm:$0xff]
        %v1329 = vld [vmem:[%s13 + $0x20] sm:$0xff]
        %v1330 = vld [vmem:[%s13 + $0x28] sm:$0xff]
        %v1331 = vld [vmem:[%s13 + $0x30] sm:$0xff]
        %v1332 = vld [vmem:[%s13 + $0x38] sm:$0xff]
        %v1333 = vld [vmem:[%s13 + $0x40] sm:$0xff]
        %v1334 = vld [vmem:[%s13 + $0x48] sm:$0xff]
        %v1335 = vld [vmem:[%s13 + $0x50] sm:$0xff]
        %v1336 = vld [vmem:[%s13 + $0x58] sm:$0xff]
        %v1337 = vld [vmem:[%s13 + $0x60] sm:$0xff]
        %v1338 = vld [vmem:[%s13 + $0x68] sm:$0xff]
        %v1339 = vld [vmem:[%s13 + $0x70] sm:$0xff]
        %v1340 = vld [vmem:[%s13 + $0x78] sm:$0xff]
        %1341 = vrot.lane.b32.xlu0 %v706, 1
        %v1342 = vpop.permute.xlu0 %1341
        %1343 = vrot.lane.b32.xlu0 %v1033, 1
        %v1344 = vpop.permute.xlu0 %1343
        %1345 = vrot.lane.b32.xlu0 %v1305, 1
        %v1346 = vpop.permute.xlu0 %1345
        %v1347 = vlaneseq
        %v1348 = vand.u32 %v1347, 127
        %vm1349 = vcmp.eq.s32.totalorder %v1348, 0
        %v1350 = vsel %vm1349, 0.0, %v1342
        %v1351 = vsel %vm1349, 0.0, %v1344
        %v1352 = vsel %vm1349, 0.0, %v1346
        %vm1353 = vcmask 195584
        %v1355 = vsel %vm1353, %v1325, 0
        %v1358 = vsel %vm1353, %v1326, 0
        %v1361 = vsel %vm1353, %v1327, 0
        %v1364 = vsel %vm1353, %v1328, 0
        %v1367 = vsel %vm1353, %v1329, 0
        %v1370 = vsel %vm1353, %v1330, 0
        %v1373 = vsel %vm1353, %v1331, 0
        %v1376 = vsel %vm1353, %v1332, 0
        %v1379 = vsel %vm1353, %v1333, 0
        %v1382 = vsel %vm1353, %v1334, 0
        %v1385 = vsel %vm1353, %v1335, 0
        %v1388 = vsel %vm1353, %v1336, 0
        %v1391 = vsel %vm1353, %v1337, 0
        %v1394 = vsel %vm1353, %v1338, 0
        %v1397 = vsel %vm1353, %v1339, 0
        %v1400 = vsel %vm1353, %v1340, 0
        %1402 = vmatprep.subr.mxu0 0.0
        %1403 = vmatpush1.msra.mxu0 0.0
        %1404 = vmatprep.subr.mxu0 0.0
        %1405 = vmatpush1.msra.mxu0 0.0
        %1406 = vmatprep.subr.mxu0 0.0
        %1407 = vmatpush1.msra.mxu0 0.0
        %1408 = vmatprep.subr.mxu0 0.0
        %1409 = vmatpush1.msra.mxu0 0.0
        %1410 = vmatprep.subr.mxu0 0.0
        %1411 = vmatpush1.msra.mxu0 0.0
        %1412 = vmatprep.subr.mxu0 0.0
        %1413 = vmatpush1.msra.mxu0 0.0
        %1414 = vmatprep.subr.mxu0 0.0
        %1415 = vmatpush1.msra.mxu0 0.0
        %1416 = vmatprep.subr.mxu0 0.0
        %1417 = vmatpush1.msra.mxu0 0.0
        %1418 = vmatprep.subr.mxu0 0.0
        %1419 = vmatpush1.msra.mxu0 0.0
        %1420 = vmatprep.subr.mxu0 0.0
        %1421 = vmatpush1.msra.mxu0 0.0
        %1422 = vmatprep.subr.mxu0 0.0
        %1423 = vmatpush1.msra.mxu0 0.0
        %1424 = vmatprep.subr.mxu0 0.0
        %1425 = vmatpush1.msra.mxu0 0.0
        %1426 = vmatprep.subr.mxu0 0.0
        %1427 = vmatpush1.msra.mxu0 0.0
        %1428 = vmatprep.subr.mxu0 0.0
        %1429 = vmatpush1.msra.mxu0 %v1352
        %1430 = vmatprep.subr.mxu0 0.0
        %1431 = vmatpush1.msra.mxu0 %v1351
        %1432 = vmatprep.subr.mxu0 0.0
        %1433 = vmatpush1.msra.mxu0 %v1350
        %1434 = vmatprep.subr.mxu0 0.0
        %1435 = vmatpush2.msra.mxu0 0.0
        %1436 = vmatprep.subr.mxu0 0.0
        %1437 = vmatpush2.msra.mxu0 0.0
        %1438 = vmatprep.subr.mxu0 0.0
        %1439 = vmatpush2.msra.mxu0 0.0
        %1440 = vmatprep.subr.mxu0 0.0
        %1441 = vmatpush2.msra.mxu0 0.0
        %1442 = vmatprep.subr.mxu0 0.0
        %1443 = vmatpush2.msra.mxu0 0.0
        %1444 = vmatprep.subr.mxu0 0.0
        %1445 = vmatpush2.msra.mxu0 0.0
        %1446 = vmatprep.subr.mxu0 0.0
        %1447 = vmatpush2.msra.mxu0 0.0
        %1448 = vmatprep.subr.mxu0 0.0
        %1449 = vmatpush2.msra.mxu0 0.0
        %1450 = vmatprep.subr.mxu0 0.0
        %1451 = vmatpush2.msra.mxu0 0.0
        %1452 = vmatprep.subr.mxu0 0.0
        %1453 = vmatpush2.msra.mxu0 0.0
        %1454 = vmatprep.subr.mxu0 0.0
        %1455 = vmatpush2.msra.mxu0 0.0
        %1456 = vmatprep.subr.mxu0 0.0
        %1457 = vmatpush2.msra.mxu0 0.0
        %1458 = vmatprep.subr.mxu0 0.0
        %1459 = vmatpush2.msra.mxu0 0.0
        %1460 = vmatprep.subr.mxu0 0.0
        %1461 = vmatpush2.msra.mxu0 0.0
        %1462 = vmatprep.subr.mxu0 0.0
        %1463 = vmatpush2.msra.mxu0 0.0
        %1464 = vmatprep.subr.mxu0 0.0
        %1465 = vmatpush2.msra.mxu0 0.0
        %1466 = vmatprep.mubr.f32.mxu0 0.0
        %1467 = vmatmul.mubr.f32.gmra.mxu0 %v1355
        %v1468 = vpop.f32.mrf.mxu0
        %v1469 = vadd.f32 0.0, %v1468
        %v1470 = vpop.f32.mrf.mxu0
        %1471 = vmatprep.mubr.f32.mxu0 0.0
        %1472 = vmatmul.mubr.f32.gmra.mxu0 %v1358
        %v1473 = vpop.f32.mrf.mxu0
        %v1474 = vadd.f32 0.0, %v1473
        %v1475 = vpop.f32.mrf.mxu0
        %1476 = vmatprep.mubr.f32.mxu0 0.0
        %1477 = vmatmul.mubr.f32.gmra.mxu0 %v1361
        %v1478 = vpop.f32.mrf.mxu0
        %v1479 = vadd.f32 0.0, %v1478
        %v1480 = vpop.f32.mrf.mxu0
        %1481 = vmatprep.mubr.f32.mxu0 0.0
        %1482 = vmatmul.mubr.f32.gmra.mxu0 %v1364
        %v1483 = vpop.f32.mrf.mxu0
        %v1484 = vadd.f32 0.0, %v1483
        %v1485 = vpop.f32.mrf.mxu0
        %1486 = vmatprep.mubr.f32.mxu0 0.0
        %1487 = vmatmul.mubr.f32.gmra.mxu0 %v1367
        %v1488 = vpop.f32.mrf.mxu0
        %v1489 = vadd.f32 0.0, %v1488
        %v1490 = vpop.f32.mrf.mxu0
        %1491 = vmatprep.mubr.f32.mxu0 0.0
        %1492 = vmatmul.mubr.f32.gmra.mxu0 %v1370
        %v1493 = vpop.f32.mrf.mxu0
        %v1494 = vadd.f32 0.0, %v1493
        %v1495 = vpop.f32.mrf.mxu0
        %1496 = vmatprep.mubr.f32.mxu0 0.0
        %1497 = vmatmul.mubr.f32.gmra.mxu0 %v1373
        %v1498 = vpop.f32.mrf.mxu0
        %v1499 = vadd.f32 0.0, %v1498
        %v1500 = vpop.f32.mrf.mxu0
        %1501 = vmatprep.mubr.f32.mxu0 0.0
        %1502 = vmatmul.mubr.f32.gmra.mxu0 %v1376
        %v1503 = vpop.f32.mrf.mxu0
        %v1504 = vadd.f32 0.0, %v1503
        %v1505 = vpop.f32.mrf.mxu0
        %1506 = vmatprep.mubr.f32.mxu0 0.0
        %1507 = vmatmul.mubr.f32.gmra.mxu0 %v1379
        %v1508 = vpop.f32.mrf.mxu0
        %v1509 = vadd.f32 0.0, %v1508
        %v1510 = vpop.f32.mrf.mxu0
        %1511 = vmatprep.mubr.f32.mxu0 0.0
        %1512 = vmatmul.mubr.f32.gmra.mxu0 %v1382
        %v1513 = vpop.f32.mrf.mxu0
        %v1514 = vadd.f32 0.0, %v1513
        %v1515 = vpop.f32.mrf.mxu0
        %1516 = vmatprep.mubr.f32.mxu0 0.0
        %1517 = vmatmul.mubr.f32.gmra.mxu0 %v1385
        %v1518 = vpop.f32.mrf.mxu0
        %v1519 = vadd.f32 0.0, %v1518
        %v1520 = vpop.f32.mrf.mxu0
        %1521 = vmatprep.mubr.f32.mxu0 0.0
        %1522 = vmatmul.mubr.f32.gmra.mxu0 %v1388
        %v1523 = vpop.f32.mrf.mxu0
        %v1524 = vadd.f32 0.0, %v1523
        %v1525 = vpop.f32.mrf.mxu0
        %1526 = vmatprep.mubr.f32.mxu0 0.0
        %1527 = vmatmul.mubr.f32.gmra.mxu0 %v1391
        %v1528 = vpop.f32.mrf.mxu0
        %v1529 = vadd.f32 0.0, %v1528
        %v1530 = vpop.f32.mrf.mxu0
        %1531 = vmatprep.mubr.f32.mxu0 0.0
        %1532 = vmatmul.mubr.f32.gmra.mxu0 %v1394
        %v1533 = vpop.f32.mrf.mxu0
        %v1534 = vadd.f32 0.0, %v1533
        %v1535 = vpop.f32.mrf.mxu0
        %1536 = vmatprep.mubr.f32.mxu0 0.0
        %1537 = vmatmul.mubr.f32.gmra.mxu0 %v1397
        %v1538 = vpop.f32.mrf.mxu0
        %v1539 = vadd.f32 0.0, %v1538
        %v1540 = vpop.f32.mrf.mxu0
        %1541 = vmatprep.mubr.f32.mxu0 0.0
        %1542 = vmatmul.mubr.f32.gmra.mxu0 %v1400
        %v1543 = vpop.f32.mrf.mxu0
        %v1544 = vadd.f32 0.0, %v1543
        %v1545 = vpop.f32.mrf.mxu0
        %1546 = vdwg.mxu0
        %v1548 = vsel %vm1353, %v1309, 0
        %v1551 = vsel %vm1353, %v1310, 0
        %v1554 = vsel %vm1353, %v1311, 0
        %v1557 = vsel %vm1353, %v1312, 0
        %v1560 = vsel %vm1353, %v1313, 0
        %v1563 = vsel %vm1353, %v1314, 0
        %v1566 = vsel %vm1353, %v1315, 0
        %v1569 = vsel %vm1353, %v1316, 0
        %v1572 = vsel %vm1353, %v1317, 0
        %v1575 = vsel %vm1353, %v1318, 0
        %v1578 = vsel %vm1353, %v1319, 0
        %v1581 = vsel %vm1353, %v1320, 0
        %v1584 = vsel %vm1353, %v1321, 0
        %v1587 = vsel %vm1353, %v1322, 0
        %v1590 = vsel %vm1353, %v1323, 0
        %v1593 = vsel %vm1353, %v1324, 0
        %1595 = vmatprep.subr.mxu0 0.0
        %1596 = vmatpush1.msra.mxu0 0.0
        %1597 = vmatprep.subr.mxu0 0.0
        %1598 = vmatpush1.msra.mxu0 0.0
        %1599 = vmatprep.subr.mxu0 0.0
        %1600 = vmatpush1.msra.mxu0 0.0
        %1601 = vmatprep.subr.mxu0 0.0
        %1602 = vmatpush1.msra.mxu0 0.0
        %1603 = vmatprep.subr.mxu0 0.0
        %1604 = vmatpush1.msra.mxu0 0.0
        %1605 = vmatprep.subr.mxu0 0.0
        %1606 = vmatpush1.msra.mxu0 0.0
        %1607 = vmatprep.subr.mxu0 0.0
        %1608 = vmatpush1.msra.mxu0 0.0
        %1609 = vmatprep.subr.mxu0 0.0
        %1610 = vmatpush1.msra.mxu0 0.0
        %1611 = vmatprep.subr.mxu0 0.0
        %1612 = vmatpush1.msra.mxu0 0.0
        %1613 = vmatprep.subr.mxu0 0.0
        %1614 = vmatpush1.msra.mxu0 0.0
        %1615 = vmatprep.subr.mxu0 0.0
        %1616 = vmatpush1.msra.mxu0 0.0
        %1617 = vmatprep.subr.mxu0 0.0
        %1618 = vmatpush1.msra.mxu0 0.0
        %1619 = vmatprep.subr.mxu0 0.0
        %1620 = vmatpush1.msra.mxu0 0.0
        %1621 = vmatprep.subr.mxu0 0.0
        %1622 = vmatpush1.msra.mxu0 %v1305
        %1623 = vmatprep.subr.mxu0 0.0
        %1624 = vmatpush1.msra.mxu0 %v1033
        %1625 = vmatprep.subr.mxu0 0.0
        %1626 = vmatpush1.msra.mxu0 %v706
        %1627 = vmatprep.subr.mxu0 0.0
        %1628 = vmatpush2.msra.mxu0 0.0
        %1629 = vmatprep.subr.mxu0 0.0
        %1630 = vmatpush2.msra.mxu0 0.0
        %1631 = vmatprep.subr.mxu0 0.0
        %1632 = vmatpush2.msra.mxu0 0.0
        %1633 = vmatprep.subr.mxu0 0.0
        %1634 = vmatpush2.msra.mxu0 0.0
        %1635 = vmatprep.subr.mxu0 0.0
        %1636 = vmatpush2.msra.mxu0 0.0
        %1637 = vmatprep.subr.mxu0 0.0
        %1638 = vmatpush2.msra.mxu0 0.0
        %1639 = vmatprep.subr.mxu0 0.0
        %1640 = vmatpush2.msra.mxu0 0.0
        %1641 = vmatprep.subr.mxu0 0.0
        %1642 = vmatpush2.msra.mxu0 0.0
        %1643 = vmatprep.subr.mxu0 0.0
        %1644 = vmatpush2.msra.mxu0 0.0
        %1645 = vmatprep.subr.mxu0 0.0
        %1646 = vmatpush2.msra.mxu0 0.0
        %1647 = vmatprep.subr.mxu0 0.0
        %1648 = vmatpush2.msra.mxu0 0.0
        %1649 = vmatprep.subr.mxu0 0.0
        %1650 = vmatpush2.msra.mxu0 0.0
        %1651 = vmatprep.subr.mxu0 0.0
        %1652 = vmatpush2.msra.mxu0 0.0
        %1653 = vmatprep.subr.mxu0 0.0
        %1654 = vmatpush2.msra.mxu0 0.0
        %1655 = vmatprep.subr.mxu0 0.0
        %1656 = vmatpush2.msra.mxu0 0.0
        %1657 = vmatprep.subr.mxu0 0.0
        %1658 = vmatpush2.msra.mxu0 0.0
        %1659 = vmatprep.mubr.f32.mxu0 0.0
        %1660 = vmatmul.mubr.f32.gmra.mxu0 %v1548
        %v1661 = vpop.f32.mrf.mxu0
        %v1662 = vadd.f32 %v1469, %v1661
        %v1663 = vpop.f32.mrf.mxu0
        %1664 = vmatprep.mubr.f32.mxu0 0.0
        %1665 = vmatmul.mubr.f32.gmra.mxu0 %v1551
        %v1666 = vpop.f32.mrf.mxu0
        %v1667 = vadd.f32 %v1474, %v1666
        %v1668 = vpop.f32.mrf.mxu0
        %1669 = vmatprep.mubr.f32.mxu0 0.0
        %1670 = vmatmul.mubr.f32.gmra.mxu0 %v1554
        %v1671 = vpop.f32.mrf.mxu0
        %v1672 = vadd.f32 %v1479, %v1671
        %v1673 = vpop.f32.mrf.mxu0
        %1674 = vmatprep.mubr.f32.mxu0 0.0
        %1675 = vmatmul.mubr.f32.gmra.mxu0 %v1557
        %v1676 = vpop.f32.mrf.mxu0
        %v1677 = vadd.f32 %v1484, %v1676
        %v1678 = vpop.f32.mrf.mxu0
        %1679 = vmatprep.mubr.f32.mxu0 0.0
        %1680 = vmatmul.mubr.f32.gmra.mxu0 %v1560
        %v1681 = vpop.f32.mrf.mxu0
        %v1682 = vadd.f32 %v1489, %v1681
        %v1683 = vpop.f32.mrf.mxu0
        %1684 = vmatprep.mubr.f32.mxu0 0.0
        %1685 = vmatmul.mubr.f32.gmra.mxu0 %v1563
        %v1686 = vpop.f32.mrf.mxu0
        %v1687 = vadd.f32 %v1494, %v1686
        %v1688 = vpop.f32.mrf.mxu0
        %1689 = vmatprep.mubr.f32.mxu0 0.0
        %1690 = vmatmul.mubr.f32.gmra.mxu0 %v1566
        %v1691 = vpop.f32.mrf.mxu0
        %v1692 = vadd.f32 %v1499, %v1691
        %v1693 = vpop.f32.mrf.mxu0
        %1694 = vmatprep.mubr.f32.mxu0 0.0
        %1695 = vmatmul.mubr.f32.gmra.mxu0 %v1569
        %v1696 = vpop.f32.mrf.mxu0
        %v1697 = vadd.f32 %v1504, %v1696
        %v1698 = vpop.f32.mrf.mxu0
        %1699 = vmatprep.mubr.f32.mxu0 0.0
        %1700 = vmatmul.mubr.f32.gmra.mxu0 %v1572
        %v1701 = vpop.f32.mrf.mxu0
        %v1702 = vadd.f32 %v1509, %v1701
        %v1703 = vpop.f32.mrf.mxu0
        %1704 = vmatprep.mubr.f32.mxu0 0.0
        %1705 = vmatmul.mubr.f32.gmra.mxu0 %v1575
        %v1706 = vpop.f32.mrf.mxu0
        %v1707 = vadd.f32 %v1514, %v1706
        %v1708 = vpop.f32.mrf.mxu0
        %1709 = vmatprep.mubr.f32.mxu0 0.0
        %1710 = vmatmul.mubr.f32.gmra.mxu0 %v1578
        %v1711 = vpop.f32.mrf.mxu0
        %v1712 = vadd.f32 %v1519, %v1711
        %v1713 = vpop.f32.mrf.mxu0
        %1714 = vmatprep.mubr.f32.mxu0 0.0
        %1715 = vmatmul.mubr.f32.gmra.mxu0 %v1581
        %v1716 = vpop.f32.mrf.mxu0
        %v1717 = vadd.f32 %v1524, %v1716
        %v1718 = vpop.f32.mrf.mxu0
        %1719 = vmatprep.mubr.f32.mxu0 0.0
        %1720 = vmatmul.mubr.f32.gmra.mxu0 %v1584
        %v1721 = vpop.f32.mrf.mxu0
        %v1722 = vadd.f32 %v1529, %v1721
        %v1723 = vpop.f32.mrf.mxu0
        %1724 = vmatprep.mubr.f32.mxu0 0.0
        %1725 = vmatmul.mubr.f32.gmra.mxu0 %v1587
        %v1726 = vpop.f32.mrf.mxu0
        %v1727 = vadd.f32 %v1534, %v1726
        %v1728 = vpop.f32.mrf.mxu0
        %1729 = vmatprep.mubr.f32.mxu0 0.0
        %1730 = vmatmul.mubr.f32.gmra.mxu0 %v1590
        %v1731 = vpop.f32.mrf.mxu0
        %v1732 = vadd.f32 %v1539, %v1731
        %v1733 = vpop.f32.mrf.mxu0
        %1734 = vmatprep.mubr.f32.mxu0 0.0
        %1735 = vmatmul.mubr.f32.gmra.mxu0 %v1593
        %v1736 = vpop.f32.mrf.mxu0
        %v1737 = vadd.f32 %v1544, %v1736
        %v1738 = vpop.f32.mrf.mxu0
        %1739 = vdwg.mxu0
        %s1740 = scalar_lea.vmem %s13, 256
        %v1741 = vld [vmem:[%s1740] sm:$0xff]
        %v1742 = vld [vmem:[%s1740 + $0x8] sm:$0xff]
        %v1743 = vld [vmem:[%s1740 + $0x10] sm:$0xff]
        %v1744 = vld [vmem:[%s1740 + $0x18] sm:$0xff]
        %v1745 = vld [vmem:[%s1740 + $0x20] sm:$0xff]
        %v1746 = vld [vmem:[%s1740 + $0x28] sm:$0xff]
        %v1747 = vld [vmem:[%s1740 + $0x30] sm:$0xff]
        %v1748 = vld [vmem:[%s1740 + $0x38] sm:$0xff]
        %v1749 = vld [vmem:[%s1740 + $0x40] sm:$0xff]
        %v1750 = vld [vmem:[%s1740 + $0x48] sm:$0xff]
        %v1751 = vld [vmem:[%s1740 + $0x50] sm:$0xff]
        %v1752 = vld [vmem:[%s1740 + $0x58] sm:$0xff]
        %v1753 = vld [vmem:[%s1740 + $0x60] sm:$0xff]
        %v1754 = vld [vmem:[%s1740 + $0x68] sm:$0xff]
        %v1755 = vld [vmem:[%s1740 + $0x70] sm:$0xff]
        %v1756 = vld [vmem:[%s1740 + $0x78] sm:$0xff]
        %1757 = vrot.lane.b32.xlu0 %v706, 127
        %v1758 = vpop.permute.xlu0 %1757
        %1759 = vrot.lane.b32.xlu0 %v1033, 127
        %v1760 = vpop.permute.xlu0 %1759
        %1761 = vrot.lane.b32.xlu0 %v1305, 127
        %v1762 = vpop.permute.xlu0 %1761
        %vm1763 = vcmp.eq.s32.totalorder %v1348, 95
        %v1764 = vsel %vm1763, 0.0, %v1758
        %v1765 = vsel %vm1763, 0.0, %v1760
        %v1766 = vsel %vm1763, 0.0, %v1762
        %v1768 = vsel %vm1353, %v1741, 0
        %v1771 = vsel %vm1353, %v1742, 0
        %v1774 = vsel %vm1353, %v1743, 0
        %v1777 = vsel %vm1353, %v1744, 0
        %v1780 = vsel %vm1353, %v1745, 0
        %v1783 = vsel %vm1353, %v1746, 0
        %v1786 = vsel %vm1353, %v1747, 0
        %v1789 = vsel %vm1353, %v1748, 0
        %v1792 = vsel %vm1353, %v1749, 0
        %v1795 = vsel %vm1353, %v1750, 0
        %v1798 = vsel %vm1353, %v1751, 0
        %v1801 = vsel %vm1353, %v1752, 0
        %v1804 = vsel %vm1353, %v1753, 0
        %v1807 = vsel %vm1353, %v1754, 0
        %v1810 = vsel %vm1353, %v1755, 0
        %v1813 = vsel %vm1353, %v1756, 0
        %1815 = vmatprep.subr.mxu0 0.0
        %1816 = vmatpush1.msra.mxu0 0.0
        %1817 = vmatprep.subr.mxu0 0.0
        %1818 = vmatpush1.msra.mxu0 0.0
        %1819 = vmatprep.subr.mxu0 0.0
        %1820 = vmatpush1.msra.mxu0 0.0
        %1821 = vmatprep.subr.mxu0 0.0
        %1822 = vmatpush1.msra.mxu0 0.0
        %1823 = vmatprep.subr.mxu0 0.0
        %1824 = vmatpush1.msra.mxu0 0.0
        %1825 = vmatprep.subr.mxu0 0.0
        %1826 = vmatpush1.msra.mxu0 0.0
        %1827 = vmatprep.subr.mxu0 0.0
        %1828 = vmatpush1.msra.mxu0 0.0
        %1829 = vmatprep.subr.mxu0 0.0
        %1830 = vmatpush1.msra.mxu0 0.0
        %1831 = vmatprep.subr.mxu0 0.0
        %1832 = vmatpush1.msra.mxu0 0.0
        %1833 = vmatprep.subr.mxu0 0.0
        %1834 = vmatpush1.msra.mxu0 0.0
        %1835 = vmatprep.subr.mxu0 0.0
        %1836 = vmatpush1.msra.mxu0 0.0
        %1837 = vmatprep.subr.mxu0 0.0
        %1838 = vmatpush1.msra.mxu0 0.0
        %1839 = vmatprep.subr.mxu0 0.0
        %1840 = vmatpush1.msra.mxu0 0.0
        %1841 = vmatprep.subr.mxu0 0.0
        %1842 = vmatpush1.msra.mxu0 %v1766
        %1843 = vmatprep.subr.mxu0 0.0
        %1844 = vmatpush1.msra.mxu0 %v1765
        %1845 = vmatprep.subr.mxu0 0.0
        %1846 = vmatpush1.msra.mxu0 %v1764
        %1847 = vmatprep.subr.mxu0 0.0
        %1848 = vmatpush2.msra.mxu0 0.0
        %1849 = vmatprep.subr.mxu0 0.0
        %1850 = vmatpush2.msra.mxu0 0.0
        %1851 = vmatprep.subr.mxu0 0.0
        %1852 = vmatpush2.msra.mxu0 0.0
        %1853 = vmatprep.subr.mxu0 0.0
        %1854 = vmatpush2.msra.mxu0 0.0
        %1855 = vmatprep.subr.mxu0 0.0
        %1856 = vmatpush2.msra.mxu0 0.0
        %1857 = vmatprep.subr.mxu0 0.0
        %1858 = vmatpush2.msra.mxu0 0.0
        %1859 = vmatprep.subr.mxu0 0.0
        %1860 = vmatpush2.msra.mxu0 0.0
        %1861 = vmatprep.subr.mxu0 0.0
        %1862 = vmatpush2.msra.mxu0 0.0
        %1863 = vmatprep.subr.mxu0 0.0
        %1864 = vmatpush2.msra.mxu0 0.0
        %1865 = vmatprep.subr.mxu0 0.0
        %1866 = vmatpush2.msra.mxu0 0.0
        %1867 = vmatprep.subr.mxu0 0.0
        %1868 = vmatpush2.msra.mxu0 0.0
        %1869 = vmatprep.subr.mxu0 0.0
        %1870 = vmatpush2.msra.mxu0 0.0
        %1871 = vmatprep.subr.mxu0 0.0
        %1872 = vmatpush2.msra.mxu0 0.0
        %1873 = vmatprep.subr.mxu0 0.0
        %1874 = vmatpush2.msra.mxu0 0.0
        %1875 = vmatprep.subr.mxu0 0.0
        %1876 = vmatpush2.msra.mxu0 0.0
        %1877 = vmatprep.subr.mxu0 0.0
        %1878 = vmatpush2.msra.mxu0 0.0
        %1879 = vmatprep.mubr.f32.mxu0 0.0
        %1880 = vmatmul.mubr.f32.gmra.mxu0 %v1768
        %v1881 = vpop.f32.mrf.mxu0
        %v1882 = vadd.f32 0.0, %v1881
        %v1883 = vpop.f32.mrf.mxu0
        %1884 = vmatprep.mubr.f32.mxu0 0.0
        %1885 = vmatmul.mubr.f32.gmra.mxu0 %v1771
        %v1886 = vpop.f32.mrf.mxu0
        %v1887 = vadd.f32 0.0, %v1886
        %v1888 = vpop.f32.mrf.mxu0
        %1889 = vmatprep.mubr.f32.mxu0 0.0
        %1890 = vmatmul.mubr.f32.gmra.mxu0 %v1774
        %v1891 = vpop.f32.mrf.mxu0
        %v1892 = vadd.f32 0.0, %v1891
        %v1893 = vpop.f32.mrf.mxu0
        %1894 = vmatprep.mubr.f32.mxu0 0.0
        %1895 = vmatmul.mubr.f32.gmra.mxu0 %v1777
        %v1896 = vpop.f32.mrf.mxu0
        %v1897 = vadd.f32 0.0, %v1896
        %v1898 = vpop.f32.mrf.mxu0
        %1899 = vmatprep.mubr.f32.mxu0 0.0
        %1900 = vmatmul.mubr.f32.gmra.mxu0 %v1780
        %v1901 = vpop.f32.mrf.mxu0
        %v1902 = vadd.f32 0.0, %v1901
        %v1903 = vpop.f32.mrf.mxu0
        %1904 = vmatprep.mubr.f32.mxu0 0.0
        %1905 = vmatmul.mubr.f32.gmra.mxu0 %v1783
        %v1906 = vpop.f32.mrf.mxu0
        %v1907 = vadd.f32 0.0, %v1906
        %v1908 = vpop.f32.mrf.mxu0
        %1909 = vmatprep.mubr.f32.mxu0 0.0
        %1910 = vmatmul.mubr.f32.gmra.mxu0 %v1786
        %v1911 = vpop.f32.mrf.mxu0
        %v1912 = vadd.f32 0.0, %v1911
        %v1913 = vpop.f32.mrf.mxu0
        %1914 = vmatprep.mubr.f32.mxu0 0.0
        %1915 = vmatmul.mubr.f32.gmra.mxu0 %v1789
        %v1916 = vpop.f32.mrf.mxu0
        %v1917 = vadd.f32 0.0, %v1916
        %v1918 = vpop.f32.mrf.mxu0
        %1919 = vmatprep.mubr.f32.mxu0 0.0
        %1920 = vmatmul.mubr.f32.gmra.mxu0 %v1792
        %v1921 = vpop.f32.mrf.mxu0
        %v1922 = vadd.f32 0.0, %v1921
        %v1923 = vpop.f32.mrf.mxu0
        %1924 = vmatprep.mubr.f32.mxu0 0.0
        %1925 = vmatmul.mubr.f32.gmra.mxu0 %v1795
        %v1926 = vpop.f32.mrf.mxu0
        %v1927 = vadd.f32 0.0, %v1926
        %v1928 = vpop.f32.mrf.mxu0
        %1929 = vmatprep.mubr.f32.mxu0 0.0
        %1930 = vmatmul.mubr.f32.gmra.mxu0 %v1798
        %v1931 = vpop.f32.mrf.mxu0
        %v1932 = vadd.f32 0.0, %v1931
        %v1933 = vpop.f32.mrf.mxu0
        %1934 = vmatprep.mubr.f32.mxu0 0.0
        %1935 = vmatmul.mubr.f32.gmra.mxu0 %v1801
        %v1936 = vpop.f32.mrf.mxu0
        %v1937 = vadd.f32 0.0, %v1936
        %v1938 = vpop.f32.mrf.mxu0
        %1939 = vmatprep.mubr.f32.mxu0 0.0
        %1940 = vmatmul.mubr.f32.gmra.mxu0 %v1804
        %v1941 = vpop.f32.mrf.mxu0
        %v1942 = vadd.f32 0.0, %v1941
        %v1943 = vpop.f32.mrf.mxu0
        %1944 = vmatprep.mubr.f32.mxu0 0.0
        %1945 = vmatmul.mubr.f32.gmra.mxu0 %v1807
        %v1946 = vpop.f32.mrf.mxu0
        %v1947 = vadd.f32 0.0, %v1946
        %v1948 = vpop.f32.mrf.mxu0
        %1949 = vmatprep.mubr.f32.mxu0 0.0
        %1950 = vmatmul.mubr.f32.gmra.mxu0 %v1810
        %v1951 = vpop.f32.mrf.mxu0
        %v1952 = vadd.f32 0.0, %v1951
        %v1953 = vpop.f32.mrf.mxu0
        %1954 = vmatprep.mubr.f32.mxu0 0.0
        %1955 = vmatmul.mubr.f32.gmra.mxu0 %v1813
        %v1956 = vpop.f32.mrf.mxu0
        %v1957 = vadd.f32 0.0, %v1956
        %v1958 = vpop.f32.mrf.mxu0
        %1959 = vdwg.mxu0
        %v1960 = vadd.f32 %v1662, %v1882
        %v1961 = vadd.f32 %v1667, %v1887
        %v1962 = vadd.f32 %v1672, %v1892
        %v1963 = vadd.f32 %v1677, %v1897
        %v1964 = vadd.f32 %v1682, %v1902
        %v1965 = vadd.f32 %v1687, %v1907
        %v1966 = vadd.f32 %v1692, %v1912
        %v1967 = vadd.f32 %v1697, %v1917
        %v1968 = vadd.f32 %v1702, %v1922
        %v1969 = vadd.f32 %v1707, %v1927
        %v1970 = vadd.f32 %v1712, %v1932
        %v1971 = vadd.f32 %v1717, %v1937
        %v1972 = vadd.f32 %v1722, %v1942
        %v1973 = vadd.f32 %v1727, %v1947
        %v1974 = vadd.f32 %v1732, %v1952
        %v1975 = vadd.f32 %v1737, %v1957
        %v1976 = vld [vmem:[%s14] sm:$0xff]
        %v1977 = vld [vmem:[%s14 + $0x8] sm:$0xff]
        %v1978 = vld [vmem:[%s14 + $0x10] sm:$0xff]
        %v1979 = vld [vmem:[%s14 + $0x18] sm:$0xff]
        %v1980 = vld [vmem:[%s14 + $0x20] sm:$0xff]
        %v1981 = vld [vmem:[%s14 + $0x28] sm:$0xff]
        %v1982 = vld [vmem:[%s14 + $0x30] sm:$0xff]
        %v1983 = vld [vmem:[%s14 + $0x38] sm:$0xff]
        %v1984 = vld [vmem:[%s14 + $0x40] sm:$0xff]
        %v1985 = vld [vmem:[%s14 + $0x48] sm:$0xff]
        %v1986 = vld [vmem:[%s14 + $0x50] sm:$0xff]
        %v1987 = vld [vmem:[%s14 + $0x58] sm:$0xff]
        %v1988 = vld [vmem:[%s14 + $0x60] sm:$0xff]
        %v1989 = vld [vmem:[%s14 + $0x68] sm:$0xff]
        %v1990 = vld [vmem:[%s14 + $0x70] sm:$0xff]
        %v1991 = vld [vmem:[%s14 + $0x78] sm:$0xff]
        %1993 = vset.pattern.permute.xlu0 0
        %1994 = vperm.xlu0 %1993, %v1976
        %v1995 = vpop.permute.xlu0 %1994
        %1998 = vset.pattern.permute.xlu0 0
        %1999 = vperm.xlu0 %1998, %v1977
        %v2000 = vpop.permute.xlu0 %1999
        %2003 = vset.pattern.permute.xlu0 0
        %2004 = vperm.xlu0 %2003, %v1978
        %v2005 = vpop.permute.xlu0 %2004
        %2008 = vset.pattern.permute.xlu0 0
        %2009 = vperm.xlu0 %2008, %v1979
        %v2010 = vpop.permute.xlu0 %2009
        %2013 = vset.pattern.permute.xlu0 0
        %2014 = vperm.xlu0 %2013, %v1980
        %v2015 = vpop.permute.xlu0 %2014
        %2018 = vset.pattern.permute.xlu0 0
        %2019 = vperm.xlu0 %2018, %v1981
        %v2020 = vpop.permute.xlu0 %2019
        %2023 = vset.pattern.permute.xlu0 0
        %2024 = vperm.xlu0 %2023, %v1982
        %v2025 = vpop.permute.xlu0 %2024
        %2028 = vset.pattern.permute.xlu0 0
        %2029 = vperm.xlu0 %2028, %v1983
        %v2030 = vpop.permute.xlu0 %2029
        %2033 = vset.pattern.permute.xlu0 0
        %2034 = vperm.xlu0 %2033, %v1984
        %v2035 = vpop.permute.xlu0 %2034
        %2038 = vset.pattern.permute.xlu0 0
        %2039 = vperm.xlu0 %2038, %v1985
        %v2040 = vpop.permute.xlu0 %2039
        %2043 = vset.pattern.permute.xlu0 0
        %2044 = vperm.xlu0 %2043, %v1986
        %v2045 = vpop.permute.xlu0 %2044
        %2048 = vset.pattern.permute.xlu0 0
        %2049 = vperm.xlu0 %2048, %v1987
        %v2050 = vpop.permute.xlu0 %2049
        %2053 = vset.pattern.permute.xlu0 0
        %2054 = vperm.xlu0 %2053, %v1988
        %v2055 = vpop.permute.xlu0 %2054
        %2058 = vset.pattern.permute.xlu0 0
        %2059 = vperm.xlu0 %2058, %v1989
        %v2060 = vpop.permute.xlu0 %2059
        %2063 = vset.pattern.permute.xlu0 0
        %2064 = vperm.xlu0 %2063, %v1990
        %v2065 = vpop.permute.xlu0 %2064
        %2068 = vset.pattern.permute.xlu0 0
        %2069 = vperm.xlu0 %2068, %v1991
        %v2070 = vpop.permute.xlu0 %2069
        %v2072 = vadd.f32 %v1960, %v1995
        %v2073 = vadd.f32 %v1961, %v2000
        %v2074 = vadd.f32 %v1962, %v2005
        %v2075 = vadd.f32 %v1963, %v2010
        %v2076 = vadd.f32 %v1964, %v2015
        %v2077 = vadd.f32 %v1965, %v2020
        %v2078 = vadd.f32 %v1966, %v2025
        %v2079 = vadd.f32 %v1967, %v2030
        %v2080 = vadd.f32 %v1968, %v2035
        %v2081 = vadd.f32 %v1969, %v2040
        %v2082 = vadd.f32 %v1970, %v2045
        %v2083 = vadd.f32 %v1971, %v2050
        %v2084 = vadd.f32 %v1972, %v2055
        %v2085 = vadd.f32 %v1973, %v2060
        %v2086 = vadd.f32 %v1974, %v2065
        %v2087 = vadd.f32 %v1975, %v2070
        %v2088 = vmul.f32 %v2072, 0.5
        %v2089 = vmul.f32 %v2073, 0.5
        %v2090 = vmul.f32 %v2074, 0.5
        %v2091 = vmul.f32 %v2075, 0.5
        %v2092 = vmul.f32 %v2076, 0.5
        %v2093 = vmul.f32 %v2077, 0.5
        %v2094 = vmul.f32 %v2078, 0.5
        %v2095 = vmul.f32 %v2079, 0.5
        %v2096 = vmul.f32 %v2080, 0.5
        %v2097 = vmul.f32 %v2081, 0.5
        %v2098 = vmul.f32 %v2082, 0.5
        %v2099 = vmul.f32 %v2083, 0.5
        %v2100 = vmul.f32 %v2084, 0.5
        %v2101 = vmul.f32 %v2085, 0.5
        %v2102 = vmul.f32 %v2086, 0.5
        %v2103 = vmul.f32 %v2087, 0.5
        %v2104 = vmul.f32 %v2072, 0.70710677
        %v2105 = vmul.f32 %v2073, 0.70710677
        %v2106 = vmul.f32 %v2074, 0.70710677
        %v2107 = vmul.f32 %v2075, 0.70710677
        %v2108 = vmul.f32 %v2076, 0.70710677
        %v2109 = vmul.f32 %v2077, 0.70710677
        %v2110 = vmul.f32 %v2078, 0.70710677
        %v2111 = vmul.f32 %v2079, 0.70710677
        %v2112 = vmul.f32 %v2080, 0.70710677
        %v2113 = vmul.f32 %v2081, 0.70710677
        %v2114 = vmul.f32 %v2082, 0.70710677
        %v2115 = vmul.f32 %v2083, 0.70710677
        %v2116 = vmul.f32 %v2084, 0.70710677
        %v2117 = vmul.f32 %v2085, 0.70710677
        %v2118 = vmul.f32 %v2086, 0.70710677
        %v2119 = vmul.f32 %v2087, 0.70710677
        %vm2120 = vcmp.ge.f32.partialorder %v2104, 0.0
        %vm2121 = vcmp.ge.f32.partialorder %v2105, 0.0
        %vm2122 = vcmp.ge.f32.partialorder %v2106, 0.0
        %vm2123 = vcmp.ge.f32.partialorder %v2107, 0.0
        %vm2124 = vcmp.ge.f32.partialorder %v2108, 0.0
        %vm2125 = vcmp.ge.f32.partialorder %v2109, 0.0
        %vm2126 = vcmp.ge.f32.partialorder %v2110, 0.0
        %vm2127 = vcmp.ge.f32.partialorder %v2111, 0.0
        %vm2128 = vcmp.ge.f32.partialorder %v2112, 0.0
        %vm2129 = vcmp.ge.f32.partialorder %v2113, 0.0
        %vm2130 = vcmp.ge.f32.partialorder %v2114, 0.0
        %vm2131 = vcmp.ge.f32.partialorder %v2115, 0.0
        %vm2132 = vcmp.ge.f32.partialorder %v2116, 0.0
        %vm2133 = vcmp.ge.f32.partialorder %v2117, 0.0
        %vm2134 = vcmp.ge.f32.partialorder %v2118, 0.0
        %vm2135 = vcmp.ge.f32.partialorder %v2119, 0.0
        %v2136 = vsel %vm2120, 1.0, -1.0
        %v2137 = vsel %vm2121, 1.0, -1.0
        %v2138 = vsel %vm2122, 1.0, -1.0
        %v2139 = vsel %vm2123, 1.0, -1.0
        %v2140 = vsel %vm2124, 1.0, -1.0
        %v2141 = vsel %vm2125, 1.0, -1.0
        %v2142 = vsel %vm2126, 1.0, -1.0
        %v2143 = vsel %vm2127, 1.0, -1.0
        %v2144 = vsel %vm2128, 1.0, -1.0
        %v2145 = vsel %vm2129, 1.0, -1.0
        %v2146 = vsel %vm2130, 1.0, -1.0
        %v2147 = vsel %vm2131, 1.0, -1.0
        %v2148 = vsel %vm2132, 1.0, -1.0
        %v2149 = vsel %vm2133, 1.0, -1.0
        %v2150 = vsel %vm2134, 1.0, -1.0
        %v2151 = vsel %vm2135, 1.0, -1.0
        %v2152 = vand.u32 2147483647, %v2104
        %v2153 = vand.u32 2147483647, %v2105
        %v2154 = vand.u32 2147483647, %v2106
        %v2155 = vand.u32 2147483647, %v2107
        %v2156 = vand.u32 2147483647, %v2108
        %v2157 = vand.u32 2147483647, %v2109
        %v2158 = vand.u32 2147483647, %v2110
        %v2159 = vand.u32 2147483647, %v2111
        %v2160 = vand.u32 2147483647, %v2112
        %v2161 = vand.u32 2147483647, %v2113
        %v2162 = vand.u32 2147483647, %v2114
        %v2163 = vand.u32 2147483647, %v2115
        %v2164 = vand.u32 2147483647, %v2116
        %v2165 = vand.u32 2147483647, %v2117
        %v2166 = vand.u32 2147483647, %v2118
        %v2167 = vand.u32 2147483647, %v2119
        %v2168 = vmul.f32 %v2152, 0.3275911
        %v2169 = vmul.f32 %v2153, 0.3275911
        %v2170 = vmul.f32 %v2154, 0.3275911
        %v2171 = vmul.f32 %v2155, 0.3275911
        %v2172 = vmul.f32 %v2156, 0.3275911
        %v2173 = vmul.f32 %v2157, 0.3275911
        %v2174 = vmul.f32 %v2158, 0.3275911
        %v2175 = vmul.f32 %v2159, 0.3275911
        %v2176 = vmul.f32 %v2160, 0.3275911
        %v2177 = vmul.f32 %v2161, 0.3275911
        %v2178 = vmul.f32 %v2162, 0.3275911
        %v2179 = vmul.f32 %v2163, 0.3275911
        %v2180 = vmul.f32 %v2164, 0.3275911
        %v2181 = vmul.f32 %v2165, 0.3275911
        %v2182 = vmul.f32 %v2166, 0.3275911
        %v2183 = vmul.f32 %v2167, 0.3275911
        %v2184 = vadd.f32 %v2168, 1.0
        %v2185 = vadd.f32 %v2169, 1.0
        %v2186 = vadd.f32 %v2170, 1.0
        %v2187 = vadd.f32 %v2171, 1.0
        %v2188 = vadd.f32 %v2172, 1.0
        %v2189 = vadd.f32 %v2173, 1.0
        %v2190 = vadd.f32 %v2174, 1.0
        %v2191 = vadd.f32 %v2175, 1.0
        %v2192 = vadd.f32 %v2176, 1.0
        %v2193 = vadd.f32 %v2177, 1.0
        %v2194 = vadd.f32 %v2178, 1.0
        %v2195 = vadd.f32 %v2179, 1.0
        %v2196 = vadd.f32 %v2180, 1.0
        %v2197 = vadd.f32 %v2181, 1.0
        %v2198 = vadd.f32 %v2182, 1.0
        %v2199 = vadd.f32 %v2183, 1.0
        %v2200 = vrcp.pop %v2184
        %v2201 = vmul.f32 1.0, %v2200
        %v2202 = vrcp.pop %v2185
        %v2203 = vmul.f32 1.0, %v2202
        %v2204 = vrcp.pop %v2186
        %v2205 = vmul.f32 1.0, %v2204
        %v2206 = vrcp.pop %v2187
        %v2207 = vmul.f32 1.0, %v2206
        %v2208 = vrcp.pop %v2188
        %v2209 = vmul.f32 1.0, %v2208
        %v2210 = vrcp.pop %v2189
        %v2211 = vmul.f32 1.0, %v2210
        %v2212 = vrcp.pop %v2190
        %v2213 = vmul.f32 1.0, %v2212
        %v2214 = vrcp.pop %v2191
        %v2215 = vmul.f32 1.0, %v2214
        %v2216 = vrcp.pop %v2192
        %v2217 = vmul.f32 1.0, %v2216
        %v2218 = vrcp.pop %v2193
        %v2219 = vmul.f32 1.0, %v2218
        %v2220 = vrcp.pop %v2194
        %v2221 = vmul.f32 1.0, %v2220
        %v2222 = vrcp.pop %v2195
        %v2223 = vmul.f32 1.0, %v2222
        %v2224 = vrcp.pop %v2196
        %v2225 = vmul.f32 1.0, %v2224
        %v2226 = vrcp.pop %v2197
        %v2227 = vmul.f32 1.0, %v2226
        %v2228 = vrcp.pop %v2198
        %v2229 = vmul.f32 1.0, %v2228
        %v2230 = vrcp.pop %v2199
        %v2231 = vmul.f32 1.0, %v2230
        %v2232 = vmul.f32 %v2201, 1.0614054
        %v2233 = vmul.f32 %v2203, 1.0614054
        %v2234 = vmul.f32 %v2205, 1.0614054
        %v2235 = vmul.f32 %v2207, 1.0614054
        %v2236 = vmul.f32 %v2209, 1.0614054
        %v2237 = vmul.f32 %v2211, 1.0614054
        %v2238 = vmul.f32 %v2213, 1.0614054
        %v2239 = vmul.f32 %v2215, 1.0614054
        %v2240 = vmul.f32 %v2217, 1.0614054
        %v2241 = vmul.f32 %v2219, 1.0614054
        %v2242 = vmul.f32 %v2221, 1.0614054
        %v2243 = vmul.f32 %v2223, 1.0614054
        %v2244 = vmul.f32 %v2225, 1.0614054
        %v2245 = vmul.f32 %v2227, 1.0614054
        %v2246 = vmul.f32 %v2229, 1.0614054
        %v2247 = vmul.f32 %v2231, 1.0614054
        %v2248 = vadd.f32 %v2232, -1.4531521
        %v2249 = vadd.f32 %v2233, -1.4531521
        %v2250 = vadd.f32 %v2234, -1.4531521
        %v2251 = vadd.f32 %v2235, -1.4531521
        %v2252 = vadd.f32 %v2236, -1.4531521
        %v2253 = vadd.f32 %v2237, -1.4531521
        %v2254 = vadd.f32 %v2238, -1.4531521
        %v2255 = vadd.f32 %v2239, -1.4531521
        %v2256 = vadd.f32 %v2240, -1.4531521
        %v2257 = vadd.f32 %v2241, -1.4531521
        %v2258 = vadd.f32 %v2242, -1.4531521
        %v2259 = vadd.f32 %v2243, -1.4531521
        %v2260 = vadd.f32 %v2244, -1.4531521
        %v2261 = vadd.f32 %v2245, -1.4531521
        %v2262 = vadd.f32 %v2246, -1.4531521
        %v2263 = vadd.f32 %v2247, -1.4531521
        %v2264 = vmul.f32 %v2248, %v2201
        %v2265 = vmul.f32 %v2249, %v2203
        %v2266 = vmul.f32 %v2250, %v2205
        %v2267 = vmul.f32 %v2251, %v2207
        %v2268 = vmul.f32 %v2252, %v2209
        %v2269 = vmul.f32 %v2253, %v2211
        %v2270 = vmul.f32 %v2254, %v2213
        %v2271 = vmul.f32 %v2255, %v2215
        %v2272 = vmul.f32 %v2256, %v2217
        %v2273 = vmul.f32 %v2257, %v2219
        %v2274 = vmul.f32 %v2258, %v2221
        %v2275 = vmul.f32 %v2259, %v2223
        %v2276 = vmul.f32 %v2260, %v2225
        %v2277 = vmul.f32 %v2261, %v2227
        %v2278 = vmul.f32 %v2262, %v2229
        %v2279 = vmul.f32 %v2263, %v2231
        %v2280 = vadd.f32 %v2264, 1.4214138
        %v2281 = vadd.f32 %v2265, 1.4214138
        %v2282 = vadd.f32 %v2266, 1.4214138
        %v2283 = vadd.f32 %v2267, 1.4214138
        %v2284 = vadd.f32 %v2268, 1.4214138
        %v2285 = vadd.f32 %v2269, 1.4214138
        %v2286 = vadd.f32 %v2270, 1.4214138
        %v2287 = vadd.f32 %v2271, 1.4214138
        %v2288 = vadd.f32 %v2272, 1.4214138
        %v2289 = vadd.f32 %v2273, 1.4214138
        %v2290 = vadd.f32 %v2274, 1.4214138
        %v2291 = vadd.f32 %v2275, 1.4214138
        %v2292 = vadd.f32 %v2276, 1.4214138
        %v2293 = vadd.f32 %v2277, 1.4214138
        %v2294 = vadd.f32 %v2278, 1.4214138
        %v2295 = vadd.f32 %v2279, 1.4214138
        %v2296 = vmul.f32 %v2280, %v2201
        %v2297 = vmul.f32 %v2281, %v2203
        %v2298 = vmul.f32 %v2282, %v2205
        %v2299 = vmul.f32 %v2283, %v2207
        %v2300 = vmul.f32 %v2284, %v2209
        %v2301 = vmul.f32 %v2285, %v2211
        %v2302 = vmul.f32 %v2286, %v2213
        %v2303 = vmul.f32 %v2287, %v2215
        %v2304 = vmul.f32 %v2288, %v2217
        %v2305 = vmul.f32 %v2289, %v2219
        %v2306 = vmul.f32 %v2290, %v2221
        %v2307 = vmul.f32 %v2291, %v2223
        %v2308 = vmul.f32 %v2292, %v2225
        %v2309 = vmul.f32 %v2293, %v2227
        %v2310 = vmul.f32 %v2294, %v2229
        %v2311 = vmul.f32 %v2295, %v2231
        %v2312 = vadd.f32 %v2296, -0.28449672
        %v2313 = vadd.f32 %v2297, -0.28449672
        %v2314 = vadd.f32 %v2298, -0.28449672
        %v2315 = vadd.f32 %v2299, -0.28449672
        %v2316 = vadd.f32 %v2300, -0.28449672
        %v2317 = vadd.f32 %v2301, -0.28449672
        %v2318 = vadd.f32 %v2302, -0.28449672
        %v2319 = vadd.f32 %v2303, -0.28449672
        %v2320 = vadd.f32 %v2304, -0.28449672
        %v2321 = vadd.f32 %v2305, -0.28449672
        %v2322 = vadd.f32 %v2306, -0.28449672
        %v2323 = vadd.f32 %v2307, -0.28449672
        %v2324 = vadd.f32 %v2308, -0.28449672
        %v2325 = vadd.f32 %v2309, -0.28449672
        %v2326 = vadd.f32 %v2310, -0.28449672
        %v2327 = vadd.f32 %v2311, -0.28449672
        %v2328 = vmul.f32 %v2312, %v2201
        %v2329 = vmul.f32 %v2313, %v2203
        %v2330 = vmul.f32 %v2314, %v2205
        %v2331 = vmul.f32 %v2315, %v2207
        %v2332 = vmul.f32 %v2316, %v2209
        %v2333 = vmul.f32 %v2317, %v2211
        %v2334 = vmul.f32 %v2318, %v2213
        %v2335 = vmul.f32 %v2319, %v2215
        %v2336 = vmul.f32 %v2320, %v2217
        %v2337 = vmul.f32 %v2321, %v2219
        %v2338 = vmul.f32 %v2322, %v2221
        %v2339 = vmul.f32 %v2323, %v2223
        %v2340 = vmul.f32 %v2324, %v2225
        %v2341 = vmul.f32 %v2325, %v2227
        %v2342 = vmul.f32 %v2326, %v2229
        %v2343 = vmul.f32 %v2327, %v2231
        %v2344 = vadd.f32 %v2328, 0.2548296
        %v2345 = vadd.f32 %v2329, 0.2548296
        %v2346 = vadd.f32 %v2330, 0.2548296
        %v2347 = vadd.f32 %v2331, 0.2548296
        %v2348 = vadd.f32 %v2332, 0.2548296
        %v2349 = vadd.f32 %v2333, 0.2548296
        %v2350 = vadd.f32 %v2334, 0.2548296
        %v2351 = vadd.f32 %v2335, 0.2548296
        %v2352 = vadd.f32 %v2336, 0.2548296
        %v2353 = vadd.f32 %v2337, 0.2548296
        %v2354 = vadd.f32 %v2338, 0.2548296
        %v2355 = vadd.f32 %v2339, 0.2548296
        %v2356 = vadd.f32 %v2340, 0.2548296
        %v2357 = vadd.f32 %v2341, 0.2548296
        %v2358 = vadd.f32 %v2342, 0.2548296
        %v2359 = vadd.f32 %v2343, 0.2548296
        %v2360 = vmul.f32 %v2344, %v2201
        %v2361 = vmul.f32 %v2345, %v2203
        %v2362 = vmul.f32 %v2346, %v2205
        %v2363 = vmul.f32 %v2347, %v2207
        %v2364 = vmul.f32 %v2348, %v2209
        %v2365 = vmul.f32 %v2349, %v2211
        %v2366 = vmul.f32 %v2350, %v2213
        %v2367 = vmul.f32 %v2351, %v2215
        %v2368 = vmul.f32 %v2352, %v2217
        %v2369 = vmul.f32 %v2353, %v2219
        %v2370 = vmul.f32 %v2354, %v2221
        %v2371 = vmul.f32 %v2355, %v2223
        %v2372 = vmul.f32 %v2356, %v2225
        %v2373 = vmul.f32 %v2357, %v2227
        %v2374 = vmul.f32 %v2358, %v2229
        %v2375 = vmul.f32 %v2359, %v2231
        %v2376 = vsub.f32 0.0, %v2152
        %v2377 = vsub.f32 0.0, %v2153
        %v2378 = vsub.f32 0.0, %v2154
        %v2379 = vsub.f32 0.0, %v2155
        %v2380 = vsub.f32 0.0, %v2156
        %v2381 = vsub.f32 0.0, %v2157
        %v2382 = vsub.f32 0.0, %v2158
        %v2383 = vsub.f32 0.0, %v2159
        %v2384 = vsub.f32 0.0, %v2160
        %v2385 = vsub.f32 0.0, %v2161
        %v2386 = vsub.f32 0.0, %v2162
        %v2387 = vsub.f32 0.0, %v2163
        %v2388 = vsub.f32 0.0, %v2164
        %v2389 = vsub.f32 0.0, %v2165
        %v2390 = vsub.f32 0.0, %v2166
        %v2391 = vsub.f32 0.0, %v2167
        %v2392 = vmul.f32 %v2376, %v2152
        %v2393 = vmul.f32 %v2377, %v2153
        %v2394 = vmul.f32 %v2378, %v2154
        %v2395 = vmul.f32 %v2379, %v2155
        %v2396 = vmul.f32 %v2380, %v2156
        %v2397 = vmul.f32 %v2381, %v2157
        %v2398 = vmul.f32 %v2382, %v2158
        %v2399 = vmul.f32 %v2383, %v2159
        %v2400 = vmul.f32 %v2384, %v2160
        %v2401 = vmul.f32 %v2385, %v2161
        %v2402 = vmul.f32 %v2386, %v2162
        %v2403 = vmul.f32 %v2387, %v2163
        %v2404 = vmul.f32 %v2388, %v2164
        %v2405 = vmul.f32 %v2389, %v2165
        %v2406 = vmul.f32 %v2390, %v2166
        %v2407 = vmul.f32 %v2391, %v2167
        %v2408 = vmul.f32 %v2392, 1.442695
        %v2409 = vpow.pop %v2408
        %v2410 = vmul.f32 %v2393, 1.442695
        %v2411 = vpow.pop %v2410
        %v2412 = vmul.f32 %v2394, 1.442695
        %v2413 = vpow.pop %v2412
        %v2414 = vmul.f32 %v2395, 1.442695
        %v2415 = vpow.pop %v2414
        %v2416 = vmul.f32 %v2396, 1.442695
        %v2417 = vpow.pop %v2416
        %v2418 = vmul.f32 %v2397, 1.442695
        %v2419 = vpow.pop %v2418
        %v2420 = vmul.f32 %v2398, 1.442695
        %v2421 = vpow.pop %v2420
        %v2422 = vmul.f32 %v2399, 1.442695
        %v2423 = vpow.pop %v2422
        %v2424 = vmul.f32 %v2400, 1.442695
        %v2425 = vpow.pop %v2424
        %v2426 = vmul.f32 %v2401, 1.442695
        %v2427 = vpow.pop %v2426
        %v2428 = vmul.f32 %v2402, 1.442695
        %v2429 = vpow.pop %v2428
        %v2430 = vmul.f32 %v2403, 1.442695
        %v2431 = vpow.pop %v2430
        %v2432 = vmul.f32 %v2404, 1.442695
        %v2433 = vpow.pop %v2432
        %v2434 = vmul.f32 %v2405, 1.442695
        %v2435 = vpow.pop %v2434
        %v2436 = vmul.f32 %v2406, 1.442695
        %v2437 = vpow.pop %v2436
        %v2438 = vmul.f32 %v2407, 1.442695
        %v2439 = vpow.pop %v2438
        %v2440 = vmul.f32 %v2360, %v2409
        %v2441 = vmul.f32 %v2361, %v2411
        %v2442 = vmul.f32 %v2362, %v2413
        %v2443 = vmul.f32 %v2363, %v2415
        %v2444 = vmul.f32 %v2364, %v2417
        %v2445 = vmul.f32 %v2365, %v2419
        %v2446 = vmul.f32 %v2366, %v2421
        %v2447 = vmul.f32 %v2367, %v2423
        %v2448 = vmul.f32 %v2368, %v2425
        %v2449 = vmul.f32 %v2369, %v2427
        %v2450 = vmul.f32 %v2370, %v2429
        %v2451 = vmul.f32 %v2371, %v2431
        %v2452 = vmul.f32 %v2372, %v2433
        %v2453 = vmul.f32 %v2373, %v2435
        %v2454 = vmul.f32 %v2374, %v2437
        %v2455 = vmul.f32 %v2375, %v2439
        %v2456 = vsub.f32 1.0, %v2440
        %v2457 = vsub.f32 1.0, %v2441
        %v2458 = vsub.f32 1.0, %v2442
        %v2459 = vsub.f32 1.0, %v2443
        %v2460 = vsub.f32 1.0, %v2444
        %v2461 = vsub.f32 1.0, %v2445
        %v2462 = vsub.f32 1.0, %v2446
        %v2463 = vsub.f32 1.0, %v2447
        %v2464 = vsub.f32 1.0, %v2448
        %v2465 = vsub.f32 1.0, %v2449
        %v2466 = vsub.f32 1.0, %v2450
        %v2467 = vsub.f32 1.0, %v2451
        %v2468 = vsub.f32 1.0, %v2452
        %v2469 = vsub.f32 1.0, %v2453
        %v2470 = vsub.f32 1.0, %v2454
        %v2471 = vsub.f32 1.0, %v2455
        %v2472 = vmul.f32 %v2136, %v2456
        %v2473 = vmul.f32 %v2137, %v2457
        %v2474 = vmul.f32 %v2138, %v2458
        %v2475 = vmul.f32 %v2139, %v2459
        %v2476 = vmul.f32 %v2140, %v2460
        %v2477 = vmul.f32 %v2141, %v2461
        %v2478 = vmul.f32 %v2142, %v2462
        %v2479 = vmul.f32 %v2143, %v2463
        %v2480 = vmul.f32 %v2144, %v2464
        %v2481 = vmul.f32 %v2145, %v2465
        %v2482 = vmul.f32 %v2146, %v2466
        %v2483 = vmul.f32 %v2147, %v2467
        %v2484 = vmul.f32 %v2148, %v2468
        %v2485 = vmul.f32 %v2149, %v2469
        %v2486 = vmul.f32 %v2150, %v2470
        %v2487 = vmul.f32 %v2151, %v2471
        %v2488 = vadd.f32 %v2472, 1.0
        %v2489 = vadd.f32 %v2473, 1.0
        %v2490 = vadd.f32 %v2474, 1.0
        %v2491 = vadd.f32 %v2475, 1.0
        %v2492 = vadd.f32 %v2476, 1.0
        %v2493 = vadd.f32 %v2477, 1.0
        %v2494 = vadd.f32 %v2478, 1.0
        %v2495 = vadd.f32 %v2479, 1.0
        %v2496 = vadd.f32 %v2480, 1.0
        %v2497 = vadd.f32 %v2481, 1.0
        %v2498 = vadd.f32 %v2482, 1.0
        %v2499 = vadd.f32 %v2483, 1.0
        %v2500 = vadd.f32 %v2484, 1.0
        %v2501 = vadd.f32 %v2485, 1.0
        %v2502 = vadd.f32 %v2486, 1.0
        %v2503 = vadd.f32 %v2487, 1.0
        %v2504 = vmul.f32 %v2088, %v2488
        %v2505 = vmul.f32 %v2089, %v2489
        %v2506 = vmul.f32 %v2090, %v2490
        %v2507 = vmul.f32 %v2091, %v2491
        %v2508 = vmul.f32 %v2092, %v2492
        %v2509 = vmul.f32 %v2093, %v2493
        %v2510 = vmul.f32 %v2094, %v2494
        %v2511 = vmul.f32 %v2095, %v2495
        %v2512 = vmul.f32 %v2096, %v2496
        %v2513 = vmul.f32 %v2097, %v2497
        %v2514 = vmul.f32 %v2098, %v2498
        %v2515 = vmul.f32 %v2099, %v2499
        %v2516 = vmul.f32 %v2100, %v2500
        %v2517 = vmul.f32 %v2101, %v2501
        %v2518 = vmul.f32 %v2102, %v2502
        %v2519 = vmul.f32 %v2103, %v2503
        %s2520 = scalar_lea.vmem %s15, 8
        %v2521 = vld [vmem:[%s2520] sm:$0xff]
        %v2522 = vld [vmem:[%s15] sm:$0xff]
        %2523 = vmatprep.subr.mxu0 0.0
        %2524 = vmatpush1.msra.mxu0 %v2519
        %2525 = vmatprep.subr.mxu0 0.0
        %2526 = vmatpush1.msra.mxu0 %v2518
        %2527 = vmatprep.subr.mxu0 0.0
        %2528 = vmatpush1.msra.mxu0 %v2517
        %2529 = vmatprep.subr.mxu0 0.0
        %2530 = vmatpush1.msra.mxu0 %v2516
        %2531 = vmatprep.subr.mxu0 0.0
        %2532 = vmatpush1.msra.mxu0 %v2515
        %2533 = vmatprep.subr.mxu0 0.0
        %2534 = vmatpush1.msra.mxu0 %v2514
        %2535 = vmatprep.subr.mxu0 0.0
        %2536 = vmatpush1.msra.mxu0 %v2513
        %2537 = vmatprep.subr.mxu0 0.0
        %2538 = vmatpush1.msra.mxu0 %v2512
        %2539 = vmatprep.subr.mxu0 0.0
        %2540 = vmatpush1.msra.mxu0 %v2511
        %2541 = vmatprep.subr.mxu0 0.0
        %2542 = vmatpush1.msra.mxu0 %v2510
        %2543 = vmatprep.subr.mxu0 0.0
        %2544 = vmatpush1.msra.mxu0 %v2509
        %2545 = vmatprep.subr.mxu0 0.0
        %2546 = vmatpush1.msra.mxu0 %v2508
        %2547 = vmatprep.subr.mxu0 0.0
        %2548 = vmatpush1.msra.mxu0 %v2507
        %2549 = vmatprep.subr.mxu0 0.0
        %2550 = vmatpush1.msra.mxu0 %v2506
        %2551 = vmatprep.subr.mxu0 0.0
        %2552 = vmatpush1.msra.mxu0 %v2505
        %2553 = vmatprep.subr.mxu0 0.0
        %2554 = vmatpush1.msra.mxu0 %v2504
        %2555 = vmatprep.subr.mxu0 0.0
        %2556 = vmatpush2.msra.mxu0 0.0
        %2557 = vmatprep.subr.mxu0 0.0
        %2558 = vmatpush2.msra.mxu0 0.0
        %2559 = vmatprep.subr.mxu0 0.0
        %2560 = vmatpush2.msra.mxu0 0.0
        %2561 = vmatprep.subr.mxu0 0.0
        %2562 = vmatpush2.msra.mxu0 0.0
        %2563 = vmatprep.subr.mxu0 0.0
        %2564 = vmatpush2.msra.mxu0 0.0
        %2565 = vmatprep.subr.mxu0 0.0
        %2566 = vmatpush2.msra.mxu0 0.0
        %2567 = vmatprep.subr.mxu0 0.0
        %2568 = vmatpush2.msra.mxu0 0.0
        %2569 = vmatprep.subr.mxu0 0.0
        %2570 = vmatpush2.msra.mxu0 0.0
        %2571 = vmatprep.subr.mxu0 0.0
        %2572 = vmatpush2.msra.mxu0 0.0
        %2573 = vmatprep.subr.mxu0 0.0
        %2574 = vmatpush2.msra.mxu0 0.0
        %2575 = vmatprep.subr.mxu0 0.0
        %2576 = vmatpush2.msra.mxu0 0.0
        %2577 = vmatprep.subr.mxu0 0.0
        %2578 = vmatpush2.msra.mxu0 0.0
        %2579 = vmatprep.subr.mxu0 0.0
        %2580 = vmatpush2.msra.mxu0 0.0
        %2581 = vmatprep.subr.mxu0 0.0
        %2582 = vmatpush2.msra.mxu0 0.0
        %2583 = vmatprep.subr.mxu0 0.0
        %2584 = vmatpush2.msra.mxu0 0.0
        %2585 = vmatprep.subr.mxu0 0.0
        %2586 = vmatpush2.msra.mxu0 0.0
        %2587 = vmatprep.mubr.f32.mxu0 0.0
        %2588 = vmatmul.mubr.f32.gmra.mxu0 %v2522
        %v2589 = vpop.f32.mrf.mxu0
        %v2590 = vadd.f32 0.0, %v2589
        %v2591 = vpop.f32.mrf.mxu0
        %2592 = vdwg.mxu0
        %2593 = vrot.lane.b32.xlu0 %v2590, 1
        %v2594 = vpop.permute.xlu0 %2593
        %v2595 = vsel %vm1349, 0.0, %v2594
        %2596 = vmatprep.subr.mxu0 0.0
        %2597 = vmatpush1.msra.mxu0 %v2519
        %2598 = vmatprep.subr.mxu0 0.0
        %2599 = vmatpush1.msra.mxu0 %v2518
        %2600 = vmatprep.subr.mxu0 0.0
        %2601 = vmatpush1.msra.mxu0 %v2517
        %2602 = vmatprep.subr.mxu0 0.0
        %2603 = vmatpush1.msra.mxu0 %v2516
        %2604 = vmatprep.subr.mxu0 0.0
        %2605 = vmatpush1.msra.mxu0 %v2515
        %2606 = vmatprep.subr.mxu0 0.0
        %2607 = vmatpush1.msra.mxu0 %v2514
        %2608 = vmatprep.subr.mxu0 0.0
        %2609 = vmatpush1.msra.mxu0 %v2513
        %2610 = vmatprep.subr.mxu0 0.0
        %2611 = vmatpush1.msra.mxu0 %v2512
        %2612 = vmatprep.subr.mxu0 0.0
        %2613 = vmatpush1.msra.mxu0 %v2511
        %2614 = vmatprep.subr.mxu0 0.0
        %2615 = vmatpush1.msra.mxu0 %v2510
        %2616 = vmatprep.subr.mxu0 0.0
        %2617 = vmatpush1.msra.mxu0 %v2509
        %2618 = vmatprep.subr.mxu0 0.0
        %2619 = vmatpush1.msra.mxu0 %v2508
        %2620 = vmatprep.subr.mxu0 0.0
        %2621 = vmatpush1.msra.mxu0 %v2507
        %2622 = vmatprep.subr.mxu0 0.0
        %2623 = vmatpush1.msra.mxu0 %v2506
        %2624 = vmatprep.subr.mxu0 0.0
        %2625 = vmatpush1.msra.mxu0 %v2505
        %2626 = vmatprep.subr.mxu0 0.0
        %2627 = vmatpush1.msra.mxu0 %v2504
        %2628 = vmatprep.subr.mxu0 0.0
        %2629 = vmatpush2.msra.mxu0 0.0
        %2630 = vmatprep.subr.mxu0 0.0
        %2631 = vmatpush2.msra.mxu0 0.0
        %2632 = vmatprep.subr.mxu0 0.0
        %2633 = vmatpush2.msra.mxu0 0.0
        %2634 = vmatprep.subr.mxu0 0.0
        %2635 = vmatpush2.msra.mxu0 0.0
        %2636 = vmatprep.subr.mxu0 0.0
        %2637 = vmatpush2.msra.mxu0 0.0
        %2638 = vmatprep.subr.mxu0 0.0
        %2639 = vmatpush2.msra.mxu0 0.0
        %2640 = vmatprep.subr.mxu0 0.0
        %2641 = vmatpush2.msra.mxu0 0.0
        %2642 = vmatprep.subr.mxu0 0.0
        %2643 = vmatpush2.msra.mxu0 0.0
        %2644 = vmatprep.subr.mxu0 0.0
        %2645 = vmatpush2.msra.mxu0 0.0
        %2646 = vmatprep.subr.mxu0 0.0
        %2647 = vmatpush2.msra.mxu0 0.0
        %2648 = vmatprep.subr.mxu0 0.0
        %2649 = vmatpush2.msra.mxu0 0.0
        %2650 = vmatprep.subr.mxu0 0.0
        %2651 = vmatpush2.msra.mxu0 0.0
        %2652 = vmatprep.subr.mxu0 0.0
        %2653 = vmatpush2.msra.mxu0 0.0
        %2654 = vmatprep.subr.mxu0 0.0
        %2655 = vmatpush2.msra.mxu0 0.0
        %2656 = vmatprep.subr.mxu0 0.0
        %2657 = vmatpush2.msra.mxu0 0.0
        %2658 = vmatprep.subr.mxu0 0.0
        %2659 = vmatpush2.msra.mxu0 0.0
        %2660 = vmatprep.mubr.f32.mxu0 0.0
        %2661 = vmatmul.mubr.f32.gmra.mxu0 %v2521
        %v2662 = vpop.f32.mrf.mxu0
        %v2663 = vadd.f32 %v2595, %v2662
        %v2664 = vpop.f32.mrf.mxu0
        %2665 = vdwg.mxu0
        %s2666 = scalar_lea.vmem %s15, 16
        %v2667 = vld [vmem:[%s2666] sm:$0xff]
        %2668 = vmatprep.subr.mxu0 0.0
        %2669 = vmatpush1.msra.mxu0 %v2519
        %2670 = vmatprep.subr.mxu0 0.0
        %2671 = vmatpush1.msra.mxu0 %v2518
        %2672 = vmatprep.subr.mxu0 0.0
        %2673 = vmatpush1.msra.mxu0 %v2517
        %2674 = vmatprep.subr.mxu0 0.0
        %2675 = vmatpush1.msra.mxu0 %v2516
        %2676 = vmatprep.subr.mxu0 0.0
        %2677 = vmatpush1.msra.mxu0 %v2515
        %2678 = vmatprep.subr.mxu0 0.0
        %2679 = vmatpush1.msra.mxu0 %v2514
        %2680 = vmatprep.subr.mxu0 0.0
        %2681 = vmatpush1.msra.mxu0 %v2513
        %2682 = vmatprep.subr.mxu0 0.0
        %2683 = vmatpush1.msra.mxu0 %v2512
        %2684 = vmatprep.subr.mxu0 0.0
        %2685 = vmatpush1.msra.mxu0 %v2511
        %2686 = vmatprep.subr.mxu0 0.0
        %2687 = vmatpush1.msra.mxu0 %v2510
        %2688 = vmatprep.subr.mxu0 0.0
        %2689 = vmatpush1.msra.mxu0 %v2509
        %2690 = vmatprep.subr.mxu0 0.0
        %2691 = vmatpush1.msra.mxu0 %v2508
        %2692 = vmatprep.subr.mxu0 0.0
        %2693 = vmatpush1.msra.mxu0 %v2507
        %2694 = vmatprep.subr.mxu0 0.0
        %2695 = vmatpush1.msra.mxu0 %v2506
        %2696 = vmatprep.subr.mxu0 0.0
        %2697 = vmatpush1.msra.mxu0 %v2505
        %2698 = vmatprep.subr.mxu0 0.0
        %2699 = vmatpush1.msra.mxu0 %v2504
        %2700 = vmatprep.subr.mxu0 0.0
        %2701 = vmatpush2.msra.mxu0 0.0
        %2702 = vmatprep.subr.mxu0 0.0
        %2703 = vmatpush2.msra.mxu0 0.0
        %2704 = vmatprep.subr.mxu0 0.0
        %2705 = vmatpush2.msra.mxu0 0.0
        %2706 = vmatprep.subr.mxu0 0.0
        %2707 = vmatpush2.msra.mxu0 0.0
        %2708 = vmatprep.subr.mxu0 0.0
        %2709 = vmatpush2.msra.mxu0 0.0
        %2710 = vmatprep.subr.mxu0 0.0
        %2711 = vmatpush2.msra.mxu0 0.0
        %2712 = vmatprep.subr.mxu0 0.0
        %2713 = vmatpush2.msra.mxu0 0.0
        %2714 = vmatprep.subr.mxu0 0.0
        %2715 = vmatpush2.msra.mxu0 0.0
        %2716 = vmatprep.subr.mxu0 0.0
        %2717 = vmatpush2.msra.mxu0 0.0
        %2718 = vmatprep.subr.mxu0 0.0
        %2719 = vmatpush2.msra.mxu0 0.0
        %2720 = vmatprep.subr.mxu0 0.0
        %2721 = vmatpush2.msra.mxu0 0.0
        %2722 = vmatprep.subr.mxu0 0.0
        %2723 = vmatpush2.msra.mxu0 0.0
        %2724 = vmatprep.subr.mxu0 0.0
        %2725 = vmatpush2.msra.mxu0 0.0
        %2726 = vmatprep.subr.mxu0 0.0
        %2727 = vmatpush2.msra.mxu0 0.0
        %2728 = vmatprep.subr.mxu0 0.0
        %2729 = vmatpush2.msra.mxu0 0.0
        %2730 = vmatprep.subr.mxu0 0.0
        %2731 = vmatpush2.msra.mxu0 0.0
        %2732 = vmatprep.mubr.f32.mxu0 0.0
        %2733 = vmatmul.mubr.f32.gmra.mxu0 %v2667
        %v2734 = vpop.f32.mrf.mxu0
        %v2735 = vadd.f32 0.0, %v2734
        %v2736 = vpop.f32.mrf.mxu0
        %2737 = vdwg.mxu0
        %2738 = vrot.lane.b32.xlu0 %v2735, 127
        %v2739 = vpop.permute.xlu0 %2738
        %v2740 = vsel %vm1763, 0.0, %v2739
        %v2741 = vadd.f32 %v2663, %v2740
        %v2742 = vld [vmem:[%s16] sm:$0xff]
        %2744 = vset.pattern.permute.xlu0 0
        %2745 = vperm.xlu0 %2744, %v2742
        %v2746 = vpop.permute.xlu0 %2745
        %v2748 = vadd.f32 %v2741, %v2746
        %v2749 = vadd.f32 %v706, %v2748
        %v2750 = vld [vmem:[%s17] sm:$0xff]
        %v2751 = vld [vmem:[%s17 + $0x8] sm:$0xff]
        %v2752 = vld [vmem:[%s17 + $0x10] sm:$0xff]
        %v2753 = vld [vmem:[%s17 + $0x18] sm:$0xff]
        %v2754 = vld [vmem:[%s17 + $0x20] sm:$0xff]
        %v2755 = vld [vmem:[%s17 + $0x28] sm:$0xff]
        %v2756 = vld [vmem:[%s17 + $0x30] sm:$0xff]
        %v2757 = vld [vmem:[%s17 + $0x38] sm:$0xff]
        %v2758 = vld [vmem:[%s17 + $0x40] sm:$0xff]
        %v2759 = vld [vmem:[%s17 + $0x48] sm:$0xff]
        %v2760 = vld [vmem:[%s17 + $0x50] sm:$0xff]
        %v2761 = vld [vmem:[%s17 + $0x58] sm:$0xff]
        %v2762 = vld [vmem:[%s17 + $0x60] sm:$0xff]
        %v2763 = vld [vmem:[%s17 + $0x68] sm:$0xff]
        %v2764 = vld [vmem:[%s17 + $0x70] sm:$0xff]
        %v2765 = vld [vmem:[%s17 + $0x78] sm:$0xff]
        %v2766 = vld [vmem:[%s18] sm:$0x1]
        %v2768 = vlaneseq
        %v2769 = vshrl.u32 %v2768, 7
        %v2770 = vsub.s32 0, %v2769
        %v2771 = vrot.slane %v2766, %v2770
        %2773 = vmatprep.subr.mxu0 0.0
        %2774 = vmatpush1.msra.mxu0 %v2765
        %2775 = vmatprep.subr.mxu0 0.0
        %2776 = vmatpush1.msra.mxu0 %v2764
        %2777 = vmatprep.subr.mxu0 0.0
        %2778 = vmatpush1.msra.mxu0 %v2763
        %2779 = vmatprep.subr.mxu0 0.0
        %2780 = vmatpush1.msra.mxu0 %v2762
        %2781 = vmatprep.subr.mxu0 0.0
        %2782 = vmatpush1.msra.mxu0 %v2761
        %2783 = vmatprep.subr.mxu0 0.0
        %2784 = vmatpush1.msra.mxu0 %v2760
        %2785 = vmatprep.subr.mxu0 0.0
        %2786 = vmatpush1.msra.mxu0 %v2759
        %2787 = vmatprep.subr.mxu0 0.0
        %2788 = vmatpush1.msra.mxu0 %v2758
        %2789 = vmatprep.subr.mxu0 0.0
        %2790 = vmatpush1.msra.mxu0 %v2757
        %2791 = vmatprep.subr.mxu0 0.0
        %2792 = vmatpush1.msra.mxu0 %v2756
        %2793 = vmatprep.subr.mxu0 0.0
        %2794 = vmatpush1.msra.mxu0 %v2755
        %2795 = vmatprep.subr.mxu0 0.0
        %2796 = vmatpush1.msra.mxu0 %v2754
        %2797 = vmatprep.subr.mxu0 0.0
        %2798 = vmatpush1.msra.mxu0 %v2753
        %2799 = vmatprep.subr.mxu0 0.0
        %2800 = vmatpush1.msra.mxu0 %v2752
        %2801 = vmatprep.subr.mxu0 0.0
        %2802 = vmatpush1.msra.mxu0 %v2751
        %2803 = vmatprep.subr.mxu0 0.0
        %2804 = vmatpush1.msra.mxu0 %v2750
        %2805 = vmatprep.subr.mxu0 0.0
        %2806 = vmatpush2.msra.mxu0 0.0
        %2807 = vmatprep.subr.mxu0 0.0
        %2808 = vmatpush2.msra.mxu0 0.0
        %2809 = vmatprep.subr.mxu0 0.0
        %2810 = vmatpush2.msra.mxu0 0.0
        %2811 = vmatprep.subr.mxu0 0.0
        %2812 = vmatpush2.msra.mxu0 0.0
        %2813 = vmatprep.subr.mxu0 0.0
        %2814 = vmatpush2.msra.mxu0 0.0
        %2815 = vmatprep.subr.mxu0 0.0
        %2816 = vmatpush2.msra.mxu0 0.0
        %2817 = vmatprep.subr.mxu0 0.0
        %2818 = vmatpush2.msra.mxu0 0.0
        %2819 = vmatprep.subr.mxu0 0.0
        %2820 = vmatpush2.msra.mxu0 0.0
        %2821 = vmatprep.subr.mxu0 0.0
        %2822 = vmatpush2.msra.mxu0 0.0
        %2823 = vmatprep.subr.mxu0 0.0
        %2824 = vmatpush2.msra.mxu0 0.0
        %2825 = vmatprep.subr.mxu0 0.0
        %2826 = vmatpush2.msra.mxu0 0.0
        %2827 = vmatprep.subr.mxu0 0.0
        %2828 = vmatpush2.msra.mxu0 0.0
        %2829 = vmatprep.subr.mxu0 0.0
        %2830 = vmatpush2.msra.mxu0 0.0
        %2831 = vmatprep.subr.mxu0 0.0
        %2832 = vmatpush2.msra.mxu0 0.0
        %2833 = vmatprep.subr.mxu0 0.0
        %2834 = vmatpush2.msra.mxu0 0.0
        %2835 = vmatprep.subr.mxu0 0.0
        %2836 = vmatpush2.msra.mxu0 0.0
        %2837 = vmatprep.mubr.f32.mxu0 0.0
        %2838 = vmatmul.mubr.f32.gmra.mxu0 %v2749
        %v2839 = vpop.f32.mrf.mxu0
        %v2840 = vadd.f32 %v2771, %v2839
        %v2841 = vpop.f32.mrf.mxu0
        %2842 = vdwg.mxu0
        %v2843 = vmul.f32 %v2840, %v618
        %v2844 = vadd.f32 %v2843, %v604
        %2845 = vst.msk [vmem:[%s593] sm:$0xff] %vm1149, %v2844
        %s2846 = sand.u32 %s445, 1
        %s2847 = scalar_lea.sflag [#allocation3], %s2846
        %s2848 = sand.u32 %s445, 1
        %s2849 = smul.addr %s2848, 8
        %s2850 = scalar_lea.vmem [#allocation2], %s2849
        // Predicated region
        $region97: #{pallas_forward.1} parent=95 // pred_check
          %p2851 = pneg %p455
        $region98: #{pallas_forward.1} parent=95 // pred_check_branch
          %2853 = sbr.rel (%p2851) target = $region100
        $region99: #{pallas_forward.1} parent=95 // pred_region
          %s2855 = ssub.s32 128, 128
          %2856 = vsyncadd %s2847, %s2855
          %s2857 = smul.addr %s33, 128
          %s2858 = scalar_lea.hbm %s19, %s2857
          %s2860 = sshll.u32 %s2850, 4
          %s2861 = int_to_ptr.vmem [resolvable:$true] %s2860
          %2863 = dma.vmem_to_hbm [thread:$0]  %s2861, 128, %s2858, %s2847
        $region100: #{pallas_forward.1} parent=95 // pred_fallthru
          _
      $region96: #{pallas_forward.1} parent=5 // pred_fallthru
        _
      %p2864 = scmp.le.s32.totalorder 2, %s28
      // Predicated region
      $region101: #{pallas_forward.1} parent=5 // pred_check
        %p2865 = pneg %p2864
      $region102: #{pallas_forward.1} parent=5 // pred_check_branch
        %2867 = sbr.rel (%p2865) target = $region104
      $region103: #{pallas_forward.1} parent=5 // pred_region
        %s2868 = ssub.s32 %s28, 2
        // Predicated region
        $region105: #{pallas_forward.1} parent=103 // pred_check
          %p2869 = pneg %p461
        $region106: #{pallas_forward.1} parent=103 // pred_check_branch
          %2871 = sbr.rel (%p2869) target = $region108
        $region107: #{pallas_forward.1} parent=103 // pred_region
          %s2872 = sand.u32 %s446, 1
          %s2873 = scalar_lea.sflag [#allocation3], %s2872
          %s2874 = sand.u32 %s446, 1
          %s2875 = smul.addr %s2874, 8
          %s2876 = scalar_lea.vmem [#allocation2], %s2875
          %2877 = dma.done %s2873, 128
        $region108: #{pallas_forward.1} parent=103 // pred_fallthru
          _
      $region104: #{pallas_forward.1} parent=5 // pred_fallthru
        _
    $region6: #{pallas_forward.1} parent=1 // loop_footer
      %s32 = sadd.s32 1, %s28
    $region7: #{pallas_forward.1} parent=1 // loop_footer_branch
      %27 = sbr.rel target = $region3
    $region8: #{pallas_forward.1} parent=1 // loop_exit
      _
    %2878 = vsyncpa [#allocation3], 1
    %s2879 = scalar_lea.sflag [#allocation3], 1
    %2880 = vsyncpa %s2879, 1

</llo_original>
